<compile_context>
chip_gen: v5e
topology: v5e:2x2
jax: 0.10.0
libtpu: 0.0.40
codegen_flags: <defaults>
</compile_context>

<pallas_src>
import jax
import jax.numpy as jnp
from jax.experimental import pallas as pl
from jax.experimental.pallas import tpu as pltpu

LN_EPS = 1e-5

_WEIGHT_ORDER = ("wqkv", "bqkv", "wo", "bo", "ln1w", "ln1b",
                 "w1", "b1", "w2", "b2", "ln2w", "ln2b", "wc", "bc")


def _round_up(n, m):
    return ((n + m - 1) // m) * m


def _make_kernel(s_real, d_real):
    """Build the fused encoder+classifier kernel for real (unpadded) S and D."""
    inv_d = 1.0 / float(d_real)

    def kernel(x_ref,                  # (TB, Sp, Dp) bf16
               wqkv_ref, bqkv_ref,     # (Dp, 3Dp) bf16, (1, 3Dp) f32  (Wq/bq pre-scaled by 1/sqrt(D))
               wo_ref, bo_ref,         # (Dp, Dp)  bf16, (1, Dp)  f32
               ln1w_ref, ln1b_ref,     # (1, Dp)   f32 each (zero in padded lanes)
               w1_ref, b1_ref,         # (Dp, Fp)  bf16, (1, Fp)  f32
               w2_ref, b2_ref,         # (Fp, Dp)  bf16, (1, Dp)  f32
               ln2w_ref, ln2b_ref,     # (1, Dp)   f32 each
               wc_ref, bc_ref,         # (Dp, Cp)  bf16, (1, Cp)  f32
               out_ref):               # (TB, Sp, Cp) bf16
        TB, Sp, Dp = x_ref.shape
        Cp = out_ref.shape[-1]
        R = TB * Sp

        x_b = x_ref[...].reshape(R, Dp)            # bf16 matmul operand
        x = x_b.astype(jnp.float32)                # f32 residual stream

        # --- fused QKV projection (single wide MXU push) ---
        qkv = jnp.dot(x_b, wqkv_ref[...], preferred_element_type=jnp.float32) + bqkv_ref[...]
        q = qkv[:, 0 * Dp:1 * Dp].reshape(TB, Sp, Dp).astype(jnp.bfloat16)  # pre-scaled by 1/sqrt(D)
        k = qkv[:, 1 * Dp:2 * Dp].reshape(TB, Sp, Dp).astype(jnp.bfloat16)
        v = qkv[:, 2 * Dp:3 * Dp].reshape(TB, Sp, Dp).astype(jnp.bfloat16)

        # --- single-head self-attention per batch element (softmax in f32) ---
        scores = jnp.einsum("bqd,bkd->bqk", q, k, preferred_element_type=jnp.float32)
        if s_real != Sp:
            # padded key positions must not receive attention mass
            kmask = jax.lax.broadcasted_iota(jnp.int32, (1, 1, Sp), 2) < s_real
            scores = jnp.where(kmask, scores, jnp.float32(-1e30))
        scores = scores - jnp.max(scores, axis=-1, keepdims=True)
        p = jnp.exp(scores)
        p = p * pl.reciprocal(jnp.sum(p, axis=-1, keepdims=True), approx=True)
        attn = jnp.einsum("bqk,bkd->bqd", p.astype(jnp.bfloat16), v,
                          preferred_element_type=jnp.float32).reshape(R, Dp)
        attn = jnp.dot(attn.astype(jnp.bfloat16), wo_ref[...],
                       preferred_element_type=jnp.float32) + bo_ref[...]

        if d_real != Dp:
            dmask = (jax.lax.broadcasted_iota(jnp.int32, (1, Dp), 1) < d_real).astype(jnp.float32)
        else:
            dmask = None

        def layer_norm(h, w, b):
            # padded lanes of h are exactly zero -> sum(h)/d_real is the true mean
            mu = jnp.sum(h, axis=-1, keepdims=True) * inv_d
            c = h - mu
            if dmask is not None:
                c = c * dmask                      # exclude padded lanes from variance / output
            var = jnp.sum(c * c, axis=-1, keepdims=True) * inv_d
            return c * jax.lax.rsqrt(var + LN_EPS) * w + b

        # --- residual + LayerNorm 1 (post-norm, f32) ---
        h = layer_norm(x + attn, ln1w_ref[...], ln1b_ref[...])

        # --- feed-forward: Linear -> ReLU -> Linear ---
        ff = jnp.dot(h.astype(jnp.bfloat16), w1_ref[...],
                     preferred_element_type=jnp.float32) + b1_ref[...]
        ff = jnp.maximum(ff, 0.0)
        ff = jnp.dot(ff.astype(jnp.bfloat16), w2_ref[...],
                     preferred_element_type=jnp.float32) + b2_ref[...]

        # --- residual + LayerNorm 2 ---
        h2 = layer_norm(h + ff, ln2w_ref[...], ln2b_ref[...])

        # --- classifier head (lane-dense padded output, bf16 writeback) ---
        logits = jnp.dot(h2.astype(jnp.bfloat16), wc_ref[...],
                         preferred_element_type=jnp.float32) + bc_ref[...]
        out_ref[...] = logits.reshape(TB, Sp, Cp).astype(out_ref.dtype)

    return kernel


def pack_params(params, *, lane_multiple=128):
    """One-time weight packing: QKV fusion, 1/sqrt(D) fold, lane padding, bf16 casts.

    lane_multiple=128 satisfies (8,128) vreg tiling everywhere; use 256 on v6e/v7x if you
    want fully-filled 256-wide MXU pushes for small D/F.
    """
    D = params["wq"].shape[0]
    F = params["w1"].shape[1]
    C = params["wc"].shape[1]
    Dp = _round_up(D, lane_multiple)
    Fp = _round_up(F, lane_multiple)
    Cp = _round_up(C, 128)
    rs = 1.0 / float(D) ** 0.5
    bf16 = jnp.bfloat16

    def pad_mat(w, r, c):
        return jnp.pad(w, ((0, r - w.shape[0]), (0, c - w.shape[1])))

    wq = pad_mat(params["wq"] * rs, Dp, Dp)
    wk = pad_mat(params["wk"], Dp, Dp)
    wv = pad_mat(params["wv"], Dp, Dp)
    bq = pad_mat(params["bq"] * rs, 1, Dp)
    bk = pad_mat(params["bk"], 1, Dp)
    bv = pad_mat(params["bv"], 1, Dp)

    packed = {
        "wqkv": jnp.concatenate([wq, wk, wv], axis=1).astype(bf16),
        "bqkv": jnp.concatenate([bq, bk, bv], axis=1).astype(jnp.float32),
        "wo": pad_mat(params["wo"], Dp, Dp).astype(bf16),
        "bo": pad_mat(params["bo"], 1, Dp).astype(jnp.float32),
        "ln1w": pad_mat(params["ln1w"], 1, Dp).astype(jnp.float32),
        "ln1b": pad_mat(params["ln1b"], 1, Dp).astype(jnp.float32),
        "w1": pad_mat(params["w1"], Dp, Fp).astype(bf16),
        "b1": pad_mat(params["b1"], 1, Fp).astype(jnp.float32),
        "w2": pad_mat(params["w2"], Fp, Dp).astype(bf16),
        "b2": pad_mat(params["b2"], 1, Dp).astype(jnp.float32),
        "ln2w": pad_mat(params["ln2w"], 1, Dp).astype(jnp.float32),
        "ln2b": pad_mat(params["ln2b"], 1, Dp).astype(jnp.float32),
        "wc": pad_mat(params["wc"], Dp, Cp).astype(bf16),
        "bc": pad_mat(params["bc"], 1, Cp).astype(jnp.float32),
    }
    meta = {"D": D, "F": F, "C": C, "Dp": Dp, "Fp": Fp, "Cp": Cp}
    return packed, meta


def _default_block_rows():
    try:
        kind = jax.devices()[0].device_kind.lower()
    except Exception:
        kind = ""
    if "v6" in kind:
        return 512   # 128 MiB VMEM + 256-wide MXU: larger batch tiles pay off
    return 256       # v5e (HBM-bound) / v7x (64 MiB VMEM)


def _pick_tile(B, Sp, Dp, Fp, Cp, weight_bytes, block_rows):
    """Batch-tile size + vmem_limit from footprint (incl. quadratic score buffers)."""
    try:
        cap = int(pltpu.get_tpu_info().vmem_capacity_bytes)
    except Exception:
        cap = 64 << 20                      # conservative: v7x per-TensorCore VMEM
    cap_usable = cap - (16 << 20)           # headroom for compiler scratch / spills

    # rough live-activation bytes per row (f32 intermediates + bf16 matmul operands);
    # the 10*Sp term is the per-row share of the (TB, Sp, Sp) scores/probs buffers.
    per_row = 50 * Dp + 6 * Fp + 10 * Cp + 10 * Sp
    per_tile_row = per_row * Sp             # bytes per unit of TB

    act_budget = max(cap_usable - weight_bytes - (4 << 20), per_tile_row)
    tb_vmem = max(1, act_budget // per_tile_row)
    tb_rows = max(1, block_rows // Sp)
    TB = int(max(1, min(B, tb_rows, tb_vmem)))

    vmem_limit = weight_bytes + TB * per_tile_row + (8 << 20)
    vmem_limit = int(min(cap_usable, max(32 << 20, vmem_limit)))
    return TB, vmem_limit


def transformer_model_forward(x, packed, meta, *, block_rows=None):
    """x: (B, S, D) float32.  packed/meta from pack_params().  Returns (B, S, n_classes) f32."""
    B, S, D = x.shape
    assert D == meta["D"], "x feature dim does not match packed params"
    Dp, Fp, Cp, C = meta["Dp"], meta["Fp"], meta["Cp"], meta["C"]
    Sp = _round_up(S, 8)

    if block_rows is None:
        block_rows = _default_block_rows()

    weight_args = [packed[k] for k in _WEIGHT_ORDER]
    # budget with the worst case (double-buffered weights) so the fallback path also fits
    weight_bytes = sum(int(w.size) * w.dtype.itemsize for w in weight_args)
    TB, vmem_limit = _pick_tile(B, Sp, Dp, Fp, Cp, 2 * weight_bytes, block_rows)

    n_blocks = -(-B // TB)
    B_pad = n_blocks * TB

    # bf16 input DMA (halves x HBM traffic); pad to aligned (B_pad, Sp, Dp)
    x_p = x.astype(jnp.bfloat16)
    if (B_pad, Sp, Dp) != (B, S, D):
        x_p = jnp.pad(x_p, ((0, B_pad - B), (0, Sp - S), (0, Dp - D)))

    kernel = _make_kernel(S, D)

    def run(weight_pipeline_mode):
        def w_spec(shape):
            kwargs = {}
            if weight_pipeline_mode is not None:
                kwargs["pipeline_mode"] = weight_pipeline_mode
            # constant index_map -> weight block resident across all grid steps
            return pl.BlockSpec(shape, lambda b, n=len(shape): (0,) * n, **kwargs)

        in_specs = [pl.BlockSpec((TB, Sp, Dp), lambda b: (b, 0, 0))]
        in_specs += [w_spec(w.shape) for w in weight_args]

        out = pl.pallas_call(
            kernel,
            out_shape=jax.ShapeDtypeStruct((B_pad, Sp, Cp), jnp.bfloat16),
            grid_spec=pltpu.PrefetchScalarGridSpec(
                num_scalar_prefetch=0,
                grid=(n_blocks,),
                in_specs=in_specs,
                out_specs=pl.BlockSpec((TB, Sp, Cp), lambda b: (b, 0, 0)),
            ),
            compiler_params=pltpu.CompilerParams(
                dimension_semantics=("parallel",),   # batch tiles independent -> dual-TC on v7x
                vmem_limit_bytes=vmem_limit,
            ),
        )(x_p, *weight_args)
        return jax.block_until_ready(out)

    buffered_once = getattr(pl, "Buffered", None)
    try:
        # single-buffer the resident weights: halves their VMEM footprint
        out = run(buffered_once(1) if buffered_once is not None else None)
    except Exception:
        # TODO(synk): fall back to default double-buffered weight blocks if this jax version
        # rejects pipeline_mode=pl.Buffered(1) on pallas_call BlockSpecs.
        out = run(None)

    return out[:B, :S, :C].astype(jnp.float32)


def init_params(key, n_features, n_classes, dim_feedforward=2048):
    D, F, C = n_features, dim_feedforward, n_classes
    keys = jax.random.split(key, 12)
    s = 0.02
    # Stored in (in, out) layout (transposed vs torch Linear.weight).
    return {
        "wq": s * jax.random.normal(keys[0], (D, D), jnp.float32),
        "wk": s * jax.random.normal(keys[1], (D, D), jnp.float32),
        "wv": s * jax.random.normal(keys[2], (D, D), jnp.float32),
        "bq": s * jax.random.normal(keys[3], (1, D), jnp.float32),
        "bk": s * jax.random.normal(keys[4], (1, D), jnp.float32),
        "bv": s * jax.random.normal(keys[5], (1, D), jnp.float32),
        "wo": s * jax.random.normal(keys[6], (D, D), jnp.float32),
        "bo": jnp.zeros((1, D), jnp.float32),
        "ln1w": jnp.ones((1, D), jnp.float32),
        "ln1b": jnp.zeros((1, D), jnp.float32),
        "w1": s * jax.random.normal(keys[7], (D, F), jnp.float32),
        "b1": s * jax.random.normal(keys[8], (1, F), jnp.float32),
        "w2": s * jax.random.normal(keys[9], (F, D), jnp.float32),
        "b2": jnp.zeros((1, D), jnp.float32),
        "ln2w": jnp.ones((1, D), jnp.float32),
        "ln2b": jnp.zeros((1, D), jnp.float32),
        "wc": s * jax.random.normal(keys[10], (D, C), jnp.float32),
        "bc": s * jax.random.normal(keys[11], (1, C), jnp.float32),
    }


def reference_forward(x, p):
    """Pure-JAX f32 reference mirroring PyTorch TransformerEncoderLayer (eval, post-norm)."""
    d = x.shape[-1]
    q = x @ p["wq"] + p["bq"]
    k = x @ p["wk"] + p["bk"]
    v = x @ p["wv"] + p["bv"]
    scores = jnp.einsum("bqd,bkd->bqk", q, k) / jnp.sqrt(jnp.float32(d))
    attn = jax.nn.softmax(scores, axis=-1) @ v
    attn = attn @ p["wo"] + p["bo"]

    def ln(h, w, b):
        mu = jnp.mean(h, axis=-1, keepdims=True)
        var = jnp.mean((h - mu) ** 2, axis=-1, keepdims=True)
        return (h - mu) / jnp.sqrt(var + LN_EPS) * w + b

    h = ln(x + attn, p["ln1w"], p["ln1b"])
    ff = jnp.maximum(h @ p["w1"] + p["b1"], 0.0) @ p["w2"] + p["b2"]
    h2 = ln(h + ff, p["ln2w"], p["ln2b"])
    return h2 @ p["wc"] + p["bc"]


if __name__ == "__main__":
    B, S, D, C = 2, 8, 32, 4   # batch, seq, n_features, n_classes
    key = jax.random.PRNGKey(0)
    kx, kp = jax.random.split(key)
    x = jax.random.normal(kx, (B, S, D), jnp.float32)
    params = init_params(kp, n_features=D, n_classes=C)

    # one-time (hoisted) weight packing
    packed, meta = pack_params(params)
    packed = jax.tree_util.tree_map(jax.block_until_ready, packed)

    out = transformer_model_forward(x, packed, meta)
    out = jax.block_until_ready(out)

    ref = reference_forward(x, params)
    assert out.shape == (B, S, C)
    max_err = float(jnp.max(jnp.abs(out - ref)))
    # Tolerance accounts for bf16 input/output + bf16 matmul operands (f32 accumulation)
    # and the approx softmax reciprocal.
    assert jnp.allclose(out, ref, atol=2e-2, rtol=2e-2), (
        f"mismatch vs pure-JAX reference (max abs err {max_err:.3e})")
    print("KERNEL_OK")
</pallas_src>

<mosaic_0001>
module attributes {stable_mosaic.version = 11 : i64} {
  func.func @kernel(%arg0: i32, %arg1: memref<2x8x128xbf16, #tpu.memory_space<vmem>>, %arg2: memref<128x384xbf16, #tpu.memory_space<vmem>>, %arg3: memref<1x384xf32, #tpu.memory_space<vmem>>, %arg4: memref<128x128xbf16, #tpu.memory_space<vmem>>, %arg5: memref<1x128xf32, #tpu.memory_space<vmem>>, %arg6: memref<1x128xf32, #tpu.memory_space<vmem>>, %arg7: memref<1x128xf32, #tpu.memory_space<vmem>>, %arg8: memref<128x2048xbf16, #tpu.memory_space<vmem>>, %arg9: memref<1x2048xf32, #tpu.memory_space<vmem>>, %arg10: memref<2048x128xbf16, #tpu.memory_space<vmem>>, %arg11: memref<1x128xf32, #tpu.memory_space<vmem>>, %arg12: memref<1x128xf32, #tpu.memory_space<vmem>>, %arg13: memref<1x128xf32, #tpu.memory_space<vmem>>, %arg14: memref<128x128xbf16, #tpu.memory_space<vmem>>, %arg15: memref<1x128xf32, #tpu.memory_space<vmem>>, %arg16: memref<2x8x128xbf16, #tpu.memory_space<vmem>>) attributes {dimension_semantics = [#tpu.dimension_semantics<parallel>], iteration_bounds = array<i64: 1>, scalar_prefetch = 0 : i64, scratch_operands = 0 : i64, tpu.core_type = #tpu.core_type<tc>, window_params = [{transform_indices = @transform_0, window_bounds = array<i64: 2, 8, 128>}, {pipeline_mode = #tpu.pipeline_mode<synchronous>, transform_indices = @transform_1, window_bounds = array<i64: 128, 384>}, {pipeline_mode = #tpu.pipeline_mode<synchronous>, transform_indices = @transform_2, window_bounds = array<i64: 1, 384>}, {pipeline_mode = #tpu.pipeline_mode<synchronous>, transform_indices = @transform_3, window_bounds = array<i64: 128, 128>}, {pipeline_mode = #tpu.pipeline_mode<synchronous>, transform_indices = @transform_4, window_bounds = array<i64: 1, 128>}, {pipeline_mode = #tpu.pipeline_mode<synchronous>, transform_indices = @transform_5, window_bounds = array<i64: 1, 128>}, {pipeline_mode = #tpu.pipeline_mode<synchronous>, transform_indices = @transform_6, window_bounds = array<i64: 1, 128>}, {pipeline_mode = #tpu.pipeline_mode<synchronous>, transform_indices = @transform_7, window_bounds = array<i64: 128, 2048>}, {pipeline_mode = #tpu.pipeline_mode<synchronous>, transform_indices = @transform_8, window_bounds = array<i64: 1, 2048>}, {pipeline_mode = #tpu.pipeline_mode<synchronous>, transform_indices = @transform_9, window_bounds = array<i64: 2048, 128>}, {pipeline_mode = #tpu.pipeline_mode<synchronous>, transform_indices = @transform_10, window_bounds = array<i64: 1, 128>}, {pipeline_mode = #tpu.pipeline_mode<synchronous>, transform_indices = @transform_11, window_bounds = array<i64: 1, 128>}, {pipeline_mode = #tpu.pipeline_mode<synchronous>, transform_indices = @transform_12, window_bounds = array<i64: 1, 128>}, {pipeline_mode = #tpu.pipeline_mode<synchronous>, transform_indices = @transform_13, window_bounds = array<i64: 128, 128>}, {pipeline_mode = #tpu.pipeline_mode<synchronous>, transform_indices = @transform_14, window_bounds = array<i64: 1, 128>}, {transform_indices = @transform_15, window_bounds = array<i64: 2, 8, 128>}]} {
    %c0 = arith.constant 0 : index
    %c0_0 = arith.constant 0 : index
    %c0_1 = arith.constant 0 : index
    %0 = vector.load %arg1[%c0, %c0_0, %c0_1] : memref<2x8x128xbf16, #tpu.memory_space<vmem>>, vector<2x8x128xbf16>
    %1 = vector.shape_cast %0 : vector<2x8x128xbf16> to vector<16x128xbf16>
    %2 = arith.extf %1 : vector<16x128xbf16> to vector<16x128xf32>
    %c0_2 = arith.constant 0 : index
    %c0_3 = arith.constant 0 : index
    %3 = vector.load %arg2[%c0_2, %c0_3] : memref<128x384xbf16, #tpu.memory_space<vmem>>, vector<128x384xbf16>
    %cst = arith.constant dense<0.000000e+00> : vector<16x384xf32>
    %4 = tpu.matmul %1, %3, %cst {dimension_numbers = #tpu.dot_dimension_numbers<[1], [0], [0], [1], [0, 0, 1, 1], [], []>} : vector<16x128xbf16>, vector<128x384xbf16>, vector<16x384xf32> -> vector<16x384xf32>
    %c0_4 = arith.constant 0 : index
    %c0_5 = arith.constant 0 : index
    %5 = vector.load %arg3[%c0_4, %c0_5] : memref<1x384xf32, #tpu.memory_space<vmem>>, vector<1x384xf32>
    %6 = vector.broadcast %5 : vector<1x384xf32> to vector<16x384xf32>
    %7 = arith.addf %4, %6 : vector<16x384xf32>
    %8 = vector.extract_strided_slice %7 {offsets = [0, 0], sizes = [16, 128], strides = [1, 1]} : vector<16x384xf32> to vector<16x128xf32>
    %9 = vector.shape_cast %8 : vector<16x128xf32> to vector<2x8x128xf32>
    %10 = arith.truncf %9 : vector<2x8x128xf32> to vector<2x8x128xbf16>
    %11 = vector.extract_strided_slice %7 {offsets = [0, 128], sizes = [16, 128], strides = [1, 1]} : vector<16x384xf32> to vector<16x128xf32>
    %12 = vector.shape_cast %11 : vector<16x128xf32> to vector<2x8x128xf32>
    %13 = arith.truncf %12 : vector<2x8x128xf32> to vector<2x8x128xbf16>
    %14 = vector.extract_strided_slice %7 {offsets = [0, 256], sizes = [16, 128], strides = [1, 1]} : vector<16x384xf32> to vector<16x128xf32>
    %15 = vector.shape_cast %14 : vector<16x128xf32> to vector<2x8x128xf32>
    %16 = arith.truncf %15 : vector<2x8x128xf32> to vector<2x8x128xbf16>
    "tpu.trace_start"() <{level = 10 : i32, message = "bqd,bkd->bqk"}> : () -> ()
    %cst_6 = arith.constant dense<0.000000e+00> : vector<2x8x8xf32>
    %17 = tpu.matmul %10, %13, %cst_6 {dimension_numbers = #tpu.dot_dimension_numbers<[2], [2], [1], [1], [0, 0, 0, 1, 1, 1], [0], [0]>} : vector<2x8x128xbf16>, vector<2x8x128xbf16>, vector<2x8x8xf32> -> vector<2x8x8xf32>
    "tpu.trace_stop"() : () -> ()
    %cst_7 = arith.constant dense<0xFF800000> : vector<2x8xf32>
    %18 = vector.multi_reduction <maximumf>, %17, %cst_7 [2] : vector<2x8x8xf32> to vector<2x8xf32>
    %19 = vector.shape_cast %18 : vector<2x8xf32> to vector<2x8x1xf32>
    %20 = vector.broadcast %19 : vector<2x8x1xf32> to vector<2x8x8xf32>
    %21 = arith.subf %17, %20 : vector<2x8x8xf32>
    %22 = math.exp %21 : vector<2x8x8xf32>
    %cst_8 = arith.constant dense<0.000000e+00> : vector<2x8xf32>
    %23 = vector.multi_reduction <add>, %22, %cst_8 [2] : vector<2x8x8xf32> to vector<2x8xf32>
    %24 = vector.shape_cast %23 : vector<2x8xf32> to vector<2x8x1xf32>
    %25 = tpu.reciprocal %24 {approx = true} : vector<2x8x1xf32> -> vector<2x8x1xf32>
    %26 = vector.broadcast %25 : vector<2x8x1xf32> to vector<2x8x8xf32>
    %27 = arith.mulf %22, %26 : vector<2x8x8xf32>
    %28 = arith.truncf %27 : vector<2x8x8xf32> to vector<2x8x8xbf16>
    "tpu.trace_start"() <{level = 10 : i32, message = "bqk,bkd->bqd"}> : () -> ()
    %cst_9 = arith.constant dense<0.000000e+00> : vector<2x8x128xf32>
    %29 = tpu.matmul %28, %16, %cst_9 {dimension_numbers = #tpu.dot_dimension_numbers<[2], [1], [1], [2], [0, 0, 0, 1, 1, 2], [0], [0]>} : vector<2x8x8xbf16>, vector<2x8x128xbf16>, vector<2x8x128xf32> -> vector<2x8x128xf32>
    "tpu.trace_stop"() : () -> ()
    %30 = vector.shape_cast %29 : vector<2x8x128xf32> to vector<16x128xf32>
    %31 = arith.truncf %30 : vector<16x128xf32> to vector<16x128xbf16>
    %c0_10 = arith.constant 0 : index
    %c0_11 = arith.constant 0 : index
    %32 = vector.load %arg4[%c0_10, %c0_11] : memref<128x128xbf16, #tpu.memory_space<vmem>>, vector<128x128xbf16>
    %cst_12 = arith.constant dense<0.000000e+00> : vector<16x128xf32>
    %33 = tpu.matmul %31, %32, %cst_12 {dimension_numbers = #tpu.dot_dimension_numbers<[1], [0], [0], [1], [0, 0, 1, 1], [], []>} : vector<16x128xbf16>, vector<128x128xbf16>, vector<16x128xf32> -> vector<16x128xf32>
    %c0_13 = arith.constant 0 : index
    %c0_14 = arith.constant 0 : index
    %34 = vector.load %arg5[%c0_13, %c0_14] : memref<1x128xf32, #tpu.memory_space<vmem>>, vector<1x128xf32>
    %35 = vector.broadcast %34 : vector<1x128xf32> to vector<16x128xf32>
    %36 = arith.addf %33, %35 : vector<16x128xf32>
    %37 = tpu.iota {dimensions = array<i32: 1>} : vector<1x128xi32>
    %c32_i32 = arith.constant 32 : i32
    %38 = vector.broadcast %c32_i32 : i32 to vector<1x128xi32>
    %39 = arith.cmpi slt, %37, %38 : vector<1x128xi32>
    %40 = arith.extui %39 : vector<1x128xi1> to vector<1x128xi32>
    %41 = arith.sitofp %40 : vector<1x128xi32> to vector<1x128xf32>
    %42 = arith.addf %2, %36 : vector<16x128xf32>
    %c0_15 = arith.constant 0 : index
    %c0_16 = arith.constant 0 : index
    %43 = vector.load %arg6[%c0_15, %c0_16] : memref<1x128xf32, #tpu.memory_space<vmem>>, vector<1x128xf32>
    %c0_17 = arith.constant 0 : index
    %c0_18 = arith.constant 0 : index
    %44 = vector.load %arg7[%c0_17, %c0_18] : memref<1x128xf32, #tpu.memory_space<vmem>>, vector<1x128xf32>
    %cst_19 = arith.constant dense<0.000000e+00> : vector<16xf32>
    %45 = vector.multi_reduction <add>, %42, %cst_19 [1] : vector<16x128xf32> to vector<16xf32>
    %46 = vector.shape_cast %45 : vector<16xf32> to vector<16x1xf32>
    %cst_20 = arith.constant 3.125000e-02 : f32
    %47 = vector.broadcast %cst_20 : f32 to vector<16x1xf32>
    %48 = arith.mulf %46, %47 : vector<16x1xf32>
    %49 = vector.broadcast %48 : vector<16x1xf32> to vector<16x128xf32>
    %50 = arith.subf %42, %49 : vector<16x128xf32>
    %51 = vector.broadcast %41 : vector<1x128xf32> to vector<16x128xf32>
    %52 = arith.mulf %50, %51 : vector<16x128xf32>
    %53 = arith.mulf %52, %52 : vector<16x128xf32>
    %cst_21 = arith.constant dense<0.000000e+00> : vector<16xf32>
    %54 = vector.multi_reduction <add>, %53, %cst_21 [1] : vector<16x128xf32> to vector<16xf32>
    %55 = vector.shape_cast %54 : vector<16xf32> to vector<16x1xf32>
    %cst_22 = arith.constant 3.125000e-02 : f32
    %56 = vector.broadcast %cst_22 : f32 to vector<16x1xf32>
    %57 = arith.mulf %55, %56 : vector<16x1xf32>
    %cst_23 = arith.constant 9.99999974E-6 : f32
    %58 = vector.broadcast %cst_23 : f32 to vector<16x1xf32>
    %59 = arith.addf %57, %58 : vector<16x1xf32>
    %60 = math.rsqrt %59 : vector<16x1xf32>
    %61 = vector.broadcast %60 : vector<16x1xf32> to vector<16x128xf32>
    %62 = arith.mulf %52, %61 : vector<16x128xf32>
    %63 = vector.broadcast %43 : vector<1x128xf32> to vector<16x128xf32>
    %64 = arith.mulf %62, %63 : vector<16x128xf32>
    %65 = vector.broadcast %44 : vector<1x128xf32> to vector<16x128xf32>
    %66 = arith.addf %64, %65 : vector<16x128xf32>
    %67 = arith.truncf %66 : vector<16x128xf32> to vector<16x128xbf16>
    %c0_24 = arith.constant 0 : index
    %c0_25 = arith.constant 0 : index
    %68 = vector.load %arg8[%c0_24, %c0_25] : memref<128x2048xbf16, #tpu.memory_space<vmem>>, vector<128x2048xbf16>
    %cst_26 = arith.constant dense<0.000000e+00> : vector<16x2048xf32>
    %69 = tpu.matmul %67, %68, %cst_26 {dimension_numbers = #tpu.dot_dimension_numbers<[1], [0], [0], [1], [0, 0, 1, 1], [], []>} : vector<16x128xbf16>, vector<128x2048xbf16>, vector<16x2048xf32> -> vector<16x2048xf32>
    %c0_27 = arith.constant 0 : index
    %c0_28 = arith.constant 0 : index
    %70 = vector.load %arg9[%c0_27, %c0_28] : memref<1x2048xf32, #tpu.memory_space<vmem>>, vector<1x2048xf32>
    %71 = vector.broadcast %70 : vector<1x2048xf32> to vector<16x2048xf32>
    %72 = arith.addf %69, %71 : vector<16x2048xf32>
    %cst_29 = arith.constant 0.000000e+00 : f32
    %73 = vector.broadcast %cst_29 : f32 to vector<16x2048xf32>
    %74 = arith.maximumf %72, %73 : vector<16x2048xf32>
    %75 = arith.truncf %74 : vector<16x2048xf32> to vector<16x2048xbf16>
    %c0_30 = arith.constant 0 : index
    %c0_31 = arith.constant 0 : index
    %76 = vector.load %arg10[%c0_30, %c0_31] : memref<2048x128xbf16, #tpu.memory_space<vmem>>, vector<2048x128xbf16>
    %cst_32 = arith.constant dense<0.000000e+00> : vector<16x128xf32>
    %77 = tpu.matmul %75, %76, %cst_32 {dimension_numbers = #tpu.dot_dimension_numbers<[1], [0], [0], [1], [0, 0, 1, 1], [], []>} : vector<16x2048xbf16>, vector<2048x128xbf16>, vector<16x128xf32> -> vector<16x128xf32>
    %c0_33 = arith.constant 0 : index
    %c0_34 = arith.constant 0 : index
    %78 = vector.load %arg11[%c0_33, %c0_34] : memref<1x128xf32, #tpu.memory_space<vmem>>, vector<1x128xf32>
    %79 = vector.broadcast %78 : vector<1x128xf32> to vector<16x128xf32>
    %80 = arith.addf %77, %79 : vector<16x128xf32>
    %81 = arith.addf %66, %80 : vector<16x128xf32>
    %c0_35 = arith.constant 0 : index
    %c0_36 = arith.constant 0 : index
    %82 = vector.load %arg12[%c0_35, %c0_36] : memref<1x128xf32, #tpu.memory_space<vmem>>, vector<1x128xf32>
    %c0_37 = arith.constant 0 : index
    %c0_38 = arith.constant 0 : index
    %83 = vector.load %arg13[%c0_37, %c0_38] : memref<1x128xf32, #tpu.memory_space<vmem>>, vector<1x128xf32>
    %cst_39 = arith.constant dense<0.000000e+00> : vector<16xf32>
    %84 = vector.multi_reduction <add>, %81, %cst_39 [1] : vector<16x128xf32> to vector<16xf32>
    %85 = vector.shape_cast %84 : vector<16xf32> to vector<16x1xf32>
    %cst_40 = arith.constant 3.125000e-02 : f32
    %86 = vector.broadcast %cst_40 : f32 to vector<16x1xf32>
    %87 = arith.mulf %85, %86 : vector<16x1xf32>
    %88 = vector.broadcast %87 : vector<16x1xf32> to vector<16x128xf32>
    %89 = arith.subf %81, %88 : vector<16x128xf32>
    %90 = vector.broadcast %41 : vector<1x128xf32> to vector<16x128xf32>
    %91 = arith.mulf %89, %90 : vector<16x128xf32>
    %92 = arith.mulf %91, %91 : vector<16x128xf32>
    %cst_41 = arith.constant dense<0.000000e+00> : vector<16xf32>
    %93 = vector.multi_reduction <add>, %92, %cst_41 [1] : vector<16x128xf32> to vector<16xf32>
    %94 = vector.shape_cast %93 : vector<16xf32> to vector<16x1xf32>
    %cst_42 = arith.constant 3.125000e-02 : f32
    %95 = vector.broadcast %cst_42 : f32 to vector<16x1xf32>
    %96 = arith.mulf %94, %95 : vector<16x1xf32>
    %cst_43 = arith.constant 9.99999974E-6 : f32
    %97 = vector.broadcast %cst_43 : f32 to vector<16x1xf32>
    %98 = arith.addf %96, %97 : vector<16x1xf32>
    %99 = math.rsqrt %98 : vector<16x1xf32>
    %100 = vector.broadcast %99 : vector<16x1xf32> to vector<16x128xf32>
    %101 = arith.mulf %91, %100 : vector<16x128xf32>
    %102 = vector.broadcast %82 : vector<1x128xf32> to vector<16x128xf32>
    %103 = arith.mulf %101, %102 : vector<16x128xf32>
    %104 = vector.broadcast %83 : vector<1x128xf32> to vector<16x128xf32>
    %105 = arith.addf %103, %104 : vector<16x128xf32>
    %106 = arith.truncf %105 : vector<16x128xf32> to vector<16x128xbf16>
    %c0_44 = arith.constant 0 : index
    %c0_45 = arith.constant 0 : index
    %107 = vector.load %arg14[%c0_44, %c0_45] : memref<128x128xbf16, #tpu.memory_space<vmem>>, vector<128x128xbf16>
    %cst_46 = arith.constant dense<0.000000e+00> : vector<16x128xf32>
    %108 = tpu.matmul %106, %107, %cst_46 {dimension_numbers = #tpu.dot_dimension_numbers<[1], [0], [0], [1], [0, 0, 1, 1], [], []>} : vector<16x128xbf16>, vector<128x128xbf16>, vector<16x128xf32> -> vector<16x128xf32>
    %c0_47 = arith.constant 0 : index
    %c0_48 = arith.constant 0 : index
    %109 = vector.load %arg15[%c0_47, %c0_48] : memref<1x128xf32, #tpu.memory_space<vmem>>, vector<1x128xf32>
    %110 = vector.broadcast %109 : vector<1x128xf32> to vector<16x128xf32>
    %111 = arith.addf %108, %110 : vector<16x128xf32>
    %112 = vector.shape_cast %111 : vector<16x128xf32> to vector<2x8x128xf32>
    %113 = arith.truncf %112 : vector<2x8x128xf32> to vector<2x8x128xbf16>
    %c0_49 = arith.constant 0 : index
    %c0_50 = arith.constant 0 : index
    %c0_51 = arith.constant 0 : index
    %114 = vector.load %arg16[%c0_49, %c0_50, %c0_51] : memref<2x8x128xbf16, #tpu.memory_space<vmem>>, vector<2x8x128xbf16>
    tpu.vector_store %arg16[%c0_49, %c0_50, %c0_51], %113 {strides = array<i32>} : memref<2x8x128xbf16, #tpu.memory_space<vmem>>, vector<2x8x128xbf16>,
    return
  }
  func.func @transform_0(%arg0: i32) -> (i32, i32, i32) {
    %c0_i32 = arith.constant 0 : i32
    %c0_i32_0 = arith.constant 0 : i32
    %c0_i32_1 = arith.constant 0 : i32
    return %arg0, %c0_i32, %c0_i32_0 : i32, i32, i32
  }
  func.func @transform_1(%arg0: i32) -> (i32, i32) {
    %c0_i32 = arith.constant 0 : i32
    %c0_i32_0 = arith.constant 0 : i32
    %c0_i32_1 = arith.constant 0 : i32
    return %c0_i32, %c0_i32_0 : i32, i32
  }
  func.func @transform_2(%arg0: i32) -> (i32, i32) {
    %c0_i32 = arith.constant 0 : i32
    %c0_i32_0 = arith.constant 0 : i32
    %c0_i32_1 = arith.constant 0 : i32
    return %c0_i32, %c0_i32_0 : i32, i32
  }
  func.func @transform_3(%arg0: i32) -> (i32, i32) {
    %c0_i32 = arith.constant 0 : i32
    %c0_i32_0 = arith.constant 0 : i32
    %c0_i32_1 = arith.constant 0 : i32
    return %c0_i32, %c0_i32_0 : i32, i32
  }
  func.func @transform_4(%arg0: i32) -> (i32, i32) {
    %c0_i32 = arith.constant 0 : i32
    %c0_i32_0 = arith.constant 0 : i32
    %c0_i32_1 = arith.constant 0 : i32
    return %c0_i32, %c0_i32_0 : i32, i32
  }
  func.func @transform_5(%arg0: i32) -> (i32, i32) {
    %c0_i32 = arith.constant 0 : i32
    %c0_i32_0 = arith.constant 0 : i32
    %c0_i32_1 = arith.constant 0 : i32
    return %c0_i32, %c0_i32_0 : i32, i32
  }
  func.func @transform_6(%arg0: i32) -> (i32, i32) {
    %c0_i32 = arith.constant 0 : i32
    %c0_i32_0 = arith.constant 0 : i32
    %c0_i32_1 = arith.constant 0 : i32
    return %c0_i32, %c0_i32_0 : i32, i32
  }
  func.func @transform_7(%arg0: i32) -> (i32, i32) {
    %c0_i32 = arith.constant 0 : i32
    %c0_i32_0 = arith.constant 0 : i32
    %c0_i32_1 = arith.constant 0 : i32
    return %c0_i32, %c0_i32_0 : i32, i32
  }
  func.func @transform_8(%arg0: i32) -> (i32, i32) {
    %c0_i32 = arith.constant 0 : i32
    %c0_i32_0 = arith.constant 0 : i32
    %c0_i32_1 = arith.constant 0 : i32
    return %c0_i32, %c0_i32_0 : i32, i32
  }
  func.func @transform_9(%arg0: i32) -> (i32, i32) {
    %c0_i32 = arith.constant 0 : i32
    %c0_i32_0 = arith.constant 0 : i32
    %c0_i32_1 = arith.constant 0 : i32
    return %c0_i32, %c0_i32_0 : i32, i32
  }
  func.func @transform_10(%arg0: i32) -> (i32, i32) {
    %c0_i32 = arith.constant 0 : i32
    %c0_i32_0 = arith.constant 0 : i32
    %c0_i32_1 = arith.constant 0 : i32
    return %c0_i32, %c0_i32_0 : i32, i32
  }
  func.func @transform_11(%arg0: i32) -> (i32, i32) {
    %c0_i32 = arith.constant 0 : i32
    %c0_i32_0 = arith.constant 0 : i32
    %c0_i32_1 = arith.constant 0 : i32
    return %c0_i32, %c0_i32_0 : i32, i32
  }
  func.func @transform_12(%arg0: i32) -> (i32, i32) {
    %c0_i32 = arith.constant 0 : i32
    %c0_i32_0 = arith.constant 0 : i32
    %c0_i32_1 = arith.constant 0 : i32
    return %c0_i32, %c0_i32_0 : i32, i32
  }
  func.func @transform_13(%arg0: i32) -> (i32, i32) {
    %c0_i32 = arith.constant 0 : i32
    %c0_i32_0 = arith.constant 0 : i32
    %c0_i32_1 = arith.constant 0 : i32
    return %c0_i32, %c0_i32_0 : i32, i32
  }
  func.func @transform_14(%arg0: i32) -> (i32, i32) {
    %c0_i32 = arith.constant 0 : i32
    %c0_i32_0 = arith.constant 0 : i32
    %c0_i32_1 = arith.constant 0 : i32
    return %c0_i32, %c0_i32_0 : i32, i32
  }
  func.func @transform_15(%arg0: i32) -> (i32, i32, i32) {
    %c0_i32 = arith.constant 0 : i32
    %c0_i32_0 = arith.constant 0 : i32
    %c0_i32_1 = arith.constant 0 : i32
    return %arg0, %c0_i32, %c0_i32_0 : i32, i32, i32
  }
}

module attributes {stable_mosaic.version = 11 : i64} {
  func.func @kernel(%arg0: i32, %arg1: memref<2x8x128xbf16, #tpu.memory_space<vmem>>, %arg2: memref<128x384xbf16, #tpu.memory_space<vmem>>, %arg3: memref<1x384xf32, #tpu.memory_space<vmem>>, %arg4: memref<128x128xbf16, #tpu.memory_space<vmem>>, %arg5: memref<1x128xf32, #tpu.memory_space<vmem>>, %arg6: memref<1x128xf32, #tpu.memory_space<vmem>>, %arg7: memref<1x128xf32, #tpu.memory_space<vmem>>, %arg8: memref<128x2048xbf16, #tpu.memory_space<vmem>>, %arg9: memref<1x2048xf32, #tpu.memory_space<vmem>>, %arg10: memref<2048x128xbf16, #tpu.memory_space<vmem>>, %arg11: memref<1x128xf32, #tpu.memory_space<vmem>>, %arg12: memref<1x128xf32, #tpu.memory_space<vmem>>, %arg13: memref<1x128xf32, #tpu.memory_space<vmem>>, %arg14: memref<128x128xbf16, #tpu.memory_space<vmem>>, %arg15: memref<1x128xf32, #tpu.memory_space<vmem>>, %arg16: memref<2x8x128xbf16, #tpu.memory_space<vmem>>) attributes {dimension_semantics = [#tpu.dimension_semantics<parallel>], iteration_bounds = array<i64: 1>, scalar_prefetch = 0 : i64, scratch_operands = 0 : i64, tpu.core_type = #tpu.core_type<tc>, window_params = [{transform_indices = @transform_0, window_bounds = array<i64: 2, 8, 128>}, {pipeline_mode = #tpu.pipeline_mode<synchronous>, transform_indices = @transform_1, window_bounds = array<i64: 128, 384>}, {pipeline_mode = #tpu.pipeline_mode<synchronous>, transform_indices = @transform_2, window_bounds = array<i64: 1, 384>}, {pipeline_mode = #tpu.pipeline_mode<synchronous>, transform_indices = @transform_3, window_bounds = array<i64: 128, 128>}, {pipeline_mode = #tpu.pipeline_mode<synchronous>, transform_indices = @transform_4, window_bounds = array<i64: 1, 128>}, {pipeline_mode = #tpu.pipeline_mode<synchronous>, transform_indices = @transform_5, window_bounds = array<i64: 1, 128>}, {pipeline_mode = #tpu.pipeline_mode<synchronous>, transform_indices = @transform_6, window_bounds = array<i64: 1, 128>}, {pipeline_mode = #tpu.pipeline_mode<synchronous>, transform_indices = @transform_7, window_bounds = array<i64: 128, 2048>}, {pipeline_mode = #tpu.pipeline_mode<synchronous>, transform_indices = @transform_8, window_bounds = array<i64: 1, 2048>}, {pipeline_mode = #tpu.pipeline_mode<synchronous>, transform_indices = @transform_9, window_bounds = array<i64: 2048, 128>}, {pipeline_mode = #tpu.pipeline_mode<synchronous>, transform_indices = @transform_10, window_bounds = array<i64: 1, 128>}, {pipeline_mode = #tpu.pipeline_mode<synchronous>, transform_indices = @transform_11, window_bounds = array<i64: 1, 128>}, {pipeline_mode = #tpu.pipeline_mode<synchronous>, transform_indices = @transform_12, window_bounds = array<i64: 1, 128>}, {pipeline_mode = #tpu.pipeline_mode<synchronous>, transform_indices = @transform_13, window_bounds = array<i64: 128, 128>}, {pipeline_mode = #tpu.pipeline_mode<synchronous>, transform_indices = @transform_14, window_bounds = array<i64: 1, 128>}, {transform_indices = @transform_15, window_bounds = array<i64: 2, 8, 128>}]} {
    %c0 = arith.constant 0 : index
    %c0_0 = arith.constant 0 : index
    %c0_1 = arith.constant 0 : index
    %0 = vector.load %arg1[%c0, %c0_0, %c0_1] : memref<2x8x128xbf16, #tpu.memory_space<vmem>>, vector<2x8x128xbf16>
    %1 = vector.shape_cast %0 : vector<2x8x128xbf16> to vector<16x128xbf16>
    %2 = arith.extf %1 : vector<16x128xbf16> to vector<16x128xf32>
    %c0_2 = arith.constant 0 : index
    %c0_3 = arith.constant 0 : index
    %3 = vector.load %arg2[%c0_2, %c0_3] : memref<128x384xbf16, #tpu.memory_space<vmem>>, vector<128x384xbf16>
    %cst = arith.constant dense<0.000000e+00> : vector<16x384xf32>
    %4 = tpu.matmul %1, %3, %cst {dimension_numbers = #tpu.dot_dimension_numbers<[1], [0], [0], [1], [0, 0, 1, 1], [], []>} : vector<16x128xbf16>, vector<128x384xbf16>, vector<16x384xf32> -> vector<16x384xf32>
    %c0_4 = arith.constant 0 : index
    %c0_5 = arith.constant 0 : index
    %5 = vector.load %arg3[%c0_4, %c0_5] : memref<1x384xf32, #tpu.memory_space<vmem>>, vector<1x384xf32>
    %6 = vector.broadcast %5 : vector<1x384xf32> to vector<16x384xf32>
    %7 = arith.addf %4, %6 : vector<16x384xf32>
    %8 = vector.extract_strided_slice %7 {offsets = [0, 0], sizes = [16, 128], strides = [1, 1]} : vector<16x384xf32> to vector<16x128xf32>
    %9 = vector.shape_cast %8 : vector<16x128xf32> to vector<2x8x128xf32>
    %10 = arith.truncf %9 : vector<2x8x128xf32> to vector<2x8x128xbf16>
    %11 = vector.extract_strided_slice %7 {offsets = [0, 128], sizes = [16, 128], strides = [1, 1]} : vector<16x384xf32> to vector<16x128xf32>
    %12 = vector.shape_cast %11 : vector<16x128xf32> to vector<2x8x128xf32>
    %13 = arith.truncf %12 : vector<2x8x128xf32> to vector<2x8x128xbf16>
    %14 = vector.extract_strided_slice %7 {offsets = [0, 256], sizes = [16, 128], strides = [1, 1]} : vector<16x384xf32> to vector<16x128xf32>
    %15 = vector.shape_cast %14 : vector<16x128xf32> to vector<2x8x128xf32>
    %16 = arith.truncf %15 : vector<2x8x128xf32> to vector<2x8x128xbf16>
    "tpu.trace_start"() <{level = 10 : i32, message = "bqd,bkd->bqk"}> : () -> ()
    %cst_6 = arith.constant dense<0.000000e+00> : vector<2x8x8xf32>
    %17 = tpu.matmul %10, %13, %cst_6 {dimension_numbers = #tpu.dot_dimension_numbers<[2], [2], [1], [1], [0, 0, 0, 1, 1, 1], [0], [0]>} : vector<2x8x128xbf16>, vector<2x8x128xbf16>, vector<2x8x8xf32> -> vector<2x8x8xf32>
    "tpu.trace_stop"() : () -> ()
    %cst_7 = arith.constant dense<0xFF800000> : vector<2x8xf32>
    %18 = vector.multi_reduction <maximumf>, %17, %cst_7 [2] : vector<2x8x8xf32> to vector<2x8xf32>
    %19 = vector.shape_cast %18 : vector<2x8xf32> to vector<2x8x1xf32>
    %20 = vector.broadcast %19 : vector<2x8x1xf32> to vector<2x8x8xf32>
    %21 = arith.subf %17, %20 : vector<2x8x8xf32>
    %22 = math.exp %21 : vector<2x8x8xf32>
    %cst_8 = arith.constant dense<0.000000e+00> : vector<2x8xf32>
    %23 = vector.multi_reduction <add>, %22, %cst_8 [2] : vector<2x8x8xf32> to vector<2x8xf32>
    %24 = vector.shape_cast %23 : vector<2x8xf32> to vector<2x8x1xf32>
    %25 = tpu.reciprocal %24 {approx = true} : vector<2x8x1xf32> -> vector<2x8x1xf32>
    %26 = vector.broadcast %25 : vector<2x8x1xf32> to vector<2x8x8xf32>
    %27 = arith.mulf %22, %26 : vector<2x8x8xf32>
    %28 = arith.truncf %27 : vector<2x8x8xf32> to vector<2x8x8xbf16>
    "tpu.trace_start"() <{level = 10 : i32, message = "bqk,bkd->bqd"}> : () -> ()
    %cst_9 = arith.constant dense<0.000000e+00> : vector<2x8x128xf32>
    %29 = tpu.matmul %28, %16, %cst_9 {dimension_numbers = #tpu.dot_dimension_numbers<[2], [1], [1], [2], [0, 0, 0, 1, 1, 2], [0], [0]>} : vector<2x8x8xbf16>, vector<2x8x128xbf16>, vector<2x8x128xf32> -> vector<2x8x128xf32>
    "tpu.trace_stop"() : () -> ()
    %30 = vector.shape_cast %29 : vector<2x8x128xf32> to vector<16x128xf32>
    %31 = arith.truncf %30 : vector<16x128xf32> to vector<16x128xbf16>
    %c0_10 = arith.constant 0 : index
    %c0_11 = arith.constant 0 : index
    %32 = vector.load %arg4[%c0_10, %c0_11] : memref<128x128xbf16, #tpu.memory_space<vmem>>, vector<128x128xbf16>
    %cst_12 = arith.constant dense<0.000000e+00> : vector<16x128xf32>
    %33 = tpu.matmul %31, %32, %cst_12 {dimension_numbers = #tpu.dot_dimension_numbers<[1], [0], [0], [1], [0, 0, 1, 1], [], []>} : vector<16x128xbf16>, vector<128x128xbf16>, vector<16x128xf32> -> vector<16x128xf32>
    %c0_13 = arith.constant 0 : index
    %c0_14 = arith.constant 0 : index
    %34 = vector.load %arg5[%c0_13, %c0_14] : memref<1x128xf32, #tpu.memory_space<vmem>>, vector<1x128xf32>
    %35 = vector.broadcast %34 : vector<1x128xf32> to vector<16x128xf32>
    %36 = arith.addf %33, %35 : vector<16x128xf32>
    %37 = tpu.iota {dimensions = array<i32: 1>} : vector<1x128xi32>
    %c32_i32 = arith.constant 32 : i32
    %38 = vector.broadcast %c32_i32 : i32 to vector<1x128xi32>
    %39 = arith.cmpi slt, %37, %38 : vector<1x128xi32>
    %40 = arith.extui %39 : vector<1x128xi1> to vector<1x128xi32>
    %41 = arith.sitofp %40 : vector<1x128xi32> to vector<1x128xf32>
    %42 = arith.addf %2, %36 : vector<16x128xf32>
    %c0_15 = arith.constant 0 : index
    %c0_16 = arith.constant 0 : index
    %43 = vector.load %arg6[%c0_15, %c0_16] : memref<1x128xf32, #tpu.memory_space<vmem>>, vector<1x128xf32>
    %c0_17 = arith.constant 0 : index
    %c0_18 = arith.constant 0 : index
    %44 = vector.load %arg7[%c0_17, %c0_18] : memref<1x128xf32, #tpu.memory_space<vmem>>, vector<1x128xf32>
    %cst_19 = arith.constant dense<0.000000e+00> : vector<16xf32>
    %45 = vector.multi_reduction <add>, %42, %cst_19 [1] : vector<16x128xf32> to vector<16xf32>
    %46 = vector.shape_cast %45 : vector<16xf32> to vector<16x1xf32>
    %cst_20 = arith.constant 3.125000e-02 : f32
    %47 = vector.broadcast %cst_20 : f32 to vector<16x1xf32>
    %48 = arith.mulf %46, %47 : vector<16x1xf32>
    %49 = vector.broadcast %48 : vector<16x1xf32> to vector<16x128xf32>
    %50 = arith.subf %42, %49 : vector<16x128xf32>
    %51 = vector.broadcast %41 : vector<1x128xf32> to vector<16x128xf32>
    %52 = arith.mulf %50, %51 : vector<16x128xf32>
    %53 = arith.mulf %52, %52 : vector<16x128xf32>
    %cst_21 = arith.constant dense<0.000000e+00> : vector<16xf32>
    %54 = vector.multi_reduction <add>, %53, %cst_21 [1] : vector<16x128xf32> to vector<16xf32>
    %55 = vector.shape_cast %54 : vector<16xf32> to vector<16x1xf32>
    %cst_22 = arith.constant 3.125000e-02 : f32
    %56 = vector.broadcast %cst_22 : f32 to vector<16x1xf32>
    %57 = arith.mulf %55, %56 : vector<16x1xf32>
    %cst_23 = arith.constant 9.99999974E-6 : f32
    %58 = vector.broadcast %cst_23 : f32 to vector<16x1xf32>
    %59 = arith.addf %57, %58 : vector<16x1xf32>
    %60 = math.rsqrt %59 : vector<16x1xf32>
    %61 = vector.broadcast %60 : vector<16x1xf32> to vector<16x128xf32>
    %62 = arith.mulf %52, %61 : vector<16x128xf32>
    %63 = vector.broadcast %43 : vector<1x128xf32> to vector<16x128xf32>
    %64 = arith.mulf %62, %63 : vector<16x128xf32>
    %65 = vector.broadcast %44 : vector<1x128xf32> to vector<16x128xf32>
    %66 = arith.addf %64, %65 : vector<16x128xf32>
    %67 = arith.truncf %66 : vector<16x128xf32> to vector<16x128xbf16>
    %c0_24 = arith.constant 0 : index
    %c0_25 = arith.constant 0 : index
    %68 = vector.load %arg8[%c0_24, %c0_25] : memref<128x2048xbf16, #tpu.memory_space<vmem>>, vector<128x2048xbf16>
    %cst_26 = arith.constant dense<0.000000e+00> : vector<16x2048xf32>
    %69 = tpu.matmul %67, %68, %cst_26 {dimension_numbers = #tpu.dot_dimension_numbers<[1], [0], [0], [1], [0, 0, 1, 1], [], []>} : vector<16x128xbf16>, vector<128x2048xbf16>, vector<16x2048xf32> -> vector<16x2048xf32>
    %c0_27 = arith.constant 0 : index
    %c0_28 = arith.constant 0 : index
    %70 = vector.load %arg9[%c0_27, %c0_28] : memref<1x2048xf32, #tpu.memory_space<vmem>>, vector<1x2048xf32>
    %71 = vector.broadcast %70 : vector<1x2048xf32> to vector<16x2048xf32>
    %72 = arith.addf %69, %71 : vector<16x2048xf32>
    %cst_29 = arith.constant 0.000000e+00 : f32
    %73 = vector.broadcast %cst_29 : f32 to vector<16x2048xf32>
    %74 = arith.maximumf %72, %73 : vector<16x2048xf32>
    %75 = arith.truncf %74 : vector<16x2048xf32> to vector<16x2048xbf16>
    %c0_30 = arith.constant 0 : index
    %c0_31 = arith.constant 0 : index
    %76 = vector.load %arg10[%c0_30, %c0_31] : memref<2048x128xbf16, #tpu.memory_space<vmem>>, vector<2048x128xbf16>
    %cst_32 = arith.constant dense<0.000000e+00> : vector<16x128xf32>
    %77 = tpu.matmul %75, %76, %cst_32 {dimension_numbers = #tpu.dot_dimension_numbers<[1], [0], [0], [1], [0, 0, 1, 1], [], []>} : vector<16x2048xbf16>, vector<2048x128xbf16>, vector<16x128xf32> -> vector<16x128xf32>
    %c0_33 = arith.constant 0 : index
    %c0_34 = arith.constant 0 : index
    %78 = vector.load %arg11[%c0_33, %c0_34] : memref<1x128xf32, #tpu.memory_space<vmem>>, vector<1x128xf32>
    %79 = vector.broadcast %78 : vector<1x128xf32> to vector<16x128xf32>
    %80 = arith.addf %77, %79 : vector<16x128xf32>
    %81 = arith.addf %66, %80 : vector<16x128xf32>
    %c0_35 = arith.constant 0 : index
    %c0_36 = arith.constant 0 : index
    %82 = vector.load %arg12[%c0_35, %c0_36] : memref<1x128xf32, #tpu.memory_space<vmem>>, vector<1x128xf32>
    %c0_37 = arith.constant 0 : index
    %c0_38 = arith.constant 0 : index
    %83 = vector.load %arg13[%c0_37, %c0_38] : memref<1x128xf32, #tpu.memory_space<vmem>>, vector<1x128xf32>
    %cst_39 = arith.constant dense<0.000000e+00> : vector<16xf32>
    %84 = vector.multi_reduction <add>, %81, %cst_39 [1] : vector<16x128xf32> to vector<16xf32>
    %85 = vector.shape_cast %84 : vector<16xf32> to vector<16x1xf32>
    %cst_40 = arith.constant 3.125000e-02 : f32
    %86 = vector.broadcast %cst_40 : f32 to vector<16x1xf32>
    %87 = arith.mulf %85, %86 : vector<16x1xf32>
    %88 = vector.broadcast %87 : vector<16x1xf32> to vector<16x128xf32>
    %89 = arith.subf %81, %88 : vector<16x128xf32>
    %90 = vector.broadcast %41 : vector<1x128xf32> to vector<16x128xf32>
    %91 = arith.mulf %89, %90 : vector<16x128xf32>
    %92 = arith.mulf %91, %91 : vector<16x128xf32>
    %cst_41 = arith.constant dense<0.000000e+00> : vector<16xf32>
    %93 = vector.multi_reduction <add>, %92, %cst_41 [1] : vector<16x128xf32> to vector<16xf32>
    %94 = vector.shape_cast %93 : vector<16xf32> to vector<16x1xf32>
    %cst_42 = arith.constant 3.125000e-02 : f32
    %95 = vector.broadcast %cst_42 : f32 to vector<16x1xf32>
    %96 = arith.mulf %94, %95 : vector<16x1xf32>
    %cst_43 = arith.constant 9.99999974E-6 : f32
    %97 = vector.broadcast %cst_43 : f32 to vector<16x1xf32>
    %98 = arith.addf %96, %97 : vector<16x1xf32>
    %99 = math.rsqrt %98 : vector<16x1xf32>
    %100 = vector.broadcast %99 : vector<16x1xf32> to vector<16x128xf32>
    %101 = arith.mulf %91, %100 : vector<16x128xf32>
    %102 = vector.broadcast %82 : vector<1x128xf32> to vector<16x128xf32>
    %103 = arith.mulf %101, %102 : vector<16x128xf32>
    %104 = vector.broadcast %83 : vector<1x128xf32> to vector<16x128xf32>
    %105 = arith.addf %103, %104 : vector<16x128xf32>
    %106 = arith.truncf %105 : vector<16x128xf32> to vector<16x128xbf16>
    %c0_44 = arith.constant 0 : index
    %c0_45 = arith.constant 0 : index
    %107 = vector.load %arg14[%c0_44, %c0_45] : memref<128x128xbf16, #tpu.memory_space<vmem>>, vector<128x128xbf16>
    %cst_46 = arith.constant dense<0.000000e+00> : vector<16x128xf32>
    %108 = tpu.matmul %106, %107, %cst_46 {dimension_numbers = #tpu.dot_dimension_numbers<[1], [0], [0], [1], [0, 0, 1, 1], [], []>} : vector<16x128xbf16>, vector<128x128xbf16>, vector<16x128xf32> -> vector<16x128xf32>
    %c0_47 = arith.constant 0 : index
    %c0_48 = arith.constant 0 : index
    %109 = vector.load %arg15[%c0_47, %c0_48] : memref<1x128xf32, #tpu.memory_space<vmem>>, vector<1x128xf32>
    %110 = vector.broadcast %109 : vector<1x128xf32> to vector<16x128xf32>
    %111 = arith.addf %108, %110 : vector<16x128xf32>
    %112 = vector.shape_cast %111 : vector<16x128xf32> to vector<2x8x128xf32>
    %113 = arith.truncf %112 : vector<2x8x128xf32> to vector<2x8x128xbf16>
    %c0_49 = arith.constant 0 : index
    %c0_50 = arith.constant 0 : index
    %c0_51 = arith.constant 0 : index
    %114 = vector.load %arg16[%c0_49, %c0_50, %c0_51] : memref<2x8x128xbf16, #tpu.memory_space<vmem>>, vector<2x8x128xbf16>
    tpu.vector_store %arg16[%c0_49, %c0_50, %c0_51], %113 {strides = array<i32>} : memref<2x8x128xbf16, #tpu.memory_space<vmem>>, vector<2x8x128xbf16>,
    return
  }
  func.func @transform_0(%arg0: i32) -> (i32, i32, i32) {
    %c0_i32 = arith.constant 0 : i32
    %c0_i32_0 = arith.constant 0 : i32
    %c0_i32_1 = arith.constant 0 : i32
    return %arg0, %c0_i32, %c0_i32_0 : i32, i32, i32
  }
  func.func @transform_1(%arg0: i32) -> (i32, i32) {
    %c0_i32 = arith.constant 0 : i32
    %c0_i32_0 = arith.constant 0 : i32
    %c0_i32_1 = arith.constant 0 : i32
    return %c0_i32, %c0_i32_0 : i32, i32
  }
  func.func @transform_2(%arg0: i32) -> (i32, i32) {
    %c0_i32 = arith.constant 0 : i32
    %c0_i32_0 = arith.constant 0 : i32
    %c0_i32_1 = arith.constant 0 : i32
    return %c0_i32, %c0_i32_0 : i32, i32
  }
  func.func @transform_3(%arg0: i32) -> (i32, i32) {
    %c0_i32 = arith.constant 0 : i32
    %c0_i32_0 = arith.constant 0 : i32
    %c0_i32_1 = arith.constant 0 : i32
    return %c0_i32, %c0_i32_0 : i32, i32
  }
  func.func @transform_4(%arg0: i32) -> (i32, i32) {
    %c0_i32 = arith.constant 0 : i32
    %c0_i32_0 = arith.constant 0 : i32
    %c0_i32_1 = arith.constant 0 : i32
    return %c0_i32, %c0_i32_0 : i32, i32
  }
  func.func @transform_5(%arg0: i32) -> (i32, i32) {
    %c0_i32 = arith.constant 0 : i32
    %c0_i32_0 = arith.constant 0 : i32
    %c0_i32_1 = arith.constant 0 : i32
    return %c0_i32, %c0_i32_0 : i32, i32
  }
  func.func @transform_6(%arg0: i32) -> (i32, i32) {
    %c0_i32 = arith.constant 0 : i32
    %c0_i32_0 = arith.constant 0 : i32
    %c0_i32_1 = arith.constant 0 : i32
    return %c0_i32, %c0_i32_0 : i32, i32
  }
  func.func @transform_7(%arg0: i32) -> (i32, i32) {
    %c0_i32 = arith.constant 0 : i32
    %c0_i32_0 = arith.constant 0 : i32
    %c0_i32_1 = arith.constant 0 : i32
    return %c0_i32, %c0_i32_0 : i32, i32
  }
  func.func @transform_8(%arg0: i32) -> (i32, i32) {
    %c0_i32 = arith.constant 0 : i32
    %c0_i32_0 = arith.constant 0 : i32
    %c0_i32_1 = arith.constant 0 : i32
    return %c0_i32, %c0_i32_0 : i32, i32
  }
  func.func @transform_9(%arg0: i32) -> (i32, i32) {
    %c0_i32 = arith.constant 0 : i32
    %c0_i32_0 = arith.constant 0 : i32
    %c0_i32_1 = arith.constant 0 : i32
    return %c0_i32, %c0_i32_0 : i32, i32
  }
  func.func @transform_10(%arg0: i32) -> (i32, i32) {
    %c0_i32 = arith.constant 0 : i32
    %c0_i32_0 = arith.constant 0 : i32
    %c0_i32_1 = arith.constant 0 : i32
    return %c0_i32, %c0_i32_0 : i32, i32
  }
  func.func @transform_11(%arg0: i32) -> (i32, i32) {
    %c0_i32 = arith.constant 0 : i32
    %c0_i32_0 = arith.constant 0 : i32
    %c0_i32_1 = arith.constant 0 : i32
    return %c0_i32, %c0_i32_0 : i32, i32
  }
  func.func @transform_12(%arg0: i32) -> (i32, i32) {
    %c0_i32 = arith.constant 0 : i32
    %c0_i32_0 = arith.constant 0 : i32
    %c0_i32_1 = arith.constant 0 : i32
    return %c0_i32, %c0_i32_0 : i32, i32
  }
  func.func @transform_13(%arg0: i32) -> (i32, i32) {
    %c0_i32 = arith.constant 0 : i32
    %c0_i32_0 = arith.constant 0 : i32
    %c0_i32_1 = arith.constant 0 : i32
    return %c0_i32, %c0_i32_0 : i32, i32
  }
  func.func @transform_14(%arg0: i32) -> (i32, i32) {
    %c0_i32 = arith.constant 0 : i32
    %c0_i32_0 = arith.constant 0 : i32
    %c0_i32_1 = arith.constant 0 : i32
    return %c0_i32, %c0_i32_0 : i32, i32
  }
  func.func @transform_15(%arg0: i32) -> (i32, i32, i32) {
    %c0_i32 = arith.constant 0 : i32
    %c0_i32_0 = arith.constant 0 : i32
    %c0_i32_1 = arith.constant 0 : i32
    return %arg0, %c0_i32, %c0_i32_0 : i32, i32, i32
  }
}

</mosaic_0001>

<llo_original>
// kernel: tpu_custom_call.1
$region0: #{tpu_custom_call.1}
  #allocation0 [shape = 'u32[]', space=smem, size = 0x4, offset = 0x4, fixed_abs, tag = 'smem constant byte address 0x4 - core index']
  #allocation1 [shape = 'u32[72,128]{1,0:T(1,128)}', space=vmem, size = 0x9000, scoped, tag = 'internal scratch']
  %s0 = inlined_call_operand.hbm [shape: bf16[2,8,128], index: 0, kind: input, shape index: {}]
  %s1 = inlined_call_operand.hbm [shape: bf16[128,384], index: 1, kind: input, shape index: {}]
  %s2 = inlined_call_operand.hbm [shape: f32[1,384], index: 2, kind: input, shape index: {}]
  %s3 = inlined_call_operand.hbm [shape: bf16[128,128], index: 3, kind: input, shape index: {}]
  %s4 = inlined_call_operand.vmem [shape: f32[1,128], index: 4, kind: input, shape index: {}]
  %s5 = inlined_call_operand.vmem [shape: f32[1,128], index: 5, kind: input, shape index: {}]
  %s6 = inlined_call_operand.vmem [shape: f32[1,128], index: 6, kind: input, shape index: {}]
  %s7 = inlined_call_operand.hbm [shape: bf16[128,2048], index: 7, kind: input, shape index: {}]
  %s8 = inlined_call_operand.hbm [shape: f32[1,2048], index: 8, kind: input, shape index: {}]
  %s9 = inlined_call_operand.hbm [shape: bf16[2048,128], index: 9, kind: input, shape index: {}]
  %s10 = inlined_call_operand.vmem [shape: f32[1,128], index: 10, kind: input, shape index: {}]
  %s11 = inlined_call_operand.vmem [shape: f32[1,128], index: 11, kind: input, shape index: {}]
  %s12 = inlined_call_operand.vmem [shape: f32[1,128], index: 12, kind: input, shape index: {}]
  %s13 = inlined_call_operand.hbm [shape: bf16[128,128], index: 13, kind: input, shape index: {}]
  %s14 = inlined_call_operand.vmem [shape: f32[1,128], index: 14, kind: input, shape index: {}]
  %s15 = inlined_call_operand.hbm [shape: bf16[2,8,128], index: 15, kind: output, shape index: {}]
  %s16 = sld [smem:[#allocation0]]
  $region102: #{tpu_custom_call.1} parent=0
    _
  %s18 = ssub.s32 1, %s16
  %s19 = scalar_select 0, %s18, %s16
  $region1: #{tpu_custom_call.1} parent=0
    #allocation2 [shape = 'u8[4096]{0}', space=vmem, size = 0x1000, scoped, tag = 'input window, operand 0, single buffered']
    #allocation3 [shape = 's32[1]{0}', space=sflag, size = 0x4, scoped, tag = 'scoped memory for tpu_custom_call.1']
    #allocation4 [shape = 's32[1]{0}', space=sflag, size = 0x4, scoped, tag = 'scoped memory for tpu_custom_call.1']
    #allocation5 [shape = 'u8[98304]{0}', space=vmem, size = 0x18000, scoped, tag = 'input window, operand 1, single buffered']
    #allocation6 [shape = 's32[1]{0}', space=sflag, size = 0x4, scoped, tag = 'scoped memory for tpu_custom_call.1']
    #allocation7 [shape = 'u8[1536]{0}', space=vmem, size = 0x800, scoped, tag = 'input window, operand 2, single buffered']
    #allocation8 [shape = 'u8[32768]{0}', space=vmem, size = 0x8000, scoped, tag = 'input window, operand 3, single buffered']
    #allocation9 [shape = 's32[1]{0}', space=sflag, size = 0x4, scoped, tag = 'scoped memory for tpu_custom_call.1']
    #allocation10 [shape = 'u8[524288]{0}', space=vmem, size = 0x80000, scoped, tag = 'input window, operand 7, single buffered']
    #allocation11 [shape = 'u8[8192]{0}', space=vmem, size = 0x2000, scoped, tag = 'input window, operand 8, single buffered']
    #allocation12 [shape = 's32[1]{0}', space=sflag, size = 0x4, scoped, tag = 'scoped memory for tpu_custom_call.1']
    #allocation13 [shape = 'u8[524288]{0}', space=vmem, size = 0x80000, scoped, tag = 'input window, operand 9, single buffered']
    #allocation14 [shape = 'u8[32768]{0}', space=vmem, size = 0x8000, scoped, tag = 'input window, operand 13, single buffered']
    #allocation15 [shape = 's32[1]{0}', space=sflag, size = 0x4, scoped, tag = 'scoped memory for tpu_custom_call.1']
    #allocation16 [shape = 'u8[4096]{0}', space=vmem, size = 0x1000, scoped, tag = 'output window, operand 0, single buffered']
    %20 = vsyncpa [#allocation3], 0
    %21 = vsyncpa [#allocation6], 0
    %22 = vsyncpa [#allocation9], 0
    %23 = vsyncpa [#allocation12], 0
    %24 = vsyncpa [#allocation15], 0
    %25 = vsyncpa [#allocation4], 0
    // Predicated region
    $region2: #{tpu_custom_call.1} parent=1 // pred_check
      _
    $region3: #{tpu_custom_call.1} parent=1 // pred_check_branch
      %27 = sbr.rel (0) target = $region5
    $region4: #{tpu_custom_call.1} parent=1 // pred_region
      %29 = vsyncadd [#allocation3], 0
      %s30 = sshll.u32 %s0, 4
      %s31 = int_to_ptr.hbm [resolvable:$true] %s30
      %s32 = sshll.u32 [#allocation2], 4
      %s33 = int_to_ptr.vmem [resolvable:$true] %s32
      %38 = dma.hbm_to_vmem [thread:$0]  %s31, 128, %s33, [#allocation3], 64, 64, 4
    $region5: #{tpu_custom_call.1} parent=1 // pred_fallthru
      _
    // Predicated region
    $region6: #{tpu_custom_call.1} parent=1 // pred_check
      _
    $region7: #{tpu_custom_call.1} parent=1 // pred_check_branch
      %40 = sbr.rel (0) target = $region9
    $region8: #{tpu_custom_call.1} parent=1 // pred_region
      %42 = vsyncadd [#allocation6], 0
      %s43 = sshll.u32 %s1, 4
      %s44 = int_to_ptr.hbm [resolvable:$true] %s43
      %s45 = sshll.u32 [#allocation5], 4
      %s46 = int_to_ptr.vmem [resolvable:$true] %s45
      %51 = dma.hbm_to_vmem [thread:$0]  %s44, 3072, %s46, [#allocation6], 192, 192, 12
    $region9: #{tpu_custom_call.1} parent=1 // pred_fallthru
      _
    // Predicated region
    $region10: #{tpu_custom_call.1} parent=1 // pred_check
      _
    $region11: #{tpu_custom_call.1} parent=1 // pred_check_branch
      %53 = sbr.rel (0) target = $region13
    $region12: #{tpu_custom_call.1} parent=1 // pred_region
      %55 = vsyncadd [#allocation6], 0
      %s57 = sshll.u32 %s2, 4
      %s58 = int_to_ptr.hbm [resolvable:$true] %s57
      %s59 = sshll.u32 [#allocation7], 4
      %s60 = int_to_ptr.vmem [resolvable:$true] %s59
      %62 = dma.hbm_to_vmem [thread:$0]  %s58, 48, %s60, [#allocation6]
    $region13: #{tpu_custom_call.1} parent=1 // pred_fallthru
      _
    // Predicated region
    $region14: #{tpu_custom_call.1} parent=1 // pred_check
      _
    $region15: #{tpu_custom_call.1} parent=1 // pred_check_branch
      %64 = sbr.rel (0) target = $region17
    $region16: #{tpu_custom_call.1} parent=1 // pred_region
      %66 = vsyncadd [#allocation9], 0
      %s67 = sshll.u32 %s3, 4
      %s68 = int_to_ptr.hbm [resolvable:$true] %s67
      %s69 = sshll.u32 [#allocation8], 4
      %s70 = int_to_ptr.vmem [resolvable:$true] %s69
      %75 = dma.hbm_to_vmem [thread:$0]  %s68, 1024, %s70, [#allocation9], 64, 64, 4
    $region17: #{tpu_custom_call.1} parent=1 // pred_fallthru
      _
    // Predicated region
    $region18: #{tpu_custom_call.1} parent=1 // pred_check
      _
    $region19: #{tpu_custom_call.1} parent=1 // pred_check_branch
      %77 = sbr.rel (0) target = $region21
    $region20: #{tpu_custom_call.1} parent=1 // pred_region
      _
    $region21: #{tpu_custom_call.1} parent=1 // pred_fallthru
      _
    // Predicated region
    $region22: #{tpu_custom_call.1} parent=1 // pred_check
      _
    $region23: #{tpu_custom_call.1} parent=1 // pred_check_branch
      %79 = sbr.rel (0) target = $region25
    $region24: #{tpu_custom_call.1} parent=1 // pred_region
      _
    $region25: #{tpu_custom_call.1} parent=1 // pred_fallthru
      _
    // Predicated region
    $region26: #{tpu_custom_call.1} parent=1 // pred_check
      _
    $region27: #{tpu_custom_call.1} parent=1 // pred_check_branch
      %81 = sbr.rel (0) target = $region29
    $region28: #{tpu_custom_call.1} parent=1 // pred_region
      _
    $region29: #{tpu_custom_call.1} parent=1 // pred_fallthru
      _
    // Predicated region
    $region30: #{tpu_custom_call.1} parent=1 // pred_check
      _
    $region31: #{tpu_custom_call.1} parent=1 // pred_check_branch
      %83 = sbr.rel (0) target = $region33
    $region32: #{tpu_custom_call.1} parent=1 // pred_region
      %85 = vsyncadd [#allocation9], 0
      %s86 = sshll.u32 %s7, 4
      %s87 = int_to_ptr.hbm [resolvable:$true] %s86
      %s88 = sshll.u32 [#allocation10], 4
      %s89 = int_to_ptr.vmem [resolvable:$true] %s88
      %94 = dma.hbm_to_vmem [thread:$0]  %s87, 16384, %s89, [#allocation9], 1024, 1024, 64
    $region33: #{tpu_custom_call.1} parent=1 // pred_fallthru
      _
    // Predicated region
    $region34: #{tpu_custom_call.1} parent=1 // pred_check
      _
    $region35: #{tpu_custom_call.1} parent=1 // pred_check_branch
      %96 = sbr.rel (0) target = $region37
    $region36: #{tpu_custom_call.1} parent=1 // pred_region
      %98 = vsyncadd [#allocation12], 0
      %s100 = sshll.u32 %s8, 4
      %s101 = int_to_ptr.hbm [resolvable:$true] %s100
      %s102 = sshll.u32 [#allocation11], 4
      %s103 = int_to_ptr.vmem [resolvable:$true] %s102
      %105 = dma.hbm_to_vmem [thread:$0]  %s101, 256, %s103, [#allocation12]
    $region37: #{tpu_custom_call.1} parent=1 // pred_fallthru
      _
    // Predicated region
    $region38: #{tpu_custom_call.1} parent=1 // pred_check
      _
    $region39: #{tpu_custom_call.1} parent=1 // pred_check_branch
      %107 = sbr.rel (0) target = $region41
    $region40: #{tpu_custom_call.1} parent=1 // pred_region
      %109 = vsyncadd [#allocation12], 0
      %s110 = sshll.u32 %s9, 4
      %s111 = int_to_ptr.hbm [resolvable:$true] %s110
      %s112 = sshll.u32 [#allocation13], 4
      %s113 = int_to_ptr.vmem [resolvable:$true] %s112
      %118 = dma.hbm_to_vmem [thread:$0]  %s111, 16384, %s113, [#allocation12], 64, 64, 4
    $region41: #{tpu_custom_call.1} parent=1 // pred_fallthru
      _
    // Predicated region
    $region42: #{tpu_custom_call.1} parent=1 // pred_check
      _
    $region43: #{tpu_custom_call.1} parent=1 // pred_check_branch
      %120 = sbr.rel (0) target = $region45
    $region44: #{tpu_custom_call.1} parent=1 // pred_region
      _
    $region45: #{tpu_custom_call.1} parent=1 // pred_fallthru
      _
    // Predicated region
    $region46: #{tpu_custom_call.1} parent=1 // pred_check
      _
    $region47: #{tpu_custom_call.1} parent=1 // pred_check_branch
      %122 = sbr.rel (0) target = $region49
    $region48: #{tpu_custom_call.1} parent=1 // pred_region
      _
    $region49: #{tpu_custom_call.1} parent=1 // pred_fallthru
      _
    // Predicated region
    $region50: #{tpu_custom_call.1} parent=1 // pred_check
      _
    $region51: #{tpu_custom_call.1} parent=1 // pred_check_branch
      %124 = sbr.rel (0) target = $region53
    $region52: #{tpu_custom_call.1} parent=1 // pred_region
      _
    $region53: #{tpu_custom_call.1} parent=1 // pred_fallthru
      _
    // Predicated region
    $region54: #{tpu_custom_call.1} parent=1 // pred_check
      _
    $region55: #{tpu_custom_call.1} parent=1 // pred_check_branch
      %126 = sbr.rel (0) target = $region57
    $region56: #{tpu_custom_call.1} parent=1 // pred_region
      %128 = vsyncadd [#allocation15], 0
      %s129 = sshll.u32 %s13, 4
      %s130 = int_to_ptr.hbm [resolvable:$true] %s129
      %s131 = sshll.u32 [#allocation14], 4
      %s132 = int_to_ptr.vmem [resolvable:$true] %s131
      %137 = dma.hbm_to_vmem [thread:$0]  %s130, 1024, %s132, [#allocation15], 64, 64, 4
    $region57: #{tpu_custom_call.1} parent=1 // pred_fallthru
      _
    // Predicated region
    $region58: #{tpu_custom_call.1} parent=1 // pred_check
      _
    $region59: #{tpu_custom_call.1} parent=1 // pred_check_branch
      %139 = sbr.rel (0) target = $region61
    $region60: #{tpu_custom_call.1} parent=1 // pred_region
      _
    $region61: #{tpu_custom_call.1} parent=1 // pred_fallthru
      _
    // Predicated region
    $region62: #{tpu_custom_call.1} parent=1 // pred_check
      _
    $region63: #{tpu_custom_call.1} parent=1 // pred_check_branch
      %141 = sbr.rel (0) target = $region65
    $region64: #{tpu_custom_call.1} parent=1 // pred_region
      %143 = dma.done [#allocation3], 128
    $region65: #{tpu_custom_call.1} parent=1 // pred_fallthru
      _
    // Predicated region
    $region66: #{tpu_custom_call.1} parent=1 // pred_check
      _
    $region67: #{tpu_custom_call.1} parent=1 // pred_check_branch
      %145 = sbr.rel (0) target = $region69
    $region68: #{tpu_custom_call.1} parent=1 // pred_region
      %147 = dma.done [#allocation6], 3072
    $region69: #{tpu_custom_call.1} parent=1 // pred_fallthru
      _
    // Predicated region
    $region70: #{tpu_custom_call.1} parent=1 // pred_check
      _
    $region71: #{tpu_custom_call.1} parent=1 // pred_check_branch
      %149 = sbr.rel (0) target = $region73
    $region72: #{tpu_custom_call.1} parent=1 // pred_region
      %151 = dma.done [#allocation6], 48
    $region73: #{tpu_custom_call.1} parent=1 // pred_fallthru
      _
    // Predicated region
    $region74: #{tpu_custom_call.1} parent=1 // pred_check
      _
    $region75: #{tpu_custom_call.1} parent=1 // pred_check_branch
      %153 = sbr.rel (0) target = $region77
    $region76: #{tpu_custom_call.1} parent=1 // pred_region
      %155 = dma.done [#allocation9], 1024
    $region77: #{tpu_custom_call.1} parent=1 // pred_fallthru
      _
    // Predicated region
    $region78: #{tpu_custom_call.1} parent=1 // pred_check
      _
    $region79: #{tpu_custom_call.1} parent=1 // pred_check_branch
      %157 = sbr.rel (0) target = $region81
    $region80: #{tpu_custom_call.1} parent=1 // pred_region
      %159 = dma.done [#allocation9], 16384
    $region81: #{tpu_custom_call.1} parent=1 // pred_fallthru
      _
    // Predicated region
    $region82: #{tpu_custom_call.1} parent=1 // pred_check
      _
    $region83: #{tpu_custom_call.1} parent=1 // pred_check_branch
      %161 = sbr.rel (0) target = $region85
    $region84: #{tpu_custom_call.1} parent=1 // pred_region
      %163 = dma.done [#allocation12], 256
    $region85: #{tpu_custom_call.1} parent=1 // pred_fallthru
      _
    // Predicated region
    $region86: #{tpu_custom_call.1} parent=1 // pred_check
      _
    $region87: #{tpu_custom_call.1} parent=1 // pred_check_branch
      %165 = sbr.rel (0) target = $region89
    $region88: #{tpu_custom_call.1} parent=1 // pred_region
      %167 = dma.done [#allocation12], 16384
    $region89: #{tpu_custom_call.1} parent=1 // pred_fallthru
      _
    // Predicated region
    $region90: #{tpu_custom_call.1} parent=1 // pred_check
      _
    $region91: #{tpu_custom_call.1} parent=1 // pred_check_branch
      %169 = sbr.rel (0) target = $region93
    $region92: #{tpu_custom_call.1} parent=1 // pred_region
      %171 = dma.done [#allocation15], 1024
    $region93: #{tpu_custom_call.1} parent=1 // pred_fallthru
      _
    %v173 = vld [vmem:[#allocation2] sm:$0xf]
    %v174 = vld [vmem:[#allocation2 + $0x4] sm:$0xf]
    %v175 = vunpack.c.l.bf16 %v173
    %v176 = vunpack.c.l.bf16 %v174
    %v177 = vld [vmem:[#allocation5] sm:$0xff]
    %v178 = vld [vmem:[#allocation5 + $0x8] sm:$0xf]
    %v179 = vld [vmem:[#allocation5 + $0xc] sm:$0xff]
    %v180 = vld [vmem:[#allocation5 + $0x14] sm:$0xf]
    %v181 = vld [vmem:[#allocation5 + $0x18] sm:$0xff]
    %v182 = vld [vmem:[#allocation5 + $0x20] sm:$0xf]
    %v183 = vld [vmem:[#allocation5 + $0x24] sm:$0xff]
    %v184 = vld [vmem:[#allocation5 + $0x2c] sm:$0xf]
    %v185 = vld [vmem:[#allocation5 + $0x30] sm:$0xff]
    %v186 = vld [vmem:[#allocation5 + $0x38] sm:$0xf]
    %v187 = vld [vmem:[#allocation5 + $0x3c] sm:$0xff]
    %v188 = vld [vmem:[#allocation5 + $0x44] sm:$0xf]
    %v189 = vld [vmem:[#allocation5 + $0x48] sm:$0xff]
    %v190 = vld [vmem:[#allocation5 + $0x50] sm:$0xf]
    %v191 = vld [vmem:[#allocation5 + $0x54] sm:$0xff]
    %v192 = vld [vmem:[#allocation5 + $0x5c] sm:$0xf]
    %v193 = vld [vmem:[#allocation5 + $0x60] sm:$0xff]
    %v194 = vld [vmem:[#allocation5 + $0x68] sm:$0xf]
    %v195 = vld [vmem:[#allocation5 + $0x6c] sm:$0xff]
    %v196 = vld [vmem:[#allocation5 + $0x74] sm:$0xf]
    %v197 = vld [vmem:[#allocation5 + $0x78] sm:$0xff]
    %v198 = vld [vmem:[#allocation5 + $0x80] sm:$0xf]
    %v199 = vld [vmem:[#allocation5 + $0x84] sm:$0xff]
    %v200 = vld [vmem:[#allocation5 + $0x8c] sm:$0xf]
    %v201 = vld [vmem:[#allocation5 + $0x90] sm:$0xff]
    %v202 = vld [vmem:[#allocation5 + $0x98] sm:$0xf]
    %v203 = vld [vmem:[#allocation5 + $0x9c] sm:$0xff]
    %v204 = vld [vmem:[#allocation5 + $0xa4] sm:$0xf]
    %v205 = vld [vmem:[#allocation5 + $0xa8] sm:$0xff]
    %v206 = vld [vmem:[#allocation5 + $0xb0] sm:$0xf]
    %v207 = vld [vmem:[#allocation5 + $0xb4] sm:$0xff]
    %v208 = vld [vmem:[#allocation5 + $0xbc] sm:$0xf]
    %v209 = vld [vmem:[#allocation7] sm:$0x7]
    %v211 = vperm.slane %v209, 0
    %v212 = vperm.slane %v209, 1
    %v213 = vperm.slane %v209, 2
    %v219 = vunpack.c.l.b16 %v173
    %v220 = vunpack.c.l.b16 %v174
    %v221 = vpack.c.b16 %v220, %v219
    %v255 = vunpack.c.l.b16 %v177
    %v256 = vunpack.c.h.b16 %v177
    %v257 = vunpack.c.l.b16 %v178
    %v258 = vunpack.c.l.b16 %v179
    %v259 = vunpack.c.h.b16 %v179
    %v260 = vunpack.c.l.b16 %v180
    %v261 = vunpack.c.l.b16 %v181
    %v262 = vunpack.c.h.b16 %v181
    %v263 = vunpack.c.l.b16 %v182
    %v264 = vunpack.c.l.b16 %v183
    %v265 = vunpack.c.h.b16 %v183
    %v266 = vunpack.c.l.b16 %v184
    %v267 = vunpack.c.l.b16 %v185
    %v268 = vunpack.c.h.b16 %v185
    %v269 = vunpack.c.l.b16 %v186
    %v270 = vunpack.c.l.b16 %v187
    %v271 = vunpack.c.h.b16 %v187
    %v272 = vunpack.c.l.b16 %v188
    %v273 = vunpack.c.l.b16 %v189
    %v274 = vunpack.c.h.b16 %v189
    %v275 = vunpack.c.l.b16 %v190
    %v276 = vunpack.c.l.b16 %v191
    %v277 = vunpack.c.h.b16 %v191
    %v278 = vunpack.c.l.b16 %v192
    %v279 = vunpack.c.l.b16 %v193
    %v280 = vunpack.c.h.b16 %v193
    %v281 = vunpack.c.l.b16 %v194
    %v282 = vunpack.c.l.b16 %v195
    %v283 = vunpack.c.h.b16 %v195
    %v284 = vunpack.c.l.b16 %v196
    %v285 = vunpack.c.l.b16 %v197
    %v286 = vunpack.c.h.b16 %v197
    %v287 = vunpack.c.l.b16 %v198
    %v288 = vunpack.c.l.b16 %v199
    %v289 = vunpack.c.h.b16 %v199
    %v290 = vunpack.c.l.b16 %v200
    %v291 = vunpack.c.l.b16 %v201
    %v292 = vunpack.c.h.b16 %v201
    %v293 = vunpack.c.l.b16 %v202
    %v294 = vunpack.c.l.b16 %v203
    %v295 = vunpack.c.h.b16 %v203
    %v296 = vunpack.c.l.b16 %v204
    %v297 = vunpack.c.l.b16 %v205
    %v298 = vunpack.c.h.b16 %v205
    %v299 = vunpack.c.l.b16 %v206
    %v300 = vunpack.c.l.b16 %v207
    %v301 = vunpack.c.h.b16 %v207
    %v302 = vunpack.c.l.b16 %v208
    %v303 = vpack.c.b16 %v258, %v255
    %v304 = vpack.c.b16 %v259, %v256
    %v305 = vpack.c.b16 %v260, %v257
    %v306 = vpack.c.b16 %v264, %v261
    %v307 = vpack.c.b16 %v265, %v262
    %v308 = vpack.c.b16 %v266, %v263
    %v309 = vpack.c.b16 %v270, %v267
    %v310 = vpack.c.b16 %v271, %v268
    %v311 = vpack.c.b16 %v272, %v269
    %v312 = vpack.c.b16 %v276, %v273
    %v313 = vpack.c.b16 %v277, %v274
    %v314 = vpack.c.b16 %v278, %v275
    %v315 = vpack.c.b16 %v282, %v279
    %v316 = vpack.c.b16 %v283, %v280
    %v317 = vpack.c.b16 %v284, %v281
    %v318 = vpack.c.b16 %v288, %v285
    %v319 = vpack.c.b16 %v289, %v286
    %v320 = vpack.c.b16 %v290, %v287
    %v321 = vpack.c.b16 %v294, %v291
    %v322 = vpack.c.b16 %v295, %v292
    %v323 = vpack.c.b16 %v296, %v293
    %v324 = vpack.c.b16 %v300, %v297
    %v325 = vpack.c.b16 %v301, %v298
    %v326 = vpack.c.b16 %v302, %v299
    %351 = vmatpush.bf16.msra.mxu0 %v324
    %352 = vmatpush.bf16.msra.mxu0 %v321
    %353 = vmatpush.bf16.msra.mxu0 %v318
    %354 = vmatpush.bf16.msra.mxu0 %v315
    %355 = vmatpush.bf16.msra.mxu0 %v312
    %356 = vmatpush.bf16.msra.mxu0 %v309
    %357 = vmatpush.bf16.msra.mxu0 %v306
    %358 = vmatpush.bf16.msra.mxu0 %v303
    %359 = vmatmul.bf16.gmra.mxu0 %v221
    %v360 = vpop.f32.mrf.mxu0
    %v361 = vadd.f32 %v211, %v360
    %v362 = vpop.f32.mrf.mxu0
    %v363 = vadd.f32 %v211, %v362
    %364 = vdwg.mxu0
    %365 = vmatpush.bf16.msra.mxu0 %v325
    %366 = vmatpush.bf16.msra.mxu0 %v322
    %367 = vmatpush.bf16.msra.mxu0 %v319
    %368 = vmatpush.bf16.msra.mxu0 %v316
    %369 = vmatpush.bf16.msra.mxu0 %v313
    %370 = vmatpush.bf16.msra.mxu0 %v310
    %371 = vmatpush.bf16.msra.mxu0 %v307
    %372 = vmatpush.bf16.msra.mxu0 %v304
    %373 = vmatmul.bf16.gmra.mxu0 %v221
    %v374 = vpop.f32.mrf.mxu0
    %v375 = vadd.f32 %v212, %v374
    %v376 = vpop.f32.mrf.mxu0
    %v377 = vadd.f32 %v212, %v376
    %378 = vdwg.mxu0
    %379 = vmatpush.bf16.msra.mxu0 %v326
    %380 = vmatpush.bf16.msra.mxu0 %v323
    %381 = vmatpush.bf16.msra.mxu0 %v320
    %382 = vmatpush.bf16.msra.mxu0 %v317
    %383 = vmatpush.bf16.msra.mxu0 %v314
    %384 = vmatpush.bf16.msra.mxu0 %v311
    %385 = vmatpush.bf16.msra.mxu0 %v308
    %386 = vmatpush.bf16.msra.mxu0 %v305
    %387 = vmatmul.bf16.gmra.mxu0 %v221
    %v388 = vpop.f32.mrf.mxu0
    %v389 = vadd.f32 %v213, %v388
    %v390 = vpop.f32.mrf.mxu0
    %v391 = vadd.f32 %v213, %v390
    %392 = vdwg.mxu0
    %v393 = vpack.c.bf16 %v361, %v361
    %v394 = vpack.c.bf16 %v363, %v363
    %v395 = vpack.c.bf16 %v375, %v375
    %v396 = vpack.c.bf16 %v377, %v377
    %v397 = vpack.c.bf16 %v389, %v389
    %v398 = vpack.c.bf16 %v391, %v391
    %399 = vmatpush.bf16.xpose.msra.mxu0 0
    %400 = vmatpush.bf16.xpose.msra.mxu0 0
    %401 = vmatpush.bf16.xpose.msra.mxu0 0
    %402 = vmatpush.bf16.xpose.msra.mxu0 0
    %403 = vmatpush.bf16.xpose.msra.mxu0 0
    %404 = vmatpush.bf16.xpose.msra.mxu0 0
    %405 = vmatpush.bf16.xpose.msra.mxu0 0
    %406 = vmatpush.bf16.xpose.msra.mxu0 %v395
    %407 = vmatmul.bf16.gmra.mxu0 %v393
    %v408 = vpop.f32.mrf.mxu0
    %v409 = vadd.f32 0.0, %v408
    %v410 = vpop.f32.mrf.mxu0
    %411 = vdwg.mxu0
    %412 = vmatpush.bf16.xpose.msra.mxu0 0
    %413 = vmatpush.bf16.xpose.msra.mxu0 0
    %414 = vmatpush.bf16.xpose.msra.mxu0 0
    %415 = vmatpush.bf16.xpose.msra.mxu0 0
    %416 = vmatpush.bf16.xpose.msra.mxu0 0
    %417 = vmatpush.bf16.xpose.msra.mxu0 0
    %418 = vmatpush.bf16.xpose.msra.mxu0 0
    %419 = vmatpush.bf16.xpose.msra.mxu0 %v396
    %420 = vmatmul.bf16.gmra.mxu0 %v394
    %v421 = vpop.f32.mrf.mxu0
    %v422 = vadd.f32 0.0, %v421
    %v423 = vpop.f32.mrf.mxu0
    %424 = vdwg.mxu0
    %vm425 = vcmask 64512
    %v426 = vsel %vm425, %v409, -inf
    %427 = vmax.xlane.f32.xlu0 %v426
    %v428 = vpop.xlane.xlu0 %427
    %v429 = vsel %vm425, %v422, -inf
    %430 = vmax.xlane.f32.xlu0 %v429
    %v431 = vpop.xlane.xlu0 %430
    %v432 = vsub.f32 %v409, %v428
    %v433 = vsub.f32 %v422, %v431
    %v434 = vmul.f32 %v432, 1.442695
    %v435 = vpow.pop %v434
    %v436 = vmul.f32 %v433, 1.442695
    %v437 = vpow.pop %v436
    %v438 = vsel %vm425, %v435, 0.0
    %439 = vadd.xlane.f32.xlu0 %v438
    %v440 = vpop.xlane.xlu0 %439
    %v441 = vsel %vm425, %v437, 0.0
    %442 = vadd.xlane.f32.xlu0 %v441
    %v443 = vpop.xlane.xlu0 %442
    %v444 = vrcp.pop %v440
    %v445 = vrcp.pop %v443
    %v446 = vmul.f32 %v435, %v444
    %v447 = vmul.f32 %v437, %v445
    %v448 = vpack.c.bf16 %v446, %v446
    %v449 = vpack.c.bf16 %v447, %v447
    %v451 = vsel %vm425, %v448, 0
    %vm453 = vcmask 1043456
    %v455 = vsel %vm453, %v397, 0
    %457 = vmatpush.bf16.msra.mxu0 0
    %458 = vmatpush.bf16.msra.mxu0 0
    %459 = vmatpush.bf16.msra.mxu0 0
    %460 = vmatpush.bf16.msra.mxu0 0
    %461 = vmatpush.bf16.msra.mxu0 0
    %462 = vmatpush.bf16.msra.mxu0 0
    %463 = vmatpush.bf16.msra.mxu0 0
    %464 = vmatpush.bf16.msra.mxu0 %v455
    %465 = vmatmul.bf16.gmra.mxu0 %v451
    %v466 = vpop.f32.mrf.mxu0
    %v467 = vadd.f32 0.0, %v466
    %v468 = vpop.f32.mrf.mxu0
    %469 = vdwg.mxu0
    %v471 = vsel %vm425, %v449, 0
    %v474 = vsel %vm453, %v398, 0
    %476 = vmatpush.bf16.msra.mxu0 0
    %477 = vmatpush.bf16.msra.mxu0 0
    %478 = vmatpush.bf16.msra.mxu0 0
    %479 = vmatpush.bf16.msra.mxu0 0
    %480 = vmatpush.bf16.msra.mxu0 0
    %481 = vmatpush.bf16.msra.mxu0 0
    %482 = vmatpush.bf16.msra.mxu0 0
    %483 = vmatpush.bf16.msra.mxu0 %v474
    %484 = vmatmul.bf16.gmra.mxu0 %v471
    %v485 = vpop.f32.mrf.mxu0
    %v486 = vadd.f32 0.0, %v485
    %v487 = vpop.f32.mrf.mxu0
    %488 = vdwg.mxu0
    %v489 = vpack.c.bf16 %v486, %v467
    %v490 = vld [vmem:[#allocation8] sm:$0xf]
    %v491 = vld [vmem:[#allocation8 + $0x4] sm:$0xf]
    %v492 = vld [vmem:[#allocation8 + $0x8] sm:$0xf]
    %v493 = vld [vmem:[#allocation8 + $0xc] sm:$0xf]
    %v494 = vld [vmem:[#allocation8 + $0x10] sm:$0xf]
    %v495 = vld [vmem:[#allocation8 + $0x14] sm:$0xf]
    %v496 = vld [vmem:[#allocation8 + $0x18] sm:$0xf]
    %v497 = vld [vmem:[#allocation8 + $0x1c] sm:$0xf]
    %v498 = vld [vmem:[#allocation8 + $0x20] sm:$0xf]
    %v499 = vld [vmem:[#allocation8 + $0x24] sm:$0xf]
    %v500 = vld [vmem:[#allocation8 + $0x28] sm:$0xf]
    %v501 = vld [vmem:[#allocation8 + $0x2c] sm:$0xf]
    %v502 = vld [vmem:[#allocation8 + $0x30] sm:$0xf]
    %v503 = vld [vmem:[#allocation8 + $0x34] sm:$0xf]
    %v504 = vld [vmem:[#allocation8 + $0x38] sm:$0xf]
    %v505 = vld [vmem:[#allocation8 + $0x3c] sm:$0xf]
    %v506 = vld [vmem:[%s4] sm:$0x1]
    %v508 = vperm.slane %v506, 0
    %v526 = vunpack.c.l.b16 %v490
    %v527 = vunpack.c.l.b16 %v491
    %v528 = vunpack.c.l.b16 %v492
    %v529 = vunpack.c.l.b16 %v493
    %v530 = vunpack.c.l.b16 %v494
    %v531 = vunpack.c.l.b16 %v495
    %v532 = vunpack.c.l.b16 %v496
    %v533 = vunpack.c.l.b16 %v497
    %v534 = vunpack.c.l.b16 %v498
    %v535 = vunpack.c.l.b16 %v499
    %v536 = vunpack.c.l.b16 %v500
    %v537 = vunpack.c.l.b16 %v501
    %v538 = vunpack.c.l.b16 %v502
    %v539 = vunpack.c.l.b16 %v503
    %v540 = vunpack.c.l.b16 %v504
    %v541 = vunpack.c.l.b16 %v505
    %v542 = vpack.c.b16 %v527, %v526
    %v543 = vpack.c.b16 %v529, %v528
    %v544 = vpack.c.b16 %v531, %v530
    %v545 = vpack.c.b16 %v533, %v532
    %v546 = vpack.c.b16 %v535, %v534
    %v547 = vpack.c.b16 %v537, %v536
    %v548 = vpack.c.b16 %v539, %v538
    %v549 = vpack.c.b16 %v541, %v540
    %558 = vmatpush.bf16.msra.mxu0 %v549
    %559 = vmatpush.bf16.msra.mxu0 %v548
    %560 = vmatpush.bf16.msra.mxu0 %v547
    %561 = vmatpush.bf16.msra.mxu0 %v546
    %562 = vmatpush.bf16.msra.mxu0 %v545
    %563 = vmatpush.bf16.msra.mxu0 %v544
    %564 = vmatpush.bf16.msra.mxu0 %v543
    %565 = vmatpush.bf16.msra.mxu0 %v542
    %566 = vmatmul.bf16.gmra.mxu0 %v489
    %v567 = vpop.f32.mrf.mxu0
    %v568 = vadd.f32 %v508, %v567
    %v569 = vpop.f32.mrf.mxu0
    %v570 = vadd.f32 %v508, %v569
    %571 = vdwg.mxu0
    %v572 = vlaneseq
    %v573 = vand.u32 %v572, 127
    %vm574 = vcmp.lt.s32.totalorder %v573, 32
    %v575 = vsel %vm574, 1, 0
    %v576 = vcvt.s32.f32 %v575
    %v577 = vadd.f32 %v175, %v568
    %v578 = vadd.f32 %v176, %v570
    %v579 = vld [vmem:[%s5] sm:$0x1]
    %v580 = vld [vmem:[%s6] sm:$0x1]
    %581 = vadd.xlane.f32.xlu0 %v577
    %v582 = vpop.xlane.xlu0 %581
    %583 = vadd.xlane.f32.xlu0 %v578
    %v584 = vpop.xlane.xlu0 %583
    %v585 = vmul.f32 %v582, 0.03125
    %v586 = vmul.f32 %v584, 0.03125
    %v587 = vsub.f32 %v577, %v585
    %v588 = vsub.f32 %v578, %v586
    %v589 = vmul.f32 %v587, %v576
    %v590 = vmul.f32 %v588, %v576
    %v591 = vmul.f32 %v589, %v589
    %v592 = vmul.f32 %v590, %v590
    %593 = vadd.xlane.f32.xlu0 %v591
    %v594 = vpop.xlane.xlu0 %593
    %595 = vadd.xlane.f32.xlu0 %v592
    %v596 = vpop.xlane.xlu0 %595
    %v597 = vmul.f32 %v594, 0.03125
    %v598 = vmul.f32 %v596, 0.03125
    %v599 = vadd.f32 %v597, 1e-05
    %v600 = vadd.f32 %v598, 1e-05
    %v601 = vrsqrt.pop %v599
    %v602 = vmul.f32 %v601, %v599
    %v603 = vmul.f32 %v602, %v601
    %v604 = vmul.f32 0.5, %v603
    %v605 = vsub.f32 1.5, %v604
    %v606 = vmul.f32 %v601, %v605
    %vm607 = vweird.f32 %v599
    %vm608 = vweird.f32 %v601
    %vm609 = vmor %vm607, %vm608
    %v610 = vsel %vm609, %v601, %v606
    %v611 = vrsqrt.pop %v600
    %v612 = vmul.f32 %v611, %v600
    %v613 = vmul.f32 %v612, %v611
    %v614 = vmul.f32 0.5, %v613
    %v615 = vsub.f32 1.5, %v614
    %v616 = vmul.f32 %v611, %v615
    %vm617 = vweird.f32 %v600
    %vm618 = vweird.f32 %v611
    %vm619 = vmor %vm617, %vm618
    %v620 = vsel %vm619, %v611, %v616
    %v621 = vmul.f32 %v589, %v610
    %v622 = vmul.f32 %v590, %v620
    %v624 = vperm.slane %v579, 0
    %v626 = vmul.f32 %v621, %v624
    %v627 = vmul.f32 %v622, %v624
    %v629 = vperm.slane %v580, 0
    %v631 = vadd.f32 %v626, %v629
    %v632 = vadd.f32 %v627, %v629
    %v633 = vpack.c.bf16 %v632, %v631
    %v634 = vld [vmem:[#allocation10] sm:$0xff]
    %v635 = vld [vmem:[#allocation10 + $0x8] sm:$0xff]
    %v636 = vld [vmem:[#allocation10 + $0x10] sm:$0xff]
    %v637 = vld [vmem:[#allocation10 + $0x18] sm:$0xff]
    %v638 = vld [vmem:[#allocation10 + $0x20] sm:$0xff]
    %v639 = vld [vmem:[#allocation10 + $0x28] sm:$0xff]
    %v640 = vld [vmem:[#allocation10 + $0x30] sm:$0xff]
    %v641 = vld [vmem:[#allocation10 + $0x38] sm:$0xff]
    %v642 = vld [vmem:[#allocation10 + $0x40] sm:$0xff]
    %v643 = vld [vmem:[#allocation10 + $0x48] sm:$0xff]
    %v644 = vld [vmem:[#allocation10 + $0x50] sm:$0xff]
    %v645 = vld [vmem:[#allocation10 + $0x58] sm:$0xff]
    %v646 = vld [vmem:[#allocation10 + $0x60] sm:$0xff]
    %v647 = vld [vmem:[#allocation10 + $0x68] sm:$0xff]
    %v648 = vld [vmem:[#allocation10 + $0x70] sm:$0xff]
    %v649 = vld [vmem:[#allocation10 + $0x78] sm:$0xff]
    %v650 = vld [vmem:[#allocation10 + $0x80] sm:$0xff]
    %v651 = vld [vmem:[#allocation10 + $0x88] sm:$0xff]
    %v652 = vld [vmem:[#allocation10 + $0x90] sm:$0xff]
    %v653 = vld [vmem:[#allocation10 + $0x98] sm:$0xff]
    %v654 = vld [vmem:[#allocation10 + $0xa0] sm:$0xff]
    %v655 = vld [vmem:[#allocation10 + $0xa8] sm:$0xff]
    %v656 = vld [vmem:[#allocation10 + $0xb0] sm:$0xff]
    %v657 = vld [vmem:[#allocation10 + $0xb8] sm:$0xff]
    %v658 = vld [vmem:[#allocation10 + $0xc0] sm:$0xff]
    %v659 = vld [vmem:[#allocation10 + $0xc8] sm:$0xff]
    %v660 = vld [vmem:[#allocation10 + $0xd0] sm:$0xff]
    %v661 = vld [vmem:[#allocation10 + $0xd8] sm:$0xff]
    %v662 = vld [vmem:[#allocation10 + $0xe0] sm:$0xff]
    %v663 = vld [vmem:[#allocation10 + $0xe8] sm:$0xff]
    %v664 = vld [vmem:[#allocation10 + $0xf0] sm:$0xff]
    %v665 = vld [vmem:[#allocation10 + $0xf8] sm:$0xff]
    %v666 = vld [vmem:[#allocation10 + $0x100] sm:$0xff]
    %v667 = vld [vmem:[#allocation10 + $0x108] sm:$0xff]
    %v668 = vld [vmem:[#allocation10 + $0x110] sm:$0xff]
    %v669 = vld [vmem:[#allocation10 + $0x118] sm:$0xff]
    %v670 = vld [vmem:[#allocation10 + $0x120] sm:$0xff]
    %v671 = vld [vmem:[#allocation10 + $0x128] sm:$0xff]
    %v672 = vld [vmem:[#allocation10 + $0x130] sm:$0xff]
    %v673 = vld [vmem:[#allocation10 + $0x138] sm:$0xff]
    %v674 = vld [vmem:[#allocation10 + $0x140] sm:$0xff]
    %v675 = vld [vmem:[#allocation10 + $0x148] sm:$0xff]
    %v676 = vld [vmem:[#allocation10 + $0x150] sm:$0xff]
    %v677 = vld [vmem:[#allocation10 + $0x158] sm:$0xff]
    %v678 = vld [vmem:[#allocation10 + $0x160] sm:$0xff]
    %v679 = vld [vmem:[#allocation10 + $0x168] sm:$0xff]
    %v680 = vld [vmem:[#allocation10 + $0x170] sm:$0xff]
    %v681 = vld [vmem:[#allocation10 + $0x178] sm:$0xff]
    %v682 = vld [vmem:[#allocation10 + $0x180] sm:$0xff]
    %v683 = vld [vmem:[#allocation10 + $0x188] sm:$0xff]
    %v684 = vld [vmem:[#allocation10 + $0x190] sm:$0xff]
    %v685 = vld [vmem:[#allocation10 + $0x198] sm:$0xff]
    %v686 = vld [vmem:[#allocation10 + $0x1a0] sm:$0xff]
    %v687 = vld [vmem:[#allocation10 + $0x1a8] sm:$0xff]
    %v688 = vld [vmem:[#allocation10 + $0x1b0] sm:$0xff]
    %v689 = vld [vmem:[#allocation10 + $0x1b8] sm:$0xff]
    %v690 = vld [vmem:[#allocation10 + $0x1c0] sm:$0xff]
    %v691 = vld [vmem:[#allocation10 + $0x1c8] sm:$0xff]
    %v692 = vld [vmem:[#allocation10 + $0x1d0] sm:$0xff]
    %v693 = vld [vmem:[#allocation10 + $0x1d8] sm:$0xff]
    %v694 = vld [vmem:[#allocation10 + $0x1e0] sm:$0xff]
    %v695 = vld [vmem:[#allocation10 + $0x1e8] sm:$0xff]
    %v696 = vld [vmem:[#allocation10 + $0x1f0] sm:$0xff]
    %v697 = vld [vmem:[#allocation10 + $0x1f8] sm:$0xff]
    %v698 = vld [vmem:[#allocation10 + $0x200] sm:$0xff]
    %v699 = vld [vmem:[#allocation10 + $0x208] sm:$0xff]
    %v700 = vld [vmem:[#allocation10 + $0x210] sm:$0xff]
    %v701 = vld [vmem:[#allocation10 + $0x218] sm:$0xff]
    %v702 = vld [vmem:[#allocation10 + $0x220] sm:$0xff]
    %v703 = vld [vmem:[#allocation10 + $0x228] sm:$0xff]
    %v704 = vld [vmem:[#allocation10 + $0x230] sm:$0xff]
    %v705 = vld [vmem:[#allocation10 + $0x238] sm:$0xff]
    %v706 = vld [vmem:[#allocation10 + $0x240] sm:$0xff]
    %v707 = vld [vmem:[#allocation10 + $0x248] sm:$0xff]
    %v708 = vld [vmem:[#allocation10 + $0x250] sm:$0xff]
    %v709 = vld [vmem:[#allocation10 + $0x258] sm:$0xff]
    %v710 = vld [vmem:[#allocation10 + $0x260] sm:$0xff]
    %v711 = vld [vmem:[#allocation10 + $0x268] sm:$0xff]
    %v712 = vld [vmem:[#allocation10 + $0x270] sm:$0xff]
    %v713 = vld [vmem:[#allocation10 + $0x278] sm:$0xff]
    %v714 = vld [vmem:[#allocation10 + $0x280] sm:$0xff]
    %v715 = vld [vmem:[#allocation10 + $0x288] sm:$0xff]
    %v716 = vld [vmem:[#allocation10 + $0x290] sm:$0xff]
    %v717 = vld [vmem:[#allocation10 + $0x298] sm:$0xff]
    %v718 = vld [vmem:[#allocation10 + $0x2a0] sm:$0xff]
    %v719 = vld [vmem:[#allocation10 + $0x2a8] sm:$0xff]
    %v720 = vld [vmem:[#allocation10 + $0x2b0] sm:$0xff]
    %v721 = vld [vmem:[#allocation10 + $0x2b8] sm:$0xff]
    %v722 = vld [vmem:[#allocation10 + $0x2c0] sm:$0xff]
    %v723 = vld [vmem:[#allocation10 + $0x2c8] sm:$0xff]
    %v724 = vld [vmem:[#allocation10 + $0x2d0] sm:$0xff]
    %v725 = vld [vmem:[#allocation10 + $0x2d8] sm:$0xff]
    %v726 = vld [vmem:[#allocation10 + $0x2e0] sm:$0xff]
    %v727 = vld [vmem:[#allocation10 + $0x2e8] sm:$0xff]
    %v728 = vld [vmem:[#allocation10 + $0x2f0] sm:$0xff]
    %v729 = vld [vmem:[#allocation10 + $0x2f8] sm:$0xff]
    %v730 = vld [vmem:[#allocation10 + $0x300] sm:$0xff]
    %v731 = vld [vmem:[#allocation10 + $0x308] sm:$0xff]
    %v732 = vld [vmem:[#allocation10 + $0x310] sm:$0xff]
    %v733 = vld [vmem:[#allocation10 + $0x318] sm:$0xff]
    %v734 = vld [vmem:[#allocation10 + $0x320] sm:$0xff]
    %v735 = vld [vmem:[#allocation10 + $0x328] sm:$0xff]
    %v736 = vld [vmem:[#allocation10 + $0x330] sm:$0xff]
    %v737 = vld [vmem:[#allocation10 + $0x338] sm:$0xff]
    %v738 = vld [vmem:[#allocation10 + $0x340] sm:$0xff]
    %v739 = vld [vmem:[#allocation10 + $0x348] sm:$0xff]
    %v740 = vld [vmem:[#allocation10 + $0x350] sm:$0xff]
    %v741 = vld [vmem:[#allocation10 + $0x358] sm:$0xff]
    %v742 = vld [vmem:[#allocation10 + $0x360] sm:$0xff]
    %v743 = vld [vmem:[#allocation10 + $0x368] sm:$0xff]
    %v744 = vld [vmem:[#allocation10 + $0x370] sm:$0xff]
    %v745 = vld [vmem:[#allocation10 + $0x378] sm:$0xff]
    %v746 = vld [vmem:[#allocation10 + $0x380] sm:$0xff]
    %v747 = vld [vmem:[#allocation10 + $0x388] sm:$0xff]
    %v748 = vld [vmem:[#allocation10 + $0x390] sm:$0xff]
    %v749 = vld [vmem:[#allocation10 + $0x398] sm:$0xff]
    %v750 = vld [vmem:[#allocation10 + $0x3a0] sm:$0xff]
    %v751 = vld [vmem:[#allocation10 + $0x3a8] sm:$0xff]
    %v752 = vld [vmem:[#allocation10 + $0x3b0] sm:$0xff]
    %v753 = vld [vmem:[#allocation10 + $0x3b8] sm:$0xff]
    %v754 = vld [vmem:[#allocation10 + $0x3c0] sm:$0xff]
    %v755 = vld [vmem:[#allocation10 + $0x3c8] sm:$0xff]
    %v756 = vld [vmem:[#allocation10 + $0x3d0] sm:$0xff]
    %v757 = vld [vmem:[#allocation10 + $0x3d8] sm:$0xff]
    %v758 = vld [vmem:[#allocation10 + $0x3e0] sm:$0xff]
    %v759 = vld [vmem:[#allocation10 + $0x3e8] sm:$0xff]
    %v760 = vld [vmem:[#allocation10 + $0x3f0] sm:$0xff]
    %v761 = vld [vmem:[#allocation10 + $0x3f8] sm:$0xff]
    %v762 = vld [vmem:[#allocation11] sm:$0xff]
    %v763 = vld [vmem:[#allocation11 + $0x8] sm:$0xff]
    %v766 = vperm.slane %v762, 0
    %v767 = vperm.slane %v762, 1
    %v768 = vperm.slane %v762, 2
    %v769 = vperm.slane %v762, 3
    %v770 = vperm.slane %v762, 4
    %v771 = vperm.slane %v762, 5
    %v772 = vperm.slane %v762, 6
    %v773 = vperm.slane %v762, 7
    %v774 = vperm.slane %v763, 0
    %v775 = vperm.slane %v763, 1
    %v776 = vperm.slane %v763, 2
    %v777 = vperm.slane %v763, 3
    %v778 = vperm.slane %v763, 4
    %v779 = vperm.slane %v763, 5
    %v780 = vperm.slane %v763, 6
    %v781 = vperm.slane %v763, 7
    %v926 = vunpack.c.l.b16 %v634
    %v927 = vunpack.c.h.b16 %v634
    %v928 = vunpack.c.l.b16 %v635
    %v929 = vunpack.c.h.b16 %v635
    %v930 = vunpack.c.l.b16 %v636
    %v931 = vunpack.c.h.b16 %v636
    %v932 = vunpack.c.l.b16 %v637
    %v933 = vunpack.c.h.b16 %v637
    %v934 = vunpack.c.l.b16 %v638
    %v935 = vunpack.c.h.b16 %v638
    %v936 = vunpack.c.l.b16 %v639
    %v937 = vunpack.c.h.b16 %v639
    %v938 = vunpack.c.l.b16 %v640
    %v939 = vunpack.c.h.b16 %v640
    %v940 = vunpack.c.l.b16 %v641
    %v941 = vunpack.c.h.b16 %v641
    %v942 = vunpack.c.l.b16 %v642
    %v943 = vunpack.c.h.b16 %v642
    %v944 = vunpack.c.l.b16 %v643
    %v945 = vunpack.c.h.b16 %v643
    %v946 = vunpack.c.l.b16 %v644
    %v947 = vunpack.c.h.b16 %v644
    %v948 = vunpack.c.l.b16 %v645
    %v949 = vunpack.c.h.b16 %v645
    %v950 = vunpack.c.l.b16 %v646
    %v951 = vunpack.c.h.b16 %v646
    %v952 = vunpack.c.l.b16 %v647
    %v953 = vunpack.c.h.b16 %v647
    %v954 = vunpack.c.l.b16 %v648
    %v955 = vunpack.c.h.b16 %v648
    %v956 = vunpack.c.l.b16 %v649
    %v957 = vunpack.c.h.b16 %v649
    %v958 = vunpack.c.l.b16 %v650
    %v959 = vunpack.c.h.b16 %v650
    %v960 = vunpack.c.l.b16 %v651
    %v961 = vunpack.c.h.b16 %v651
    %v962 = vunpack.c.l.b16 %v652
    %v963 = vunpack.c.h.b16 %v652
    %v964 = vunpack.c.l.b16 %v653
    %v965 = vunpack.c.h.b16 %v653
    %v966 = vunpack.c.l.b16 %v654
    %v967 = vunpack.c.h.b16 %v654
    %v968 = vunpack.c.l.b16 %v655
    %v969 = vunpack.c.h.b16 %v655
    %v970 = vunpack.c.l.b16 %v656
    %v971 = vunpack.c.h.b16 %v656
    %v972 = vunpack.c.l.b16 %v657
    %v973 = vunpack.c.h.b16 %v657
    %v974 = vunpack.c.l.b16 %v658
    %v975 = vunpack.c.h.b16 %v658
    %v976 = vunpack.c.l.b16 %v659
    %v977 = vunpack.c.h.b16 %v659
    %v978 = vunpack.c.l.b16 %v660
    %v979 = vunpack.c.h.b16 %v660
    %v980 = vunpack.c.l.b16 %v661
    %v981 = vunpack.c.h.b16 %v661
    %v982 = vunpack.c.l.b16 %v662
    %v983 = vunpack.c.h.b16 %v662
    %v984 = vunpack.c.l.b16 %v663
    %v985 = vunpack.c.h.b16 %v663
    %v986 = vunpack.c.l.b16 %v664
    %v987 = vunpack.c.h.b16 %v664
    %v988 = vunpack.c.l.b16 %v665
    %v989 = vunpack.c.h.b16 %v665
    %v990 = vunpack.c.l.b16 %v666
    %v991 = vunpack.c.h.b16 %v666
    %v992 = vunpack.c.l.b16 %v667
    %v993 = vunpack.c.h.b16 %v667
    %v994 = vunpack.c.l.b16 %v668
    %v995 = vunpack.c.h.b16 %v668
    %v996 = vunpack.c.l.b16 %v669
    %v997 = vunpack.c.h.b16 %v669
    %v998 = vunpack.c.l.b16 %v670
    %v999 = vunpack.c.h.b16 %v670
    %v1000 = vunpack.c.l.b16 %v671
    %v1001 = vunpack.c.h.b16 %v671
    %v1002 = vunpack.c.l.b16 %v672
    %v1003 = vunpack.c.h.b16 %v672
    %v1004 = vunpack.c.l.b16 %v673
    %v1005 = vunpack.c.h.b16 %v673
    %v1006 = vunpack.c.l.b16 %v674
    %v1007 = vunpack.c.h.b16 %v674
    %v1008 = vunpack.c.l.b16 %v675
    %v1009 = vunpack.c.h.b16 %v675
    %v1010 = vunpack.c.l.b16 %v676
    %v1011 = vunpack.c.h.b16 %v676
    %v1012 = vunpack.c.l.b16 %v677
    %v1013 = vunpack.c.h.b16 %v677
    %v1014 = vunpack.c.l.b16 %v678
    %v1015 = vunpack.c.h.b16 %v678
    %v1016 = vunpack.c.l.b16 %v679
    %v1017 = vunpack.c.h.b16 %v679
    %v1018 = vunpack.c.l.b16 %v680
    %v1019 = vunpack.c.h.b16 %v680
    %v1020 = vunpack.c.l.b16 %v681
    %v1021 = vunpack.c.h.b16 %v681
    %v1022 = vunpack.c.l.b16 %v682
    %v1023 = vunpack.c.h.b16 %v682
    %v1024 = vunpack.c.l.b16 %v683
    %v1025 = vunpack.c.h.b16 %v683
    %v1026 = vunpack.c.l.b16 %v684
    %v1027 = vunpack.c.h.b16 %v684
    %v1028 = vunpack.c.l.b16 %v685
    %v1029 = vunpack.c.h.b16 %v685
    %v1030 = vunpack.c.l.b16 %v686
    %v1031 = vunpack.c.h.b16 %v686
    %v1032 = vunpack.c.l.b16 %v687
    %v1033 = vunpack.c.h.b16 %v687
    %v1034 = vunpack.c.l.b16 %v688
    %v1035 = vunpack.c.h.b16 %v688
    %v1036 = vunpack.c.l.b16 %v689
    %v1037 = vunpack.c.h.b16 %v689
    %v1038 = vunpack.c.l.b16 %v690
    %v1039 = vunpack.c.h.b16 %v690
    %v1040 = vunpack.c.l.b16 %v691
    %v1041 = vunpack.c.h.b16 %v691
    %v1042 = vunpack.c.l.b16 %v692
    %v1043 = vunpack.c.h.b16 %v692
    %v1044 = vunpack.c.l.b16 %v693
    %v1045 = vunpack.c.h.b16 %v693
    %v1046 = vunpack.c.l.b16 %v694
    %v1047 = vunpack.c.h.b16 %v694
    %v1048 = vunpack.c.l.b16 %v695
    %v1049 = vunpack.c.h.b16 %v695
    %v1050 = vunpack.c.l.b16 %v696
    %v1051 = vunpack.c.h.b16 %v696
    %v1052 = vunpack.c.l.b16 %v697
    %v1053 = vunpack.c.h.b16 %v697
    %v1054 = vunpack.c.l.b16 %v698
    %v1055 = vunpack.c.h.b16 %v698
    %v1056 = vunpack.c.l.b16 %v699
    %v1057 = vunpack.c.h.b16 %v699
    %v1058 = vunpack.c.l.b16 %v700
    %v1059 = vunpack.c.h.b16 %v700
    %v1060 = vunpack.c.l.b16 %v701
    %v1061 = vunpack.c.h.b16 %v701
    %v1062 = vunpack.c.l.b16 %v702
    %v1063 = vunpack.c.h.b16 %v702
    %v1064 = vunpack.c.l.b16 %v703
    %v1065 = vunpack.c.h.b16 %v703
    %v1066 = vunpack.c.l.b16 %v704
    %v1067 = vunpack.c.h.b16 %v704
    %v1068 = vunpack.c.l.b16 %v705
    %v1069 = vunpack.c.h.b16 %v705
    %v1070 = vunpack.c.l.b16 %v706
    %v1071 = vunpack.c.h.b16 %v706
    %v1072 = vunpack.c.l.b16 %v707
    %v1073 = vunpack.c.h.b16 %v707
    %v1074 = vunpack.c.l.b16 %v708
    %v1075 = vunpack.c.h.b16 %v708
    %v1076 = vunpack.c.l.b16 %v709
    %v1077 = vunpack.c.h.b16 %v709
    %v1078 = vunpack.c.l.b16 %v710
    %v1079 = vunpack.c.h.b16 %v710
    %v1080 = vunpack.c.l.b16 %v711
    %v1081 = vunpack.c.h.b16 %v711
    %v1082 = vunpack.c.l.b16 %v712
    %v1083 = vunpack.c.h.b16 %v712
    %v1084 = vunpack.c.l.b16 %v713
    %v1085 = vunpack.c.h.b16 %v713
    %v1086 = vunpack.c.l.b16 %v714
    %v1087 = vunpack.c.h.b16 %v714
    %v1088 = vunpack.c.l.b16 %v715
    %v1089 = vunpack.c.h.b16 %v715
    %v1090 = vunpack.c.l.b16 %v716
    %v1091 = vunpack.c.h.b16 %v716
    %v1092 = vunpack.c.l.b16 %v717
    %v1093 = vunpack.c.h.b16 %v717
    %v1094 = vunpack.c.l.b16 %v718
    %v1095 = vunpack.c.h.b16 %v718
    %v1096 = vunpack.c.l.b16 %v719
    %v1097 = vunpack.c.h.b16 %v719
    %v1098 = vunpack.c.l.b16 %v720
    %v1099 = vunpack.c.h.b16 %v720
    %v1100 = vunpack.c.l.b16 %v721
    %v1101 = vunpack.c.h.b16 %v721
    %v1102 = vunpack.c.l.b16 %v722
    %v1103 = vunpack.c.h.b16 %v722
    %v1104 = vunpack.c.l.b16 %v723
    %v1105 = vunpack.c.h.b16 %v723
    %v1106 = vunpack.c.l.b16 %v724
    %v1107 = vunpack.c.h.b16 %v724
    %v1108 = vunpack.c.l.b16 %v725
    %v1109 = vunpack.c.h.b16 %v725
    %v1110 = vunpack.c.l.b16 %v726
    %v1111 = vunpack.c.h.b16 %v726
    %v1112 = vunpack.c.l.b16 %v727
    %v1113 = vunpack.c.h.b16 %v727
    %v1114 = vunpack.c.l.b16 %v728
    %v1115 = vunpack.c.h.b16 %v728
    %v1116 = vunpack.c.l.b16 %v729
    %v1117 = vunpack.c.h.b16 %v729
    %v1118 = vunpack.c.l.b16 %v730
    %v1119 = vunpack.c.h.b16 %v730
    %v1120 = vunpack.c.l.b16 %v731
    %v1121 = vunpack.c.h.b16 %v731
    %v1122 = vunpack.c.l.b16 %v732
    %v1123 = vunpack.c.h.b16 %v732
    %v1124 = vunpack.c.l.b16 %v733
    %v1125 = vunpack.c.h.b16 %v733
    %v1126 = vunpack.c.l.b16 %v734
    %v1127 = vunpack.c.h.b16 %v734
    %v1128 = vunpack.c.l.b16 %v735
    %v1129 = vunpack.c.h.b16 %v735
    %v1130 = vunpack.c.l.b16 %v736
    %v1131 = vunpack.c.h.b16 %v736
    %v1132 = vunpack.c.l.b16 %v737
    %v1133 = vunpack.c.h.b16 %v737
    %v1134 = vunpack.c.l.b16 %v738
    %v1135 = vunpack.c.h.b16 %v738
    %v1136 = vunpack.c.l.b16 %v739
    %v1137 = vunpack.c.h.b16 %v739
    %v1138 = vunpack.c.l.b16 %v740
    %v1139 = vunpack.c.h.b16 %v740
    %v1140 = vunpack.c.l.b16 %v741
    %v1141 = vunpack.c.h.b16 %v741
    %v1142 = vunpack.c.l.b16 %v742
    %v1143 = vunpack.c.h.b16 %v742
    %v1144 = vunpack.c.l.b16 %v743
    %v1145 = vunpack.c.h.b16 %v743
    %v1146 = vunpack.c.l.b16 %v744
    %v1147 = vunpack.c.h.b16 %v744
    %v1148 = vunpack.c.l.b16 %v745
    %v1149 = vunpack.c.h.b16 %v745
    %v1150 = vunpack.c.l.b16 %v746
    %v1151 = vunpack.c.h.b16 %v746
    %v1152 = vunpack.c.l.b16 %v747
    %v1153 = vunpack.c.h.b16 %v747
    %v1154 = vunpack.c.l.b16 %v748
    %v1155 = vunpack.c.h.b16 %v748
    %v1156 = vunpack.c.l.b16 %v749
    %v1157 = vunpack.c.h.b16 %v749
    %v1158 = vunpack.c.l.b16 %v750
    %v1159 = vunpack.c.h.b16 %v750
    %v1160 = vunpack.c.l.b16 %v751
    %v1161 = vunpack.c.h.b16 %v751
    %v1162 = vunpack.c.l.b16 %v752
    %v1163 = vunpack.c.h.b16 %v752
    %v1164 = vunpack.c.l.b16 %v753
    %v1165 = vunpack.c.h.b16 %v753
    %v1166 = vunpack.c.l.b16 %v754
    %v1167 = vunpack.c.h.b16 %v754
    %v1168 = vunpack.c.l.b16 %v755
    %v1169 = vunpack.c.h.b16 %v755
    %v1170 = vunpack.c.l.b16 %v756
    %v1171 = vunpack.c.h.b16 %v756
    %v1172 = vunpack.c.l.b16 %v757
    %v1173 = vunpack.c.h.b16 %v757
    %v1174 = vunpack.c.l.b16 %v758
    %v1175 = vunpack.c.h.b16 %v758
    %v1176 = vunpack.c.l.b16 %v759
    %v1177 = vunpack.c.h.b16 %v759
    %v1178 = vunpack.c.l.b16 %v760
    %v1179 = vunpack.c.h.b16 %v760
    %v1180 = vunpack.c.l.b16 %v761
    %v1181 = vunpack.c.h.b16 %v761
    %v1182 = vpack.c.b16 %v942, %v926
    %v1183 = vpack.c.b16 %v943, %v927
    %v1184 = vpack.c.b16 %v944, %v928
    %v1185 = vpack.c.b16 %v945, %v929
    %v1186 = vpack.c.b16 %v946, %v930
    %v1187 = vpack.c.b16 %v947, %v931
    %v1188 = vpack.c.b16 %v948, %v932
    %v1189 = vpack.c.b16 %v949, %v933
    %v1190 = vpack.c.b16 %v950, %v934
    %v1191 = vpack.c.b16 %v951, %v935
    %v1192 = vpack.c.b16 %v952, %v936
    %v1193 = vpack.c.b16 %v953, %v937
    %v1194 = vpack.c.b16 %v954, %v938
    %v1195 = vpack.c.b16 %v955, %v939
    %v1196 = vpack.c.b16 %v956, %v940
    %v1197 = vpack.c.b16 %v957, %v941
    %v1198 = vpack.c.b16 %v974, %v958
    %v1199 = vpack.c.b16 %v975, %v959
    %v1200 = vpack.c.b16 %v976, %v960
    %v1201 = vpack.c.b16 %v977, %v961
    %v1202 = vpack.c.b16 %v978, %v962
    %v1203 = vpack.c.b16 %v979, %v963
    %v1204 = vpack.c.b16 %v980, %v964
    %v1205 = vpack.c.b16 %v981, %v965
    %v1206 = vpack.c.b16 %v982, %v966
    %v1207 = vpack.c.b16 %v983, %v967
    %v1208 = vpack.c.b16 %v984, %v968
    %v1209 = vpack.c.b16 %v985, %v969
    %v1210 = vpack.c.b16 %v986, %v970
    %v1211 = vpack.c.b16 %v987, %v971
    %v1212 = vpack.c.b16 %v988, %v972
    %v1213 = vpack.c.b16 %v989, %v973
    %v1214 = vpack.c.b16 %v1006, %v990
    %v1215 = vpack.c.b16 %v1007, %v991
    %v1216 = vpack.c.b16 %v1008, %v992
    %v1217 = vpack.c.b16 %v1009, %v993
    %v1218 = vpack.c.b16 %v1010, %v994
    %v1219 = vpack.c.b16 %v1011, %v995
    %v1220 = vpack.c.b16 %v1012, %v996
    %v1221 = vpack.c.b16 %v1013, %v997
    %v1222 = vpack.c.b16 %v1014, %v998
    %v1223 = vpack.c.b16 %v1015, %v999
    %v1224 = vpack.c.b16 %v1016, %v1000
    %v1225 = vpack.c.b16 %v1017, %v1001
    %v1226 = vpack.c.b16 %v1018, %v1002
    %v1227 = vpack.c.b16 %v1019, %v1003
    %v1228 = vpack.c.b16 %v1020, %v1004
    %v1229 = vpack.c.b16 %v1021, %v1005
    %v1230 = vpack.c.b16 %v1038, %v1022
    %v1231 = vpack.c.b16 %v1039, %v1023
    %v1232 = vpack.c.b16 %v1040, %v1024
    %v1233 = vpack.c.b16 %v1041, %v1025
    %v1234 = vpack.c.b16 %v1042, %v1026
    %v1235 = vpack.c.b16 %v1043, %v1027
    %v1236 = vpack.c.b16 %v1044, %v1028
    %v1237 = vpack.c.b16 %v1045, %v1029
    %v1238 = vpack.c.b16 %v1046, %v1030
    %v1239 = vpack.c.b16 %v1047, %v1031
    %v1240 = vpack.c.b16 %v1048, %v1032
    %v1241 = vpack.c.b16 %v1049, %v1033
    %v1242 = vpack.c.b16 %v1050, %v1034
    %v1243 = vpack.c.b16 %v1051, %v1035
    %v1244 = vpack.c.b16 %v1052, %v1036
    %v1245 = vpack.c.b16 %v1053, %v1037
    %v1246 = vpack.c.b16 %v1070, %v1054
    %v1247 = vpack.c.b16 %v1071, %v1055
    %v1248 = vpack.c.b16 %v1072, %v1056
    %v1249 = vpack.c.b16 %v1073, %v1057
    %v1250 = vpack.c.b16 %v1074, %v1058
    %v1251 = vpack.c.b16 %v1075, %v1059
    %v1252 = vpack.c.b16 %v1076, %v1060
    %v1253 = vpack.c.b16 %v1077, %v1061
    %v1254 = vpack.c.b16 %v1078, %v1062
    %v1255 = vpack.c.b16 %v1079, %v1063
    %v1256 = vpack.c.b16 %v1080, %v1064
    %v1257 = vpack.c.b16 %v1081, %v1065
    %v1258 = vpack.c.b16 %v1082, %v1066
    %v1259 = vpack.c.b16 %v1083, %v1067
    %v1260 = vpack.c.b16 %v1084, %v1068
    %v1261 = vpack.c.b16 %v1085, %v1069
    %v1262 = vpack.c.b16 %v1102, %v1086
    %v1263 = vpack.c.b16 %v1103, %v1087
    %v1264 = vpack.c.b16 %v1104, %v1088
    %v1265 = vpack.c.b16 %v1105, %v1089
    %v1266 = vpack.c.b16 %v1106, %v1090
    %v1267 = vpack.c.b16 %v1107, %v1091
    %v1268 = vpack.c.b16 %v1108, %v1092
    %v1269 = vpack.c.b16 %v1109, %v1093
    %v1270 = vpack.c.b16 %v1110, %v1094
    %v1271 = vpack.c.b16 %v1111, %v1095
    %v1272 = vpack.c.b16 %v1112, %v1096
    %v1273 = vpack.c.b16 %v1113, %v1097
    %v1274 = vpack.c.b16 %v1114, %v1098
    %v1275 = vpack.c.b16 %v1115, %v1099
    %v1276 = vpack.c.b16 %v1116, %v1100
    %v1277 = vpack.c.b16 %v1117, %v1101
    %v1278 = vpack.c.b16 %v1134, %v1118
    %v1279 = vpack.c.b16 %v1135, %v1119
    %v1280 = vpack.c.b16 %v1136, %v1120
    %v1281 = vpack.c.b16 %v1137, %v1121
    %v1282 = vpack.c.b16 %v1138, %v1122
    %v1283 = vpack.c.b16 %v1139, %v1123
    %v1284 = vpack.c.b16 %v1140, %v1124
    %v1285 = vpack.c.b16 %v1141, %v1125
    %v1286 = vpack.c.b16 %v1142, %v1126
    %v1287 = vpack.c.b16 %v1143, %v1127
    %v1288 = vpack.c.b16 %v1144, %v1128
    %v1289 = vpack.c.b16 %v1145, %v1129
    %v1290 = vpack.c.b16 %v1146, %v1130
    %v1291 = vpack.c.b16 %v1147, %v1131
    %v1292 = vpack.c.b16 %v1148, %v1132
    %v1293 = vpack.c.b16 %v1149, %v1133
    %v1294 = vpack.c.b16 %v1166, %v1150
    %v1295 = vpack.c.b16 %v1167, %v1151
    %v1296 = vpack.c.b16 %v1168, %v1152
    %v1297 = vpack.c.b16 %v1169, %v1153
    %v1298 = vpack.c.b16 %v1170, %v1154
    %v1299 = vpack.c.b16 %v1171, %v1155
    %v1300 = vpack.c.b16 %v1172, %v1156
    %v1301 = vpack.c.b16 %v1173, %v1157
    %v1302 = vpack.c.b16 %v1174, %v1158
    %v1303 = vpack.c.b16 %v1175, %v1159
    %v1304 = vpack.c.b16 %v1176, %v1160
    %v1305 = vpack.c.b16 %v1177, %v1161
    %v1306 = vpack.c.b16 %v1178, %v1162
    %v1307 = vpack.c.b16 %v1179, %v1163
    %v1308 = vpack.c.b16 %v1180, %v1164
    %v1309 = vpack.c.b16 %v1181, %v1165
    %1438 = vmatpush.bf16.msra.mxu0 %v1294
    %1439 = vmatpush.bf16.msra.mxu0 %v1278
    %1440 = vmatpush.bf16.msra.mxu0 %v1262
    %1441 = vmatpush.bf16.msra.mxu0 %v1246
    %1442 = vmatpush.bf16.msra.mxu0 %v1230
    %1443 = vmatpush.bf16.msra.mxu0 %v1214
    %1444 = vmatpush.bf16.msra.mxu0 %v1198
    %1445 = vmatpush.bf16.msra.mxu0 %v1182
    %1446 = vmatmul.bf16.gmra.mxu0 %v633
    %v1447 = vpop.f32.mrf.mxu0
    %v1448 = vadd.f32 %v766, %v1447
    %v1449 = vpop.f32.mrf.mxu0
    %v1450 = vadd.f32 %v766, %v1449
    %1451 = vdwg.mxu0
    %1452 = vmatpush.bf16.msra.mxu0 %v1295
    %1453 = vmatpush.bf16.msra.mxu0 %v1279
    %1454 = vmatpush.bf16.msra.mxu0 %v1263
    %1455 = vmatpush.bf16.msra.mxu0 %v1247
    %1456 = vmatpush.bf16.msra.mxu0 %v1231
    %1457 = vmatpush.bf16.msra.mxu0 %v1215
    %1458 = vmatpush.bf16.msra.mxu0 %v1199
    %1459 = vmatpush.bf16.msra.mxu0 %v1183
    %1460 = vmatmul.bf16.gmra.mxu0 %v633
    %v1461 = vpop.f32.mrf.mxu0
    %v1462 = vadd.f32 %v767, %v1461
    %v1463 = vpop.f32.mrf.mxu0
    %v1464 = vadd.f32 %v767, %v1463
    %1465 = vdwg.mxu0
    %1466 = vmatpush.bf16.msra.mxu0 %v1296
    %1467 = vmatpush.bf16.msra.mxu0 %v1280
    %1468 = vmatpush.bf16.msra.mxu0 %v1264
    %1469 = vmatpush.bf16.msra.mxu0 %v1248
    %1470 = vmatpush.bf16.msra.mxu0 %v1232
    %1471 = vmatpush.bf16.msra.mxu0 %v1216
    %1472 = vmatpush.bf16.msra.mxu0 %v1200
    %1473 = vmatpush.bf16.msra.mxu0 %v1184
    %1474 = vmatmul.bf16.gmra.mxu0 %v633
    %v1475 = vpop.f32.mrf.mxu0
    %v1476 = vadd.f32 %v768, %v1475
    %v1477 = vpop.f32.mrf.mxu0
    %v1478 = vadd.f32 %v768, %v1477
    %1479 = vdwg.mxu0
    %1480 = vmatpush.bf16.msra.mxu0 %v1297
    %1481 = vmatpush.bf16.msra.mxu0 %v1281
    %1482 = vmatpush.bf16.msra.mxu0 %v1265
    %1483 = vmatpush.bf16.msra.mxu0 %v1249
    %1484 = vmatpush.bf16.msra.mxu0 %v1233
    %1485 = vmatpush.bf16.msra.mxu0 %v1217
    %1486 = vmatpush.bf16.msra.mxu0 %v1201
    %1487 = vmatpush.bf16.msra.mxu0 %v1185
    %1488 = vmatmul.bf16.gmra.mxu0 %v633
    %v1489 = vpop.f32.mrf.mxu0
    %v1490 = vadd.f32 %v769, %v1489
    %v1491 = vpop.f32.mrf.mxu0
    %v1492 = vadd.f32 %v769, %v1491
    %1493 = vdwg.mxu0
    %1494 = vmatpush.bf16.msra.mxu0 %v1298
    %1495 = vmatpush.bf16.msra.mxu0 %v1282
    %1496 = vmatpush.bf16.msra.mxu0 %v1266
    %1497 = vmatpush.bf16.msra.mxu0 %v1250
    %1498 = vmatpush.bf16.msra.mxu0 %v1234
    %1499 = vmatpush.bf16.msra.mxu0 %v1218
    %1500 = vmatpush.bf16.msra.mxu0 %v1202
    %1501 = vmatpush.bf16.msra.mxu0 %v1186
    %1502 = vmatmul.bf16.gmra.mxu0 %v633
    %v1503 = vpop.f32.mrf.mxu0
    %v1504 = vadd.f32 %v770, %v1503
    %v1505 = vpop.f32.mrf.mxu0
    %v1506 = vadd.f32 %v770, %v1505
    %1507 = vdwg.mxu0
    %1508 = vmatpush.bf16.msra.mxu0 %v1299
    %1509 = vmatpush.bf16.msra.mxu0 %v1283
    %1510 = vmatpush.bf16.msra.mxu0 %v1267
    %1511 = vmatpush.bf16.msra.mxu0 %v1251
    %1512 = vmatpush.bf16.msra.mxu0 %v1235
    %1513 = vmatpush.bf16.msra.mxu0 %v1219
    %1514 = vmatpush.bf16.msra.mxu0 %v1203
    %1515 = vmatpush.bf16.msra.mxu0 %v1187
    %1516 = vmatmul.bf16.gmra.mxu0 %v633
    %v1517 = vpop.f32.mrf.mxu0
    %v1518 = vadd.f32 %v771, %v1517
    %v1519 = vpop.f32.mrf.mxu0
    %v1520 = vadd.f32 %v771, %v1519
    %1521 = vdwg.mxu0
    %1522 = vmatpush.bf16.msra.mxu0 %v1300
    %1523 = vmatpush.bf16.msra.mxu0 %v1284
    %1524 = vmatpush.bf16.msra.mxu0 %v1268
    %1525 = vmatpush.bf16.msra.mxu0 %v1252
    %1526 = vmatpush.bf16.msra.mxu0 %v1236
    %1527 = vmatpush.bf16.msra.mxu0 %v1220
    %1528 = vmatpush.bf16.msra.mxu0 %v1204
    %1529 = vmatpush.bf16.msra.mxu0 %v1188
    %1530 = vmatmul.bf16.gmra.mxu0 %v633
    %v1531 = vpop.f32.mrf.mxu0
    %v1532 = vadd.f32 %v772, %v1531
    %v1533 = vpop.f32.mrf.mxu0
    %v1534 = vadd.f32 %v772, %v1533
    %1535 = vdwg.mxu0
    %1536 = vmatpush.bf16.msra.mxu0 %v1301
    %1537 = vmatpush.bf16.msra.mxu0 %v1285
    %1538 = vmatpush.bf16.msra.mxu0 %v1269
    %1539 = vmatpush.bf16.msra.mxu0 %v1253
    %1540 = vmatpush.bf16.msra.mxu0 %v1237
    %1541 = vmatpush.bf16.msra.mxu0 %v1221
    %1542 = vmatpush.bf16.msra.mxu0 %v1205
    %1543 = vmatpush.bf16.msra.mxu0 %v1189
    %1544 = vmatmul.bf16.gmra.mxu0 %v633
    %v1545 = vpop.f32.mrf.mxu0
    %v1546 = vadd.f32 %v773, %v1545
    %v1547 = vpop.f32.mrf.mxu0
    %v1548 = vadd.f32 %v773, %v1547
    %1549 = vdwg.mxu0
    %1550 = vmatpush.bf16.msra.mxu0 %v1302
    %1551 = vmatpush.bf16.msra.mxu0 %v1286
    %1552 = vmatpush.bf16.msra.mxu0 %v1270
    %1553 = vmatpush.bf16.msra.mxu0 %v1254
    %1554 = vmatpush.bf16.msra.mxu0 %v1238
    %1555 = vmatpush.bf16.msra.mxu0 %v1222
    %1556 = vmatpush.bf16.msra.mxu0 %v1206
    %1557 = vmatpush.bf16.msra.mxu0 %v1190
    %1558 = vmatmul.bf16.gmra.mxu0 %v633
    %v1559 = vpop.f32.mrf.mxu0
    %v1560 = vadd.f32 %v774, %v1559
    %v1561 = vpop.f32.mrf.mxu0
    %v1562 = vadd.f32 %v774, %v1561
    %1563 = vdwg.mxu0
    %1564 = vmatpush.bf16.msra.mxu0 %v1303
    %1565 = vmatpush.bf16.msra.mxu0 %v1287
    %1566 = vmatpush.bf16.msra.mxu0 %v1271
    %1567 = vmatpush.bf16.msra.mxu0 %v1255
    %1568 = vmatpush.bf16.msra.mxu0 %v1239
    %1569 = vmatpush.bf16.msra.mxu0 %v1223
    %1570 = vmatpush.bf16.msra.mxu0 %v1207
    %1571 = vmatpush.bf16.msra.mxu0 %v1191
    %1572 = vmatmul.bf16.gmra.mxu0 %v633
    %v1573 = vpop.f32.mrf.mxu0
    %v1574 = vadd.f32 %v775, %v1573
    %v1575 = vpop.f32.mrf.mxu0
    %v1576 = vadd.f32 %v775, %v1575
    %1577 = vdwg.mxu0
    %1578 = vmatpush.bf16.msra.mxu0 %v1304
    %1579 = vmatpush.bf16.msra.mxu0 %v1288
    %1580 = vmatpush.bf16.msra.mxu0 %v1272
    %1581 = vmatpush.bf16.msra.mxu0 %v1256
    %1582 = vmatpush.bf16.msra.mxu0 %v1240
    %1583 = vmatpush.bf16.msra.mxu0 %v1224
    %1584 = vmatpush.bf16.msra.mxu0 %v1208
    %1585 = vmatpush.bf16.msra.mxu0 %v1192
    %1586 = vmatmul.bf16.gmra.mxu0 %v633
    %v1587 = vpop.f32.mrf.mxu0
    %v1588 = vadd.f32 %v776, %v1587
    %v1589 = vpop.f32.mrf.mxu0
    %v1590 = vadd.f32 %v776, %v1589
    %1591 = vdwg.mxu0
    %1592 = vmatpush.bf16.msra.mxu0 %v1305
    %1593 = vmatpush.bf16.msra.mxu0 %v1289
    %1594 = vmatpush.bf16.msra.mxu0 %v1273
    %1595 = vmatpush.bf16.msra.mxu0 %v1257
    %1596 = vmatpush.bf16.msra.mxu0 %v1241
    %1597 = vmatpush.bf16.msra.mxu0 %v1225
    %1598 = vmatpush.bf16.msra.mxu0 %v1209
    %1599 = vmatpush.bf16.msra.mxu0 %v1193
    %1600 = vmatmul.bf16.gmra.mxu0 %v633
    %v1601 = vpop.f32.mrf.mxu0
    %v1602 = vadd.f32 %v777, %v1601
    %v1603 = vpop.f32.mrf.mxu0
    %v1604 = vadd.f32 %v777, %v1603
    %1605 = vdwg.mxu0
    %1606 = vmatpush.bf16.msra.mxu0 %v1306
    %1607 = vmatpush.bf16.msra.mxu0 %v1290
    %1608 = vmatpush.bf16.msra.mxu0 %v1274
    %1609 = vmatpush.bf16.msra.mxu0 %v1258
    %1610 = vmatpush.bf16.msra.mxu0 %v1242
    %1611 = vmatpush.bf16.msra.mxu0 %v1226
    %1612 = vmatpush.bf16.msra.mxu0 %v1210
    %1613 = vmatpush.bf16.msra.mxu0 %v1194
    %1614 = vmatmul.bf16.gmra.mxu0 %v633
    %v1615 = vpop.f32.mrf.mxu0
    %v1616 = vadd.f32 %v778, %v1615
    %v1617 = vpop.f32.mrf.mxu0
    %v1618 = vadd.f32 %v778, %v1617
    %1619 = vdwg.mxu0
    %1620 = vmatpush.bf16.msra.mxu0 %v1307
    %1621 = vmatpush.bf16.msra.mxu0 %v1291
    %1622 = vmatpush.bf16.msra.mxu0 %v1275
    %1623 = vmatpush.bf16.msra.mxu0 %v1259
    %1624 = vmatpush.bf16.msra.mxu0 %v1243
    %1625 = vmatpush.bf16.msra.mxu0 %v1227
    %1626 = vmatpush.bf16.msra.mxu0 %v1211
    %1627 = vmatpush.bf16.msra.mxu0 %v1195
    %1628 = vmatmul.bf16.gmra.mxu0 %v633
    %v1629 = vpop.f32.mrf.mxu0
    %v1630 = vadd.f32 %v779, %v1629
    %v1631 = vpop.f32.mrf.mxu0
    %v1632 = vadd.f32 %v779, %v1631
    %1633 = vdwg.mxu0
    %1634 = vmatpush.bf16.msra.mxu0 %v1308
    %1635 = vmatpush.bf16.msra.mxu0 %v1292
    %1636 = vmatpush.bf16.msra.mxu0 %v1276
    %1637 = vmatpush.bf16.msra.mxu0 %v1260
    %1638 = vmatpush.bf16.msra.mxu0 %v1244
    %1639 = vmatpush.bf16.msra.mxu0 %v1228
    %1640 = vmatpush.bf16.msra.mxu0 %v1212
    %1641 = vmatpush.bf16.msra.mxu0 %v1196
    %1642 = vmatmul.bf16.gmra.mxu0 %v633
    %v1643 = vpop.f32.mrf.mxu0
    %v1644 = vadd.f32 %v780, %v1643
    %v1645 = vpop.f32.mrf.mxu0
    %v1646 = vadd.f32 %v780, %v1645
    %1647 = vdwg.mxu0
    %1648 = vmatpush.bf16.msra.mxu0 %v1309
    %1649 = vmatpush.bf16.msra.mxu0 %v1293
    %1650 = vmatpush.bf16.msra.mxu0 %v1277
    %1651 = vmatpush.bf16.msra.mxu0 %v1261
    %1652 = vmatpush.bf16.msra.mxu0 %v1245
    %1653 = vmatpush.bf16.msra.mxu0 %v1229
    %1654 = vmatpush.bf16.msra.mxu0 %v1213
    %1655 = vmatpush.bf16.msra.mxu0 %v1197
    %1656 = vmatmul.bf16.gmra.mxu0 %v633
    %v1657 = vpop.f32.mrf.mxu0
    %v1658 = vadd.f32 %v781, %v1657
    %v1659 = vpop.f32.mrf.mxu0
    %v1660 = vadd.f32 %v781, %v1659
    %1661 = vdwg.mxu0
    %v1662 = vmax.f32 %v1448, 0.0
    %v1663 = vmax.f32 %v1462, 0.0
    %v1664 = vmax.f32 %v1476, 0.0
    %v1665 = vmax.f32 %v1490, 0.0
    %v1666 = vmax.f32 %v1504, 0.0
    %v1667 = vmax.f32 %v1518, 0.0
    %v1668 = vmax.f32 %v1532, 0.0
    %v1669 = vmax.f32 %v1546, 0.0
    %v1670 = vmax.f32 %v1560, 0.0
    %v1671 = vmax.f32 %v1574, 0.0
    %v1672 = vmax.f32 %v1588, 0.0
    %v1673 = vmax.f32 %v1602, 0.0
    %v1674 = vmax.f32 %v1616, 0.0
    %v1675 = vmax.f32 %v1630, 0.0
    %v1676 = vmax.f32 %v1644, 0.0
    %v1677 = vmax.f32 %v1658, 0.0
    %v1678 = vmax.f32 %v1450, 0.0
    %v1679 = vmax.f32 %v1464, 0.0
    %v1680 = vmax.f32 %v1478, 0.0
    %v1681 = vmax.f32 %v1492, 0.0
    %v1682 = vmax.f32 %v1506, 0.0
    %v1683 = vmax.f32 %v1520, 0.0
    %v1684 = vmax.f32 %v1534, 0.0
    %v1685 = vmax.f32 %v1548, 0.0
    %v1686 = vmax.f32 %v1562, 0.0
    %v1687 = vmax.f32 %v1576, 0.0
    %v1688 = vmax.f32 %v1590, 0.0
    %v1689 = vmax.f32 %v1604, 0.0
    %v1690 = vmax.f32 %v1618, 0.0
    %v1691 = vmax.f32 %v1632, 0.0
    %v1692 = vmax.f32 %v1646, 0.0
    %v1693 = vmax.f32 %v1660, 0.0
    %v1694 = vpack.c.bf16 %v1678, %v1662
    %v1695 = vpack.c.bf16 %v1679, %v1663
    %v1696 = vpack.c.bf16 %v1680, %v1664
    %v1697 = vpack.c.bf16 %v1681, %v1665
    %v1698 = vpack.c.bf16 %v1682, %v1666
    %v1699 = vpack.c.bf16 %v1683, %v1667
    %v1700 = vpack.c.bf16 %v1684, %v1668
    %v1701 = vpack.c.bf16 %v1685, %v1669
    %v1702 = vpack.c.bf16 %v1686, %v1670
    %v1703 = vpack.c.bf16 %v1687, %v1671
    %v1704 = vpack.c.bf16 %v1688, %v1672
    %v1705 = vpack.c.bf16 %v1689, %v1673
    %v1706 = vpack.c.bf16 %v1690, %v1674
    %v1707 = vpack.c.bf16 %v1691, %v1675
    %v1708 = vpack.c.bf16 %v1692, %v1676
    %v1709 = vpack.c.bf16 %v1693, %v1677
    %v1710 = vld [vmem:[#allocation13] sm:$0xf]
    %v1711 = vld [vmem:[#allocation13 + $0x4] sm:$0xf]
    %v1712 = vld [vmem:[#allocation13 + $0x8] sm:$0xf]
    %v1713 = vld [vmem:[#allocation13 + $0xc] sm:$0xf]
    %v1714 = vld [vmem:[#allocation13 + $0x10] sm:$0xf]
    %v1715 = vld [vmem:[#allocation13 + $0x14] sm:$0xf]
    %v1716 = vld [vmem:[#allocation13 + $0x18] sm:$0xf]
    %v1717 = vld [vmem:[#allocation13 + $0x1c] sm:$0xf]
    %v1718 = vld [vmem:[#allocation13 + $0x20] sm:$0xf]
    %v1719 = vld [vmem:[#allocation13 + $0x24] sm:$0xf]
    %v1720 = vld [vmem:[#allocation13 + $0x28] sm:$0xf]
    %v1721 = vld [vmem:[#allocation13 + $0x2c] sm:$0xf]
    %v1722 = vld [vmem:[#allocation13 + $0x30] sm:$0xf]
    %v1723 = vld [vmem:[#allocation13 + $0x34] sm:$0xf]
    %v1724 = vld [vmem:[#allocation13 + $0x38] sm:$0xf]
    %v1725 = vld [vmem:[#allocation13 + $0x3c] sm:$0xf]
    %v1726 = vld [vmem:[#allocation13 + $0x40] sm:$0xf]
    %v1727 = vld [vmem:[#allocation13 + $0x44] sm:$0xf]
    %v1728 = vld [vmem:[#allocation13 + $0x48] sm:$0xf]
    %v1729 = vld [vmem:[#allocation13 + $0x4c] sm:$0xf]
    %v1730 = vld [vmem:[#allocation13 + $0x50] sm:$0xf]
    %v1731 = vld [vmem:[#allocation13 + $0x54] sm:$0xf]
    %v1732 = vld [vmem:[#allocation13 + $0x58] sm:$0xf]
    %v1733 = vld [vmem:[#allocation13 + $0x5c] sm:$0xf]
    %v1734 = vld [vmem:[#allocation13 + $0x60] sm:$0xf]
    %v1735 = vld [vmem:[#allocation13 + $0x64] sm:$0xf]
    %v1736 = vld [vmem:[#allocation13 + $0x68] sm:$0xf]
    %v1737 = vld [vmem:[#allocation13 + $0x6c] sm:$0xf]
    %v1738 = vld [vmem:[#allocation13 + $0x70] sm:$0xf]
    %v1739 = vld [vmem:[#allocation13 + $0x74] sm:$0xf]
    %v1740 = vld [vmem:[#allocation13 + $0x78] sm:$0xf]
    %v1741 = vld [vmem:[#allocation13 + $0x7c] sm:$0xf]
    %v1742 = vld [vmem:[#allocation13 + $0x80] sm:$0xf]
    %v1743 = vld [vmem:[#allocation13 + $0x84] sm:$0xf]
    %v1744 = vld [vmem:[#allocation13 + $0x88] sm:$0xf]
    %v1745 = vld [vmem:[#allocation13 + $0x8c] sm:$0xf]
    %v1746 = vld [vmem:[#allocation13 + $0x90] sm:$0xf]
    %v1747 = vld [vmem:[#allocation13 + $0x94] sm:$0xf]
    %v1748 = vld [vmem:[#allocation13 + $0x98] sm:$0xf]
    %v1749 = vld [vmem:[#allocation13 + $0x9c] sm:$0xf]
    %v1750 = vld [vmem:[#allocation13 + $0xa0] sm:$0xf]
    %v1751 = vld [vmem:[#allocation13 + $0xa4] sm:$0xf]
    %v1752 = vld [vmem:[#allocation13 + $0xa8] sm:$0xf]
    %v1753 = vld [vmem:[#allocation13 + $0xac] sm:$0xf]
    %v1754 = vld [vmem:[#allocation13 + $0xb0] sm:$0xf]
    %v1755 = vld [vmem:[#allocation13 + $0xb4] sm:$0xf]
    %v1756 = vld [vmem:[#allocation13 + $0xb8] sm:$0xf]
    %v1757 = vld [vmem:[#allocation13 + $0xbc] sm:$0xf]
    %v1758 = vld [vmem:[#allocation13 + $0xc0] sm:$0xf]
    %v1759 = vld [vmem:[#allocation13 + $0xc4] sm:$0xf]
    %v1760 = vld [vmem:[#allocation13 + $0xc8] sm:$0xf]
    %v1761 = vld [vmem:[#allocation13 + $0xcc] sm:$0xf]
    %v1762 = vld [vmem:[#allocation13 + $0xd0] sm:$0xf]
    %v1763 = vld [vmem:[#allocation13 + $0xd4] sm:$0xf]
    %v1764 = vld [vmem:[#allocation13 + $0xd8] sm:$0xf]
    %v1765 = vld [vmem:[#allocation13 + $0xdc] sm:$0xf]
    %v1766 = vld [vmem:[#allocation13 + $0xe0] sm:$0xf]
    %v1767 = vld [vmem:[#allocation13 + $0xe4] sm:$0xf]
    %v1768 = vld [vmem:[#allocation13 + $0xe8] sm:$0xf]
    %v1769 = vld [vmem:[#allocation13 + $0xec] sm:$0xf]
    %v1770 = vld [vmem:[#allocation13 + $0xf0] sm:$0xf]
    %v1771 = vld [vmem:[#allocation13 + $0xf4] sm:$0xf]
    %v1772 = vld [vmem:[#allocation13 + $0xf8] sm:$0xf]
    %v1773 = vld [vmem:[#allocation13 + $0xfc] sm:$0xf]
    %v1774 = vld [vmem:[#allocation13 + $0x100] sm:$0xf]
    %v1775 = vld [vmem:[#allocation13 + $0x104] sm:$0xf]
    %v1776 = vld [vmem:[#allocation13 + $0x108] sm:$0xf]
    %v1777 = vld [vmem:[#allocation13 + $0x10c] sm:$0xf]
    %v1778 = vld [vmem:[#allocation13 + $0x110] sm:$0xf]
    %v1779 = vld [vmem:[#allocation13 + $0x114] sm:$0xf]
    %v1780 = vld [vmem:[#allocation13 + $0x118] sm:$0xf]
    %v1781 = vld [vmem:[#allocation13 + $0x11c] sm:$0xf]
    %v1782 = vld [vmem:[#allocation13 + $0x120] sm:$0xf]
    %v1783 = vld [vmem:[#allocation13 + $0x124] sm:$0xf]
    %v1784 = vld [vmem:[#allocation13 + $0x128] sm:$0xf]
    %v1785 = vld [vmem:[#allocation13 + $0x12c] sm:$0xf]
    %v1786 = vld [vmem:[#allocation13 + $0x130] sm:$0xf]
    %v1787 = vld [vmem:[#allocation13 + $0x134] sm:$0xf]
    %v1788 = vld [vmem:[#allocation13 + $0x138] sm:$0xf]
    %v1789 = vld [vmem:[#allocation13 + $0x13c] sm:$0xf]
    %v1790 = vld [vmem:[#allocation13 + $0x140] sm:$0xf]
    %v1791 = vld [vmem:[#allocation13 + $0x144] sm:$0xf]
    %v1792 = vld [vmem:[#allocation13 + $0x148] sm:$0xf]
    %v1793 = vld [vmem:[#allocation13 + $0x14c] sm:$0xf]
    %v1794 = vld [vmem:[#allocation13 + $0x150] sm:$0xf]
    %v1795 = vld [vmem:[#allocation13 + $0x154] sm:$0xf]
    %v1796 = vld [vmem:[#allocation13 + $0x158] sm:$0xf]
    %v1797 = vld [vmem:[#allocation13 + $0x15c] sm:$0xf]
    %v1798 = vld [vmem:[#allocation13 + $0x160] sm:$0xf]
    %v1799 = vld [vmem:[#allocation13 + $0x164] sm:$0xf]
    %v1800 = vld [vmem:[#allocation13 + $0x168] sm:$0xf]
    %v1801 = vld [vmem:[#allocation13 + $0x16c] sm:$0xf]
    %v1802 = vld [vmem:[#allocation13 + $0x170] sm:$0xf]
    %v1803 = vld [vmem:[#allocation13 + $0x174] sm:$0xf]
    %v1804 = vld [vmem:[#allocation13 + $0x178] sm:$0xf]
    %v1805 = vld [vmem:[#allocation13 + $0x17c] sm:$0xf]
    %v1806 = vld [vmem:[#allocation13 + $0x180] sm:$0xf]
    %v1807 = vld [vmem:[#allocation13 + $0x184] sm:$0xf]
    %v1808 = vld [vmem:[#allocation13 + $0x188] sm:$0xf]
    %v1809 = vld [vmem:[#allocation13 + $0x18c] sm:$0xf]
    %v1810 = vld [vmem:[#allocation13 + $0x190] sm:$0xf]
    %v1811 = vld [vmem:[#allocation13 + $0x194] sm:$0xf]
    %v1812 = vld [vmem:[#allocation13 + $0x198] sm:$0xf]
    %v1813 = vld [vmem:[#allocation13 + $0x19c] sm:$0xf]
    %v1814 = vld [vmem:[#allocation13 + $0x1a0] sm:$0xf]
    %v1815 = vld [vmem:[#allocation13 + $0x1a4] sm:$0xf]
    %v1816 = vld [vmem:[#allocation13 + $0x1a8] sm:$0xf]
    %v1817 = vld [vmem:[#allocation13 + $0x1ac] sm:$0xf]
    %v1818 = vld [vmem:[#allocation13 + $0x1b0] sm:$0xf]
    %v1819 = vld [vmem:[#allocation13 + $0x1b4] sm:$0xf]
    %v1820 = vld [vmem:[#allocation13 + $0x1b8] sm:$0xf]
    %v1821 = vld [vmem:[#allocation13 + $0x1bc] sm:$0xf]
    %v1822 = vld [vmem:[#allocation13 + $0x1c0] sm:$0xf]
    %v1823 = vld [vmem:[#allocation13 + $0x1c4] sm:$0xf]
    %v1824 = vld [vmem:[#allocation13 + $0x1c8] sm:$0xf]
    %v1825 = vld [vmem:[#allocation13 + $0x1cc] sm:$0xf]
    %v1826 = vld [vmem:[#allocation13 + $0x1d0] sm:$0xf]
    %v1827 = vld [vmem:[#allocation13 + $0x1d4] sm:$0xf]
    %v1828 = vld [vmem:[#allocation13 + $0x1d8] sm:$0xf]
    %v1829 = vld [vmem:[#allocation13 + $0x1dc] sm:$0xf]
    %v1830 = vld [vmem:[#allocation13 + $0x1e0] sm:$0xf]
    %v1831 = vld [vmem:[#allocation13 + $0x1e4] sm:$0xf]
    %v1832 = vld [vmem:[#allocation13 + $0x1e8] sm:$0xf]
    %v1833 = vld [vmem:[#allocation13 + $0x1ec] sm:$0xf]
    %v1834 = vld [vmem:[#allocation13 + $0x1f0] sm:$0xf]
    %v1835 = vld [vmem:[#allocation13 + $0x1f4] sm:$0xf]
    %v1836 = vld [vmem:[#allocation13 + $0x1f8] sm:$0xf]
    %v1837 = vld [vmem:[#allocation13 + $0x1fc] sm:$0xf]
    %v1838 = vld [vmem:[#allocation13 + $0x200] sm:$0xf]
    %v1839 = vld [vmem:[#allocation13 + $0x204] sm:$0xf]
    %v1840 = vld [vmem:[#allocation13 + $0x208] sm:$0xf]
    %v1841 = vld [vmem:[#allocation13 + $0x20c] sm:$0xf]
    %v1842 = vld [vmem:[#allocation13 + $0x210] sm:$0xf]
    %v1843 = vld [vmem:[#allocation13 + $0x214] sm:$0xf]
    %v1844 = vld [vmem:[#allocation13 + $0x218] sm:$0xf]
    %v1845 = vld [vmem:[#allocation13 + $0x21c] sm:$0xf]
    %v1846 = vld [vmem:[#allocation13 + $0x220] sm:$0xf]
    %v1847 = vld [vmem:[#allocation13 + $0x224] sm:$0xf]
    %v1848 = vld [vmem:[#allocation13 + $0x228] sm:$0xf]
    %v1849 = vld [vmem:[#allocation13 + $0x22c] sm:$0xf]
    %v1850 = vld [vmem:[#allocation13 + $0x230] sm:$0xf]
    %v1851 = vld [vmem:[#allocation13 + $0x234] sm:$0xf]
    %v1852 = vld [vmem:[#allocation13 + $0x238] sm:$0xf]
    %v1853 = vld [vmem:[#allocation13 + $0x23c] sm:$0xf]
    %v1854 = vld [vmem:[#allocation13 + $0x240] sm:$0xf]
    %v1855 = vld [vmem:[#allocation13 + $0x244] sm:$0xf]
    %v1856 = vld [vmem:[#allocation13 + $0x248] sm:$0xf]
    %v1857 = vld [vmem:[#allocation13 + $0x24c] sm:$0xf]
    %v1858 = vld [vmem:[#allocation13 + $0x250] sm:$0xf]
    %v1859 = vld [vmem:[#allocation13 + $0x254] sm:$0xf]
    %v1860 = vld [vmem:[#allocation13 + $0x258] sm:$0xf]
    %v1861 = vld [vmem:[#allocation13 + $0x25c] sm:$0xf]
    %v1862 = vld [vmem:[#allocation13 + $0x260] sm:$0xf]
    %v1863 = vld [vmem:[#allocation13 + $0x264] sm:$0xf]
    %v1864 = vld [vmem:[#allocation13 + $0x268] sm:$0xf]
    %v1865 = vld [vmem:[#allocation13 + $0x26c] sm:$0xf]
    %v1866 = vld [vmem:[#allocation13 + $0x270] sm:$0xf]
    %v1867 = vld [vmem:[#allocation13 + $0x274] sm:$0xf]
    %v1868 = vld [vmem:[#allocation13 + $0x278] sm:$0xf]
    %v1869 = vld [vmem:[#allocation13 + $0x27c] sm:$0xf]
    %v1870 = vld [vmem:[#allocation13 + $0x280] sm:$0xf]
    %v1871 = vld [vmem:[#allocation13 + $0x284] sm:$0xf]
    %v1872 = vld [vmem:[#allocation13 + $0x288] sm:$0xf]
    %v1873 = vld [vmem:[#allocation13 + $0x28c] sm:$0xf]
    %v1874 = vld [vmem:[#allocation13 + $0x290] sm:$0xf]
    %v1875 = vld [vmem:[#allocation13 + $0x294] sm:$0xf]
    %v1876 = vld [vmem:[#allocation13 + $0x298] sm:$0xf]
    %v1877 = vld [vmem:[#allocation13 + $0x29c] sm:$0xf]
    %v1878 = vld [vmem:[#allocation13 + $0x2a0] sm:$0xf]
    %v1879 = vld [vmem:[#allocation13 + $0x2a4] sm:$0xf]
    %v1880 = vld [vmem:[#allocation13 + $0x2a8] sm:$0xf]
    %v1881 = vld [vmem:[#allocation13 + $0x2ac] sm:$0xf]
    %v1882 = vld [vmem:[#allocation13 + $0x2b0] sm:$0xf]
    %v1883 = vld [vmem:[#allocation13 + $0x2b4] sm:$0xf]
    %v1884 = vld [vmem:[#allocation13 + $0x2b8] sm:$0xf]
    %v1885 = vld [vmem:[#allocation13 + $0x2bc] sm:$0xf]
    %v1886 = vld [vmem:[#allocation13 + $0x2c0] sm:$0xf]
    %v1887 = vld [vmem:[#allocation13 + $0x2c4] sm:$0xf]
    %v1888 = vld [vmem:[#allocation13 + $0x2c8] sm:$0xf]
    %v1889 = vld [vmem:[#allocation13 + $0x2cc] sm:$0xf]
    %v1890 = vld [vmem:[#allocation13 + $0x2d0] sm:$0xf]
    %v1891 = vld [vmem:[#allocation13 + $0x2d4] sm:$0xf]
    %v1892 = vld [vmem:[#allocation13 + $0x2d8] sm:$0xf]
    %v1893 = vld [vmem:[#allocation13 + $0x2dc] sm:$0xf]
    %v1894 = vld [vmem:[#allocation13 + $0x2e0] sm:$0xf]
    %v1895 = vld [vmem:[#allocation13 + $0x2e4] sm:$0xf]
    %v1896 = vld [vmem:[#allocation13 + $0x2e8] sm:$0xf]
    %v1897 = vld [vmem:[#allocation13 + $0x2ec] sm:$0xf]
    %v1898 = vld [vmem:[#allocation13 + $0x2f0] sm:$0xf]
    %v1899 = vld [vmem:[#allocation13 + $0x2f4] sm:$0xf]
    %v1900 = vld [vmem:[#allocation13 + $0x2f8] sm:$0xf]
    %v1901 = vld [vmem:[#allocation13 + $0x2fc] sm:$0xf]
    %v1902 = vld [vmem:[#allocation13 + $0x300] sm:$0xf]
    %v1903 = vld [vmem:[#allocation13 + $0x304] sm:$0xf]
    %v1904 = vld [vmem:[#allocation13 + $0x308] sm:$0xf]
    %v1905 = vld [vmem:[#allocation13 + $0x30c] sm:$0xf]
    %v1906 = vld [vmem:[#allocation13 + $0x310] sm:$0xf]
    %v1907 = vld [vmem:[#allocation13 + $0x314] sm:$0xf]
    %v1908 = vld [vmem:[#allocation13 + $0x318] sm:$0xf]
    %v1909 = vld [vmem:[#allocation13 + $0x31c] sm:$0xf]
    %v1910 = vld [vmem:[#allocation13 + $0x320] sm:$0xf]
    %v1911 = vld [vmem:[#allocation13 + $0x324] sm:$0xf]
    %v1912 = vld [vmem:[#allocation13 + $0x328] sm:$0xf]
    %v1913 = vld [vmem:[#allocation13 + $0x32c] sm:$0xf]
    %v1914 = vld [vmem:[#allocation13 + $0x330] sm:$0xf]
    %v1915 = vld [vmem:[#allocation13 + $0x334] sm:$0xf]
    %v1916 = vld [vmem:[#allocation13 + $0x338] sm:$0xf]
    %v1917 = vld [vmem:[#allocation13 + $0x33c] sm:$0xf]
    %v1918 = vld [vmem:[#allocation13 + $0x340] sm:$0xf]
    %v1919 = vld [vmem:[#allocation13 + $0x344] sm:$0xf]
    %v1920 = vld [vmem:[#allocation13 + $0x348] sm:$0xf]
    %v1921 = vld [vmem:[#allocation13 + $0x34c] sm:$0xf]
    %v1922 = vld [vmem:[#allocation13 + $0x350] sm:$0xf]
    %v1923 = vld [vmem:[#allocation13 + $0x354] sm:$0xf]
    %v1924 = vld [vmem:[#allocation13 + $0x358] sm:$0xf]
    %v1925 = vld [vmem:[#allocation13 + $0x35c] sm:$0xf]
    %v1926 = vld [vmem:[#allocation13 + $0x360] sm:$0xf]
    %v1927 = vld [vmem:[#allocation13 + $0x364] sm:$0xf]
    %v1928 = vld [vmem:[#allocation13 + $0x368] sm:$0xf]
    %v1929 = vld [vmem:[#allocation13 + $0x36c] sm:$0xf]
    %v1930 = vld [vmem:[#allocation13 + $0x370] sm:$0xf]
    %v1931 = vld [vmem:[#allocation13 + $0x374] sm:$0xf]
    %v1932 = vld [vmem:[#allocation13 + $0x378] sm:$0xf]
    %v1933 = vld [vmem:[#allocation13 + $0x37c] sm:$0xf]
    %v1934 = vld [vmem:[#allocation13 + $0x380] sm:$0xf]
    %v1935 = vld [vmem:[#allocation13 + $0x384] sm:$0xf]
    %v1936 = vld [vmem:[#allocation13 + $0x388] sm:$0xf]
    %v1937 = vld [vmem:[#allocation13 + $0x38c] sm:$0xf]
    %v1938 = vld [vmem:[#allocation13 + $0x390] sm:$0xf]
    %v1939 = vld [vmem:[#allocation13 + $0x394] sm:$0xf]
    %v1940 = vld [vmem:[#allocation13 + $0x398] sm:$0xf]
    %v1941 = vld [vmem:[#allocation13 + $0x39c] sm:$0xf]
    %v1942 = vld [vmem:[#allocation13 + $0x3a0] sm:$0xf]
    %v1943 = vld [vmem:[#allocation13 + $0x3a4] sm:$0xf]
    %v1944 = vld [vmem:[#allocation13 + $0x3a8] sm:$0xf]
    %v1945 = vld [vmem:[#allocation13 + $0x3ac] sm:$0xf]
    %v1946 = vld [vmem:[#allocation13 + $0x3b0] sm:$0xf]
    %v1947 = vld [vmem:[#allocation13 + $0x3b4] sm:$0xf]
    %v1948 = vld [vmem:[#allocation13 + $0x3b8] sm:$0xf]
    %v1949 = vld [vmem:[#allocation13 + $0x3bc] sm:$0xf]
    %v1950 = vld [vmem:[#allocation13 + $0x3c0] sm:$0xf]
    %v1951 = vld [vmem:[#allocation13 + $0x3c4] sm:$0xf]
    %v1952 = vld [vmem:[#allocation13 + $0x3c8] sm:$0xf]
    %v1953 = vld [vmem:[#allocation13 + $0x3cc] sm:$0xf]
    %v1954 = vld [vmem:[#allocation13 + $0x3d0] sm:$0xf]
    %v1955 = vld [vmem:[#allocation13 + $0x3d4] sm:$0xf]
    %v1956 = vld [vmem:[#allocation13 + $0x3d8] sm:$0xf]
    %v1957 = vld [vmem:[#allocation13 + $0x3dc] sm:$0xf]
    %v1958 = vld [vmem:[#allocation13 + $0x3e0] sm:$0xf]
    %v1959 = vld [vmem:[#allocation13 + $0x3e4] sm:$0xf]
    %v1960 = vld [vmem:[#allocation13 + $0x3e8] sm:$0xf]
    %v1961 = vld [vmem:[#allocation13 + $0x3ec] sm:$0xf]
    %v1962 = vld [vmem:[#allocation13 + $0x3f0] sm:$0xf]
    %v1963 = vld [vmem:[#allocation13 + $0x3f4] sm:$0xf]
    %v1964 = vld [vmem:[#allocation13 + $0x3f8] sm:$0xf]
    %v1965 = vld [vmem:[#allocation13 + $0x3fc] sm:$0xf]
    %v1966 = vld [vmem:[%s10] sm:$0x1]
    %v1968 = vperm.slane %v1966, 0
    %v2226 = vunpack.c.l.b16 %v1710
    %v2227 = vunpack.c.l.b16 %v1711
    %v2228 = vunpack.c.l.b16 %v1712
    %v2229 = vunpack.c.l.b16 %v1713
    %v2230 = vunpack.c.l.b16 %v1714
    %v2231 = vunpack.c.l.b16 %v1715
    %v2232 = vunpack.c.l.b16 %v1716
    %v2233 = vunpack.c.l.b16 %v1717
    %v2234 = vunpack.c.l.b16 %v1718
    %v2235 = vunpack.c.l.b16 %v1719
    %v2236 = vunpack.c.l.b16 %v1720
    %v2237 = vunpack.c.l.b16 %v1721
    %v2238 = vunpack.c.l.b16 %v1722
    %v2239 = vunpack.c.l.b16 %v1723
    %v2240 = vunpack.c.l.b16 %v1724
    %v2241 = vunpack.c.l.b16 %v1725
    %v2242 = vunpack.c.l.b16 %v1726
    %v2243 = vunpack.c.l.b16 %v1727
    %v2244 = vunpack.c.l.b16 %v1728
    %v2245 = vunpack.c.l.b16 %v1729
    %v2246 = vunpack.c.l.b16 %v1730
    %v2247 = vunpack.c.l.b16 %v1731
    %v2248 = vunpack.c.l.b16 %v1732
    %v2249 = vunpack.c.l.b16 %v1733
    %v2250 = vunpack.c.l.b16 %v1734
    %v2251 = vunpack.c.l.b16 %v1735
    %v2252 = vunpack.c.l.b16 %v1736
    %v2253 = vunpack.c.l.b16 %v1737
    %v2254 = vunpack.c.l.b16 %v1738
    %v2255 = vunpack.c.l.b16 %v1739
    %v2256 = vunpack.c.l.b16 %v1740
    %v2257 = vunpack.c.l.b16 %v1741
    %v2258 = vunpack.c.l.b16 %v1742
    %v2259 = vunpack.c.l.b16 %v1743
    %v2260 = vunpack.c.l.b16 %v1744
    %v2261 = vunpack.c.l.b16 %v1745
    %v2262 = vunpack.c.l.b16 %v1746
    %v2263 = vunpack.c.l.b16 %v1747
    %v2264 = vunpack.c.l.b16 %v1748
    %v2265 = vunpack.c.l.b16 %v1749
    %v2266 = vunpack.c.l.b16 %v1750
    %v2267 = vunpack.c.l.b16 %v1751
    %v2268 = vunpack.c.l.b16 %v1752
    %v2269 = vunpack.c.l.b16 %v1753
    %v2270 = vunpack.c.l.b16 %v1754
    %v2271 = vunpack.c.l.b16 %v1755
    %v2272 = vunpack.c.l.b16 %v1756
    %v2273 = vunpack.c.l.b16 %v1757
    %v2274 = vunpack.c.l.b16 %v1758
    %v2275 = vunpack.c.l.b16 %v1759
    %v2276 = vunpack.c.l.b16 %v1760
    %v2277 = vunpack.c.l.b16 %v1761
    %v2278 = vunpack.c.l.b16 %v1762
    %v2279 = vunpack.c.l.b16 %v1763
    %v2280 = vunpack.c.l.b16 %v1764
    %v2281 = vunpack.c.l.b16 %v1765
    %v2282 = vunpack.c.l.b16 %v1766
    %v2283 = vunpack.c.l.b16 %v1767
    %v2284 = vunpack.c.l.b16 %v1768
    %v2285 = vunpack.c.l.b16 %v1769
    %v2286 = vunpack.c.l.b16 %v1770
    %v2287 = vunpack.c.l.b16 %v1771
    %v2288 = vunpack.c.l.b16 %v1772
    %v2289 = vunpack.c.l.b16 %v1773
    %v2290 = vunpack.c.l.b16 %v1774
    %v2291 = vunpack.c.l.b16 %v1775
    %v2292 = vunpack.c.l.b16 %v1776
    %v2293 = vunpack.c.l.b16 %v1777
    %v2294 = vunpack.c.l.b16 %v1778
    %v2295 = vunpack.c.l.b16 %v1779
    %v2296 = vunpack.c.l.b16 %v1780
    %v2297 = vunpack.c.l.b16 %v1781
    %v2298 = vunpack.c.l.b16 %v1782
    %v2299 = vunpack.c.l.b16 %v1783
    %v2300 = vunpack.c.l.b16 %v1784
    %v2301 = vunpack.c.l.b16 %v1785
    %v2302 = vunpack.c.l.b16 %v1786
    %v2303 = vunpack.c.l.b16 %v1787
    %v2304 = vunpack.c.l.b16 %v1788
    %v2305 = vunpack.c.l.b16 %v1789
    %v2306 = vunpack.c.l.b16 %v1790
    %v2307 = vunpack.c.l.b16 %v1791
    %v2308 = vunpack.c.l.b16 %v1792
    %v2309 = vunpack.c.l.b16 %v1793
    %v2310 = vunpack.c.l.b16 %v1794
    %v2311 = vunpack.c.l.b16 %v1795
    %v2312 = vunpack.c.l.b16 %v1796
    %v2313 = vunpack.c.l.b16 %v1797
    %v2314 = vunpack.c.l.b16 %v1798
    %v2315 = vunpack.c.l.b16 %v1799
    %v2316 = vunpack.c.l.b16 %v1800
    %v2317 = vunpack.c.l.b16 %v1801
    %v2318 = vunpack.c.l.b16 %v1802
    %v2319 = vunpack.c.l.b16 %v1803
    %v2320 = vunpack.c.l.b16 %v1804
    %v2321 = vunpack.c.l.b16 %v1805
    %v2322 = vunpack.c.l.b16 %v1806
    %v2323 = vunpack.c.l.b16 %v1807
    %v2324 = vunpack.c.l.b16 %v1808
    %v2325 = vunpack.c.l.b16 %v1809
    %v2326 = vunpack.c.l.b16 %v1810
    %v2327 = vunpack.c.l.b16 %v1811
    %v2328 = vunpack.c.l.b16 %v1812
    %v2329 = vunpack.c.l.b16 %v1813
    %v2330 = vunpack.c.l.b16 %v1814
    %v2331 = vunpack.c.l.b16 %v1815
    %v2332 = vunpack.c.l.b16 %v1816
    %v2333 = vunpack.c.l.b16 %v1817
    %v2334 = vunpack.c.l.b16 %v1818
    %v2335 = vunpack.c.l.b16 %v1819
    %v2336 = vunpack.c.l.b16 %v1820
    %v2337 = vunpack.c.l.b16 %v1821
    %v2338 = vunpack.c.l.b16 %v1822
    %v2339 = vunpack.c.l.b16 %v1823
    %v2340 = vunpack.c.l.b16 %v1824
    %v2341 = vunpack.c.l.b16 %v1825
    %v2342 = vunpack.c.l.b16 %v1826
    %v2343 = vunpack.c.l.b16 %v1827
    %v2344 = vunpack.c.l.b16 %v1828
    %v2345 = vunpack.c.l.b16 %v1829
    %v2346 = vunpack.c.l.b16 %v1830
    %v2347 = vunpack.c.l.b16 %v1831
    %v2348 = vunpack.c.l.b16 %v1832
    %v2349 = vunpack.c.l.b16 %v1833
    %v2350 = vunpack.c.l.b16 %v1834
    %v2351 = vunpack.c.l.b16 %v1835
    %v2352 = vunpack.c.l.b16 %v1836
    %v2353 = vunpack.c.l.b16 %v1837
    %v2354 = vunpack.c.l.b16 %v1838
    %v2355 = vunpack.c.l.b16 %v1839
    %v2356 = vunpack.c.l.b16 %v1840
    %v2357 = vunpack.c.l.b16 %v1841
    %v2358 = vunpack.c.l.b16 %v1842
    %v2359 = vunpack.c.l.b16 %v1843
    %v2360 = vunpack.c.l.b16 %v1844
    %v2361 = vunpack.c.l.b16 %v1845
    %v2362 = vunpack.c.l.b16 %v1846
    %v2363 = vunpack.c.l.b16 %v1847
    %v2364 = vunpack.c.l.b16 %v1848
    %v2365 = vunpack.c.l.b16 %v1849
    %v2366 = vunpack.c.l.b16 %v1850
    %v2367 = vunpack.c.l.b16 %v1851
    %v2368 = vunpack.c.l.b16 %v1852
    %v2369 = vunpack.c.l.b16 %v1853
    %v2370 = vunpack.c.l.b16 %v1854
    %v2371 = vunpack.c.l.b16 %v1855
    %v2372 = vunpack.c.l.b16 %v1856
    %v2373 = vunpack.c.l.b16 %v1857
    %v2374 = vunpack.c.l.b16 %v1858
    %v2375 = vunpack.c.l.b16 %v1859
    %v2376 = vunpack.c.l.b16 %v1860
    %v2377 = vunpack.c.l.b16 %v1861
    %v2378 = vunpack.c.l.b16 %v1862
    %v2379 = vunpack.c.l.b16 %v1863
    %v2380 = vunpack.c.l.b16 %v1864
    %v2381 = vunpack.c.l.b16 %v1865
    %v2382 = vunpack.c.l.b16 %v1866
    %v2383 = vunpack.c.l.b16 %v1867
    %v2384 = vunpack.c.l.b16 %v1868
    %v2385 = vunpack.c.l.b16 %v1869
    %v2386 = vunpack.c.l.b16 %v1870
    %v2387 = vunpack.c.l.b16 %v1871
    %v2388 = vunpack.c.l.b16 %v1872
    %v2389 = vunpack.c.l.b16 %v1873
    %v2390 = vunpack.c.l.b16 %v1874
    %v2391 = vunpack.c.l.b16 %v1875
    %v2392 = vunpack.c.l.b16 %v1876
    %v2393 = vunpack.c.l.b16 %v1877
    %v2394 = vunpack.c.l.b16 %v1878
    %v2395 = vunpack.c.l.b16 %v1879
    %v2396 = vunpack.c.l.b16 %v1880
    %v2397 = vunpack.c.l.b16 %v1881
    %v2398 = vunpack.c.l.b16 %v1882
    %v2399 = vunpack.c.l.b16 %v1883
    %v2400 = vunpack.c.l.b16 %v1884
    %v2401 = vunpack.c.l.b16 %v1885
    %v2402 = vunpack.c.l.b16 %v1886
    %v2403 = vunpack.c.l.b16 %v1887
    %v2404 = vunpack.c.l.b16 %v1888
    %v2405 = vunpack.c.l.b16 %v1889
    %v2406 = vunpack.c.l.b16 %v1890
    %v2407 = vunpack.c.l.b16 %v1891
    %v2408 = vunpack.c.l.b16 %v1892
    %v2409 = vunpack.c.l.b16 %v1893
    %v2410 = vunpack.c.l.b16 %v1894
    %v2411 = vunpack.c.l.b16 %v1895
    %v2412 = vunpack.c.l.b16 %v1896
    %v2413 = vunpack.c.l.b16 %v1897
    %v2414 = vunpack.c.l.b16 %v1898
    %v2415 = vunpack.c.l.b16 %v1899
    %v2416 = vunpack.c.l.b16 %v1900
    %v2417 = vunpack.c.l.b16 %v1901
    %v2418 = vunpack.c.l.b16 %v1902
    %v2419 = vunpack.c.l.b16 %v1903
    %v2420 = vunpack.c.l.b16 %v1904
    %v2421 = vunpack.c.l.b16 %v1905
    %v2422 = vunpack.c.l.b16 %v1906
    %v2423 = vunpack.c.l.b16 %v1907
    %v2424 = vunpack.c.l.b16 %v1908
    %v2425 = vunpack.c.l.b16 %v1909
    %v2426 = vunpack.c.l.b16 %v1910
    %v2427 = vunpack.c.l.b16 %v1911
    %v2428 = vunpack.c.l.b16 %v1912
    %v2429 = vunpack.c.l.b16 %v1913
    %v2430 = vunpack.c.l.b16 %v1914
    %v2431 = vunpack.c.l.b16 %v1915
    %v2432 = vunpack.c.l.b16 %v1916
    %v2433 = vunpack.c.l.b16 %v1917
    %v2434 = vunpack.c.l.b16 %v1918
    %v2435 = vunpack.c.l.b16 %v1919
    %v2436 = vunpack.c.l.b16 %v1920
    %v2437 = vunpack.c.l.b16 %v1921
    %v2438 = vunpack.c.l.b16 %v1922
    %v2439 = vunpack.c.l.b16 %v1923
    %v2440 = vunpack.c.l.b16 %v1924
    %v2441 = vunpack.c.l.b16 %v1925
    %v2442 = vunpack.c.l.b16 %v1926
    %v2443 = vunpack.c.l.b16 %v1927
    %v2444 = vunpack.c.l.b16 %v1928
    %v2445 = vunpack.c.l.b16 %v1929
    %v2446 = vunpack.c.l.b16 %v1930
    %v2447 = vunpack.c.l.b16 %v1931
    %v2448 = vunpack.c.l.b16 %v1932
    %v2449 = vunpack.c.l.b16 %v1933
    %v2450 = vunpack.c.l.b16 %v1934
    %v2451 = vunpack.c.l.b16 %v1935
    %v2452 = vunpack.c.l.b16 %v1936
    %v2453 = vunpack.c.l.b16 %v1937
    %v2454 = vunpack.c.l.b16 %v1938
    %v2455 = vunpack.c.l.b16 %v1939
    %v2456 = vunpack.c.l.b16 %v1940
    %v2457 = vunpack.c.l.b16 %v1941
    %v2458 = vunpack.c.l.b16 %v1942
    %v2459 = vunpack.c.l.b16 %v1943
    %v2460 = vunpack.c.l.b16 %v1944
    %v2461 = vunpack.c.l.b16 %v1945
    %v2462 = vunpack.c.l.b16 %v1946
    %v2463 = vunpack.c.l.b16 %v1947
    %v2464 = vunpack.c.l.b16 %v1948
    %v2465 = vunpack.c.l.b16 %v1949
    %v2466 = vunpack.c.l.b16 %v1950
    %v2467 = vunpack.c.l.b16 %v1951
    %v2468 = vunpack.c.l.b16 %v1952
    %v2469 = vunpack.c.l.b16 %v1953
    %v2470 = vunpack.c.l.b16 %v1954
    %v2471 = vunpack.c.l.b16 %v1955
    %v2472 = vunpack.c.l.b16 %v1956
    %v2473 = vunpack.c.l.b16 %v1957
    %v2474 = vunpack.c.l.b16 %v1958
    %v2475 = vunpack.c.l.b16 %v1959
    %v2476 = vunpack.c.l.b16 %v1960
    %v2477 = vunpack.c.l.b16 %v1961
    %v2478 = vunpack.c.l.b16 %v1962
    %v2479 = vunpack.c.l.b16 %v1963
    %v2480 = vunpack.c.l.b16 %v1964
    %v2481 = vunpack.c.l.b16 %v1965
    %v2482 = vpack.c.b16 %v2227, %v2226
    %v2483 = vpack.c.b16 %v2229, %v2228
    %v2484 = vpack.c.b16 %v2231, %v2230
    %v2485 = vpack.c.b16 %v2233, %v2232
    %v2486 = vpack.c.b16 %v2235, %v2234
    %v2487 = vpack.c.b16 %v2237, %v2236
    %v2488 = vpack.c.b16 %v2239, %v2238
    %v2489 = vpack.c.b16 %v2241, %v2240
    %v2490 = vpack.c.b16 %v2243, %v2242
    %v2491 = vpack.c.b16 %v2245, %v2244
    %v2492 = vpack.c.b16 %v2247, %v2246
    %v2493 = vpack.c.b16 %v2249, %v2248
    %v2494 = vpack.c.b16 %v2251, %v2250
    %v2495 = vpack.c.b16 %v2253, %v2252
    %v2496 = vpack.c.b16 %v2255, %v2254
    %v2497 = vpack.c.b16 %v2257, %v2256
    %v2498 = vpack.c.b16 %v2259, %v2258
    %v2499 = vpack.c.b16 %v2261, %v2260
    %v2500 = vpack.c.b16 %v2263, %v2262
    %v2501 = vpack.c.b16 %v2265, %v2264
    %v2502 = vpack.c.b16 %v2267, %v2266
    %v2503 = vpack.c.b16 %v2269, %v2268
    %v2504 = vpack.c.b16 %v2271, %v2270
    %v2505 = vpack.c.b16 %v2273, %v2272
    %v2506 = vpack.c.b16 %v2275, %v2274
    %v2507 = vpack.c.b16 %v2277, %v2276
    %v2508 = vpack.c.b16 %v2279, %v2278
    %v2509 = vpack.c.b16 %v2281, %v2280
    %v2510 = vpack.c.b16 %v2283, %v2282
    %v2511 = vpack.c.b16 %v2285, %v2284
    %v2512 = vpack.c.b16 %v2287, %v2286
    %v2513 = vpack.c.b16 %v2289, %v2288
    %v2514 = vpack.c.b16 %v2291, %v2290
    %v2515 = vpack.c.b16 %v2293, %v2292
    %v2516 = vpack.c.b16 %v2295, %v2294
    %v2517 = vpack.c.b16 %v2297, %v2296
    %v2518 = vpack.c.b16 %v2299, %v2298
    %v2519 = vpack.c.b16 %v2301, %v2300
    %v2520 = vpack.c.b16 %v2303, %v2302
    %v2521 = vpack.c.b16 %v2305, %v2304
    %v2522 = vpack.c.b16 %v2307, %v2306
    %v2523 = vpack.c.b16 %v2309, %v2308
    %v2524 = vpack.c.b16 %v2311, %v2310
    %v2525 = vpack.c.b16 %v2313, %v2312
    %v2526 = vpack.c.b16 %v2315, %v2314
    %v2527 = vpack.c.b16 %v2317, %v2316
    %v2528 = vpack.c.b16 %v2319, %v2318
    %v2529 = vpack.c.b16 %v2321, %v2320
    %v2530 = vpack.c.b16 %v2323, %v2322
    %v2531 = vpack.c.b16 %v2325, %v2324
    %v2532 = vpack.c.b16 %v2327, %v2326
    %v2533 = vpack.c.b16 %v2329, %v2328
    %v2534 = vpack.c.b16 %v2331, %v2330
    %v2535 = vpack.c.b16 %v2333, %v2332
    %v2536 = vpack.c.b16 %v2335, %v2334
    %v2537 = vpack.c.b16 %v2337, %v2336
    %v2538 = vpack.c.b16 %v2339, %v2338
    %v2539 = vpack.c.b16 %v2341, %v2340
    %v2540 = vpack.c.b16 %v2343, %v2342
    %v2541 = vpack.c.b16 %v2345, %v2344
    %v2542 = vpack.c.b16 %v2347, %v2346
    %v2543 = vpack.c.b16 %v2349, %v2348
    %v2544 = vpack.c.b16 %v2351, %v2350
    %v2545 = vpack.c.b16 %v2353, %v2352
    %v2546 = vpack.c.b16 %v2355, %v2354
    %v2547 = vpack.c.b16 %v2357, %v2356
    %v2548 = vpack.c.b16 %v2359, %v2358
    %v2549 = vpack.c.b16 %v2361, %v2360
    %v2550 = vpack.c.b16 %v2363, %v2362
    %v2551 = vpack.c.b16 %v2365, %v2364
    %v2552 = vpack.c.b16 %v2367, %v2366
    %v2553 = vpack.c.b16 %v2369, %v2368
    %v2554 = vpack.c.b16 %v2371, %v2370
    %v2555 = vpack.c.b16 %v2373, %v2372
    %v2556 = vpack.c.b16 %v2375, %v2374
    %v2557 = vpack.c.b16 %v2377, %v2376
    %v2558 = vpack.c.b16 %v2379, %v2378
    %v2559 = vpack.c.b16 %v2381, %v2380
    %v2560 = vpack.c.b16 %v2383, %v2382
    %v2561 = vpack.c.b16 %v2385, %v2384
    %v2562 = vpack.c.b16 %v2387, %v2386
    %v2563 = vpack.c.b16 %v2389, %v2388
    %v2564 = vpack.c.b16 %v2391, %v2390
    %v2565 = vpack.c.b16 %v2393, %v2392
    %v2566 = vpack.c.b16 %v2395, %v2394
    %v2567 = vpack.c.b16 %v2397, %v2396
    %v2568 = vpack.c.b16 %v2399, %v2398
    %v2569 = vpack.c.b16 %v2401, %v2400
    %v2570 = vpack.c.b16 %v2403, %v2402
    %v2571 = vpack.c.b16 %v2405, %v2404
    %v2572 = vpack.c.b16 %v2407, %v2406
    %v2573 = vpack.c.b16 %v2409, %v2408
    %v2574 = vpack.c.b16 %v2411, %v2410
    %v2575 = vpack.c.b16 %v2413, %v2412
    %v2576 = vpack.c.b16 %v2415, %v2414
    %v2577 = vpack.c.b16 %v2417, %v2416
    %v2578 = vpack.c.b16 %v2419, %v2418
    %v2579 = vpack.c.b16 %v2421, %v2420
    %v2580 = vpack.c.b16 %v2423, %v2422
    %v2581 = vpack.c.b16 %v2425, %v2424
    %v2582 = vpack.c.b16 %v2427, %v2426
    %v2583 = vpack.c.b16 %v2429, %v2428
    %v2584 = vpack.c.b16 %v2431, %v2430
    %v2585 = vpack.c.b16 %v2433, %v2432
    %v2586 = vpack.c.b16 %v2435, %v2434
    %v2587 = vpack.c.b16 %v2437, %v2436
    %v2588 = vpack.c.b16 %v2439, %v2438
    %v2589 = vpack.c.b16 %v2441, %v2440
    %v2590 = vpack.c.b16 %v2443, %v2442
    %v2591 = vpack.c.b16 %v2445, %v2444
    %v2592 = vpack.c.b16 %v2447, %v2446
    %v2593 = vpack.c.b16 %v2449, %v2448
    %v2594 = vpack.c.b16 %v2451, %v2450
    %v2595 = vpack.c.b16 %v2453, %v2452
    %v2596 = vpack.c.b16 %v2455, %v2454
    %v2597 = vpack.c.b16 %v2457, %v2456
    %v2598 = vpack.c.b16 %v2459, %v2458
    %v2599 = vpack.c.b16 %v2461, %v2460
    %v2600 = vpack.c.b16 %v2463, %v2462
    %v2601 = vpack.c.b16 %v2465, %v2464
    %v2602 = vpack.c.b16 %v2467, %v2466
    %v2603 = vpack.c.b16 %v2469, %v2468
    %v2604 = vpack.c.b16 %v2471, %v2470
    %v2605 = vpack.c.b16 %v2473, %v2472
    %v2606 = vpack.c.b16 %v2475, %v2474
    %v2607 = vpack.c.b16 %v2477, %v2476
    %v2608 = vpack.c.b16 %v2479, %v2478
    %v2609 = vpack.c.b16 %v2481, %v2480
    %2738 = vmatpush.bf16.msra.mxu0 %v2489
    %2739 = vmatpush.bf16.msra.mxu0 %v2488
    %2740 = vmatpush.bf16.msra.mxu0 %v2487
    %2741 = vmatpush.bf16.msra.mxu0 %v2486
    %2742 = vmatpush.bf16.msra.mxu0 %v2485
    %2743 = vmatpush.bf16.msra.mxu0 %v2484
    %2744 = vmatpush.bf16.msra.mxu0 %v2483
    %2745 = vmatpush.bf16.msra.mxu0 %v2482
    %2746 = vmatmul.bf16.gmra.mxu0 %v1694
    %v2747 = vpop.f32.mrf.mxu0
    %v2748 = vadd.f32 %v1968, %v2747
    %v2749 = vpop.f32.mrf.mxu0
    %v2750 = vadd.f32 %v1968, %v2749
    %2751 = vdwg.mxu0
    %2752 = vmatpush.bf16.msra.mxu0 %v2497
    %2753 = vmatpush.bf16.msra.mxu0 %v2496
    %2754 = vmatpush.bf16.msra.mxu0 %v2495
    %2755 = vmatpush.bf16.msra.mxu0 %v2494
    %2756 = vmatpush.bf16.msra.mxu0 %v2493
    %2757 = vmatpush.bf16.msra.mxu0 %v2492
    %2758 = vmatpush.bf16.msra.mxu0 %v2491
    %2759 = vmatpush.bf16.msra.mxu0 %v2490
    %2760 = vmatmul.bf16.gmra.mxu0 %v1695
    %v2761 = vpop.f32.mrf.mxu0
    %v2762 = vadd.f32 %v2748, %v2761
    %v2763 = vpop.f32.mrf.mxu0
    %v2764 = vadd.f32 %v2750, %v2763
    %2765 = vdwg.mxu0
    %2766 = vmatpush.bf16.msra.mxu0 %v2505
    %2767 = vmatpush.bf16.msra.mxu0 %v2504
    %2768 = vmatpush.bf16.msra.mxu0 %v2503
    %2769 = vmatpush.bf16.msra.mxu0 %v2502
    %2770 = vmatpush.bf16.msra.mxu0 %v2501
    %2771 = vmatpush.bf16.msra.mxu0 %v2500
    %2772 = vmatpush.bf16.msra.mxu0 %v2499
    %2773 = vmatpush.bf16.msra.mxu0 %v2498
    %2774 = vmatmul.bf16.gmra.mxu0 %v1696
    %v2775 = vpop.f32.mrf.mxu0
    %v2776 = vadd.f32 %v2762, %v2775
    %v2777 = vpop.f32.mrf.mxu0
    %v2778 = vadd.f32 %v2764, %v2777
    %2779 = vdwg.mxu0
    %2780 = vmatpush.bf16.msra.mxu0 %v2513
    %2781 = vmatpush.bf16.msra.mxu0 %v2512
    %2782 = vmatpush.bf16.msra.mxu0 %v2511
    %2783 = vmatpush.bf16.msra.mxu0 %v2510
    %2784 = vmatpush.bf16.msra.mxu0 %v2509
    %2785 = vmatpush.bf16.msra.mxu0 %v2508
    %2786 = vmatpush.bf16.msra.mxu0 %v2507
    %2787 = vmatpush.bf16.msra.mxu0 %v2506
    %2788 = vmatmul.bf16.gmra.mxu0 %v1697
    %v2789 = vpop.f32.mrf.mxu0
    %v2790 = vadd.f32 %v2776, %v2789
    %v2791 = vpop.f32.mrf.mxu0
    %v2792 = vadd.f32 %v2778, %v2791
    %2793 = vdwg.mxu0
    %2794 = vmatpush.bf16.msra.mxu0 %v2521
    %2795 = vmatpush.bf16.msra.mxu0 %v2520
    %2796 = vmatpush.bf16.msra.mxu0 %v2519
    %2797 = vmatpush.bf16.msra.mxu0 %v2518
    %2798 = vmatpush.bf16.msra.mxu0 %v2517
    %2799 = vmatpush.bf16.msra.mxu0 %v2516
    %2800 = vmatpush.bf16.msra.mxu0 %v2515
    %2801 = vmatpush.bf16.msra.mxu0 %v2514
    %2802 = vmatmul.bf16.gmra.mxu0 %v1698
    %v2803 = vpop.f32.mrf.mxu0
    %v2804 = vadd.f32 %v2790, %v2803
    %v2805 = vpop.f32.mrf.mxu0
    %v2806 = vadd.f32 %v2792, %v2805
    %2807 = vdwg.mxu0
    %2808 = vmatpush.bf16.msra.mxu0 %v2529
    %2809 = vmatpush.bf16.msra.mxu0 %v2528
    %2810 = vmatpush.bf16.msra.mxu0 %v2527
    %2811 = vmatpush.bf16.msra.mxu0 %v2526
    %2812 = vmatpush.bf16.msra.mxu0 %v2525
    %2813 = vmatpush.bf16.msra.mxu0 %v2524
    %2814 = vmatpush.bf16.msra.mxu0 %v2523
    %2815 = vmatpush.bf16.msra.mxu0 %v2522
    %2816 = vmatmul.bf16.gmra.mxu0 %v1699
    %v2817 = vpop.f32.mrf.mxu0
    %v2818 = vadd.f32 %v2804, %v2817
    %v2819 = vpop.f32.mrf.mxu0
    %v2820 = vadd.f32 %v2806, %v2819
    %2821 = vdwg.mxu0
    %2822 = vmatpush.bf16.msra.mxu0 %v2537
    %2823 = vmatpush.bf16.msra.mxu0 %v2536
    %2824 = vmatpush.bf16.msra.mxu0 %v2535
    %2825 = vmatpush.bf16.msra.mxu0 %v2534
    %2826 = vmatpush.bf16.msra.mxu0 %v2533
    %2827 = vmatpush.bf16.msra.mxu0 %v2532
    %2828 = vmatpush.bf16.msra.mxu0 %v2531
    %2829 = vmatpush.bf16.msra.mxu0 %v2530
    %2830 = vmatmul.bf16.gmra.mxu0 %v1700
    %v2831 = vpop.f32.mrf.mxu0
    %v2832 = vadd.f32 %v2818, %v2831
    %v2833 = vpop.f32.mrf.mxu0
    %v2834 = vadd.f32 %v2820, %v2833
    %2835 = vdwg.mxu0
    %2836 = vmatpush.bf16.msra.mxu0 %v2545
    %2837 = vmatpush.bf16.msra.mxu0 %v2544
    %2838 = vmatpush.bf16.msra.mxu0 %v2543
    %2839 = vmatpush.bf16.msra.mxu0 %v2542
    %2840 = vmatpush.bf16.msra.mxu0 %v2541
    %2841 = vmatpush.bf16.msra.mxu0 %v2540
    %2842 = vmatpush.bf16.msra.mxu0 %v2539
    %2843 = vmatpush.bf16.msra.mxu0 %v2538
    %2844 = vmatmul.bf16.gmra.mxu0 %v1701
    %v2845 = vpop.f32.mrf.mxu0
    %v2846 = vadd.f32 %v2832, %v2845
    %v2847 = vpop.f32.mrf.mxu0
    %v2848 = vadd.f32 %v2834, %v2847
    %2849 = vdwg.mxu0
    %2850 = vmatpush.bf16.msra.mxu0 %v2553
    %2851 = vmatpush.bf16.msra.mxu0 %v2552
    %2852 = vmatpush.bf16.msra.mxu0 %v2551
    %2853 = vmatpush.bf16.msra.mxu0 %v2550
    %2854 = vmatpush.bf16.msra.mxu0 %v2549
    %2855 = vmatpush.bf16.msra.mxu0 %v2548
    %2856 = vmatpush.bf16.msra.mxu0 %v2547
    %2857 = vmatpush.bf16.msra.mxu0 %v2546
    %2858 = vmatmul.bf16.gmra.mxu0 %v1702
    %v2859 = vpop.f32.mrf.mxu0
    %v2860 = vadd.f32 %v2846, %v2859
    %v2861 = vpop.f32.mrf.mxu0
    %v2862 = vadd.f32 %v2848, %v2861
    %2863 = vdwg.mxu0
    %2864 = vmatpush.bf16.msra.mxu0 %v2561
    %2865 = vmatpush.bf16.msra.mxu0 %v2560
    %2866 = vmatpush.bf16.msra.mxu0 %v2559
    %2867 = vmatpush.bf16.msra.mxu0 %v2558
    %2868 = vmatpush.bf16.msra.mxu0 %v2557
    %2869 = vmatpush.bf16.msra.mxu0 %v2556
    %2870 = vmatpush.bf16.msra.mxu0 %v2555
    %2871 = vmatpush.bf16.msra.mxu0 %v2554
    %2872 = vmatmul.bf16.gmra.mxu0 %v1703
    %v2873 = vpop.f32.mrf.mxu0
    %v2874 = vadd.f32 %v2860, %v2873
    %v2875 = vpop.f32.mrf.mxu0
    %v2876 = vadd.f32 %v2862, %v2875
    %2877 = vdwg.mxu0
    %2878 = vmatpush.bf16.msra.mxu0 %v2569
    %2879 = vmatpush.bf16.msra.mxu0 %v2568
    %2880 = vmatpush.bf16.msra.mxu0 %v2567
    %2881 = vmatpush.bf16.msra.mxu0 %v2566
    %2882 = vmatpush.bf16.msra.mxu0 %v2565
    %2883 = vmatpush.bf16.msra.mxu0 %v2564
    %2884 = vmatpush.bf16.msra.mxu0 %v2563
    %2885 = vmatpush.bf16.msra.mxu0 %v2562
    %2886 = vmatmul.bf16.gmra.mxu0 %v1704
    %v2887 = vpop.f32.mrf.mxu0
    %v2888 = vadd.f32 %v2874, %v2887
    %v2889 = vpop.f32.mrf.mxu0
    %v2890 = vadd.f32 %v2876, %v2889
    %2891 = vdwg.mxu0
    %2892 = vmatpush.bf16.msra.mxu0 %v2577
    %2893 = vmatpush.bf16.msra.mxu0 %v2576
    %2894 = vmatpush.bf16.msra.mxu0 %v2575
    %2895 = vmatpush.bf16.msra.mxu0 %v2574
    %2896 = vmatpush.bf16.msra.mxu0 %v2573
    %2897 = vmatpush.bf16.msra.mxu0 %v2572
    %2898 = vmatpush.bf16.msra.mxu0 %v2571
    %2899 = vmatpush.bf16.msra.mxu0 %v2570
    %2900 = vmatmul.bf16.gmra.mxu0 %v1705
    %v2901 = vpop.f32.mrf.mxu0
    %v2902 = vadd.f32 %v2888, %v2901
    %v2903 = vpop.f32.mrf.mxu0
    %v2904 = vadd.f32 %v2890, %v2903
    %2905 = vdwg.mxu0
    %2906 = vmatpush.bf16.msra.mxu0 %v2585
    %2907 = vmatpush.bf16.msra.mxu0 %v2584
    %2908 = vmatpush.bf16.msra.mxu0 %v2583
    %2909 = vmatpush.bf16.msra.mxu0 %v2582
    %2910 = vmatpush.bf16.msra.mxu0 %v2581
    %2911 = vmatpush.bf16.msra.mxu0 %v2580
    %2912 = vmatpush.bf16.msra.mxu0 %v2579
    %2913 = vmatpush.bf16.msra.mxu0 %v2578
    %2914 = vmatmul.bf16.gmra.mxu0 %v1706
    %v2915 = vpop.f32.mrf.mxu0
    %v2916 = vadd.f32 %v2902, %v2915
    %v2917 = vpop.f32.mrf.mxu0
    %v2918 = vadd.f32 %v2904, %v2917
    %2919 = vdwg.mxu0
    %2920 = vmatpush.bf16.msra.mxu0 %v2593
    %2921 = vmatpush.bf16.msra.mxu0 %v2592
    %2922 = vmatpush.bf16.msra.mxu0 %v2591
    %2923 = vmatpush.bf16.msra.mxu0 %v2590
    %2924 = vmatpush.bf16.msra.mxu0 %v2589
    %2925 = vmatpush.bf16.msra.mxu0 %v2588
    %2926 = vmatpush.bf16.msra.mxu0 %v2587
    %2927 = vmatpush.bf16.msra.mxu0 %v2586
    %2928 = vmatmul.bf16.gmra.mxu0 %v1707
    %v2929 = vpop.f32.mrf.mxu0
    %v2930 = vadd.f32 %v2916, %v2929
    %v2931 = vpop.f32.mrf.mxu0
    %v2932 = vadd.f32 %v2918, %v2931
    %2933 = vdwg.mxu0
    %2934 = vmatpush.bf16.msra.mxu0 %v2601
    %2935 = vmatpush.bf16.msra.mxu0 %v2600
    %2936 = vmatpush.bf16.msra.mxu0 %v2599
    %2937 = vmatpush.bf16.msra.mxu0 %v2598
    %2938 = vmatpush.bf16.msra.mxu0 %v2597
    %2939 = vmatpush.bf16.msra.mxu0 %v2596
    %2940 = vmatpush.bf16.msra.mxu0 %v2595
    %2941 = vmatpush.bf16.msra.mxu0 %v2594
    %2942 = vmatmul.bf16.gmra.mxu0 %v1708
    %v2943 = vpop.f32.mrf.mxu0
    %v2944 = vadd.f32 %v2930, %v2943
    %v2945 = vpop.f32.mrf.mxu0
    %v2946 = vadd.f32 %v2932, %v2945
    %2947 = vdwg.mxu0
    %2948 = vmatpush.bf16.msra.mxu0 %v2609
    %2949 = vmatpush.bf16.msra.mxu0 %v2608
    %2950 = vmatpush.bf16.msra.mxu0 %v2607
    %2951 = vmatpush.bf16.msra.mxu0 %v2606
    %2952 = vmatpush.bf16.msra.mxu0 %v2605
    %2953 = vmatpush.bf16.msra.mxu0 %v2604
    %2954 = vmatpush.bf16.msra.mxu0 %v2603
    %2955 = vmatpush.bf16.msra.mxu0 %v2602
    %2956 = vmatmul.bf16.gmra.mxu0 %v1709
    %v2957 = vpop.f32.mrf.mxu0
    %v2958 = vadd.f32 %v2944, %v2957
    %v2959 = vpop.f32.mrf.mxu0
    %v2960 = vadd.f32 %v2946, %v2959
    %2961 = vdwg.mxu0
    %v2962 = vadd.f32 %v631, %v2958
    %v2963 = vadd.f32 %v632, %v2960
    %v2964 = vld [vmem:[%s11] sm:$0x1]
    %v2965 = vld [vmem:[%s12] sm:$0x1]
    %2966 = vadd.xlane.f32.xlu0 %v2962
    %v2967 = vpop.xlane.xlu0 %2966
    %2968 = vadd.xlane.f32.xlu0 %v2963
    %v2969 = vpop.xlane.xlu0 %2968
    %v2970 = vmul.f32 %v2967, 0.03125
    %v2971 = vmul.f32 %v2969, 0.03125
    %v2972 = vsub.f32 %v2962, %v2970
    %v2973 = vsub.f32 %v2963, %v2971
    %v2974 = vmul.f32 %v2972, %v576
    %v2975 = vmul.f32 %v2973, %v576
    %v2976 = vmul.f32 %v2974, %v2974
    %v2977 = vmul.f32 %v2975, %v2975
    %2978 = vadd.xlane.f32.xlu0 %v2976
    %v2979 = vpop.xlane.xlu0 %2978
    %2980 = vadd.xlane.f32.xlu0 %v2977
    %v2981 = vpop.xlane.xlu0 %2980
    %v2982 = vmul.f32 %v2979, 0.03125
    %v2983 = vmul.f32 %v2981, 0.03125
    %v2984 = vadd.f32 %v2982, 1e-05
    %v2985 = vadd.f32 %v2983, 1e-05
    %v2986 = vrsqrt.pop %v2984
    %v2987 = vmul.f32 %v2986, %v2984
    %v2988 = vmul.f32 %v2987, %v2986
    %v2989 = vmul.f32 0.5, %v2988
    %v2990 = vsub.f32 1.5, %v2989
    %v2991 = vmul.f32 %v2986, %v2990
    %vm2992 = vweird.f32 %v2984
    %vm2993 = vweird.f32 %v2986
    %vm2994 = vmor %vm2992, %vm2993
    %v2995 = vsel %vm2994, %v2986, %v2991
    %v2996 = vrsqrt.pop %v2985
    %v2997 = vmul.f32 %v2996, %v2985
    %v2998 = vmul.f32 %v2997, %v2996
    %v2999 = vmul.f32 0.5, %v2998
    %v3000 = vsub.f32 1.5, %v2999
    %v3001 = vmul.f32 %v2996, %v3000
    %vm3002 = vweird.f32 %v2985
    %vm3003 = vweird.f32 %v2996
    %vm3004 = vmor %vm3002, %vm3003
    %v3005 = vsel %vm3004, %v2996, %v3001
    %v3006 = vmul.f32 %v2974, %v2995
    %v3007 = vmul.f32 %v2975, %v3005
    %v3009 = vperm.slane %v2964, 0
    %v3011 = vmul.f32 %v3006, %v3009
    %v3012 = vmul.f32 %v3007, %v3009
    %v3014 = vperm.slane %v2965, 0
    %v3016 = vadd.f32 %v3011, %v3014
    %v3017 = vadd.f32 %v3012, %v3014
    %v3018 = vpack.c.bf16 %v3017, %v3016
    %v3019 = vld [vmem:[#allocation14] sm:$0xf]
    %v3020 = vld [vmem:[#allocation14 + $0x4] sm:$0xf]
    %v3021 = vld [vmem:[#allocation14 + $0x8] sm:$0xf]
    %v3022 = vld [vmem:[#allocation14 + $0xc] sm:$0xf]
    %v3023 = vld [vmem:[#allocation14 + $0x10] sm:$0xf]
    %v3024 = vld [vmem:[#allocation14 + $0x14] sm:$0xf]
    %v3025 = vld [vmem:[#allocation14 + $0x18] sm:$0xf]
    %v3026 = vld [vmem:[#allocation14 + $0x1c] sm:$0xf]
    %v3027 = vld [vmem:[#allocation14 + $0x20] sm:$0xf]
    %v3028 = vld [vmem:[#allocation14 + $0x24] sm:$0xf]
    %v3029 = vld [vmem:[#allocation14 + $0x28] sm:$0xf]
    %v3030 = vld [vmem:[#allocation14 + $0x2c] sm:$0xf]
    %v3031 = vld [vmem:[#allocation14 + $0x30] sm:$0xf]
    %v3032 = vld [vmem:[#allocation14 + $0x34] sm:$0xf]
    %v3033 = vld [vmem:[#allocation14 + $0x38] sm:$0xf]
    %v3034 = vld [vmem:[#allocation14 + $0x3c] sm:$0xf]
    %v3035 = vld [vmem:[%s14] sm:$0x1]
    %v3037 = vperm.slane %v3035, 0
    %v3055 = vunpack.c.l.b16 %v3019
    %v3056 = vunpack.c.l.b16 %v3020
    %v3057 = vunpack.c.l.b16 %v3021
    %v3058 = vunpack.c.l.b16 %v3022
    %v3059 = vunpack.c.l.b16 %v3023
    %v3060 = vunpack.c.l.b16 %v3024
    %v3061 = vunpack.c.l.b16 %v3025
    %v3062 = vunpack.c.l.b16 %v3026
    %v3063 = vunpack.c.l.b16 %v3027
    %v3064 = vunpack.c.l.b16 %v3028
    %v3065 = vunpack.c.l.b16 %v3029
    %v3066 = vunpack.c.l.b16 %v3030
    %v3067 = vunpack.c.l.b16 %v3031
    %v3068 = vunpack.c.l.b16 %v3032
    %v3069 = vunpack.c.l.b16 %v3033
    %v3070 = vunpack.c.l.b16 %v3034
    %v3071 = vpack.c.b16 %v3056, %v3055
    %v3072 = vpack.c.b16 %v3058, %v3057
    %v3073 = vpack.c.b16 %v3060, %v3059
    %v3074 = vpack.c.b16 %v3062, %v3061
    %v3075 = vpack.c.b16 %v3064, %v3063
    %v3076 = vpack.c.b16 %v3066, %v3065
    %v3077 = vpack.c.b16 %v3068, %v3067
    %v3078 = vpack.c.b16 %v3070, %v3069
    %3087 = vmatpush.bf16.msra.mxu0 %v3078
    %3088 = vmatpush.bf16.msra.mxu0 %v3077
    %3089 = vmatpush.bf16.msra.mxu0 %v3076
    %3090 = vmatpush.bf16.msra.mxu0 %v3075
    %3091 = vmatpush.bf16.msra.mxu0 %v3074
    %3092 = vmatpush.bf16.msra.mxu0 %v3073
    %3093 = vmatpush.bf16.msra.mxu0 %v3072
    %3094 = vmatpush.bf16.msra.mxu0 %v3071
    %3095 = vmatmul.bf16.gmra.mxu0 %v3018
    %v3096 = vpop.f32.mrf.mxu0
    %v3097 = vadd.f32 %v3037, %v3096
    %v3098 = vpop.f32.mrf.mxu0
    %v3099 = vadd.f32 %v3037, %v3098
    %3100 = vdwg.mxu0
    %v3101 = vpack.c.bf16 %v3097, %v3097
    %v3102 = vpack.c.bf16 %v3099, %v3099
    %3103 = vst [vmem:[#allocation16] sm:$0xf] %v3101
    %3104 = vst [vmem:[#allocation16 + $0x4] sm:$0xf] %v3102
    // Predicated region
    $region94: #{tpu_custom_call.1} parent=1 // pred_check
      _
    $region95: #{tpu_custom_call.1} parent=1 // pred_check_branch
      %3106 = sbr.rel (0) target = $region97
    $region96: #{tpu_custom_call.1} parent=1 // pred_region
      %3108 = vsyncadd [#allocation4], 0
      %s3109 = sshll.u32 [#allocation16], 4
      %s3110 = int_to_ptr.vmem [resolvable:$true] %s3109
      %s3111 = sshll.u32 %s15, 4
      %s3112 = int_to_ptr.hbm [resolvable:$true] %s3111
      %3117 = dma.vmem_to_hbm [thread:$0]  %s3110, 128, %s3112, [#allocation4], 64, 64, 4
    $region97: #{tpu_custom_call.1} parent=1 // pred_fallthru
      _
    // Predicated region
    $region98: #{tpu_custom_call.1} parent=1 // pred_check
      _
    $region99: #{tpu_custom_call.1} parent=1 // pred_check_branch
      %3119 = sbr.rel (0) target = $region101
    $region100: #{tpu_custom_call.1} parent=1 // pred_region
      %3121 = dma.done [#allocation4], 128
    $region101: #{tpu_custom_call.1} parent=1 // pred_fallthru
      _
    %3122 = vsyncpa [#allocation3], 1
    %3123 = vsyncpa [#allocation6], 1
    %3124 = vsyncpa [#allocation9], 1
    %3125 = vsyncpa [#allocation12], 1
    %3126 = vsyncpa [#allocation15], 1
    %3127 = vsyncpa [#allocation4], 1

// kernel: tpu_custom_call.1
$region0: #{tpu_custom_call.1}
  #allocation0 [shape = 'u32[]', space=smem, size = 0x4, offset = 0x4, fixed_abs, tag = 'smem constant byte address 0x4 - core index']
  #allocation1 [shape = 'u32[72,128]{1,0:T(1,128)}', space=vmem, size = 0x9000, scoped, tag = 'internal scratch']
  %s0 = inlined_call_operand.hbm [shape: bf16[2,8,128], index: 0, kind: input, shape index: {}]
  %s1 = inlined_call_operand.hbm [shape: bf16[128,384], index: 1, kind: input, shape index: {}]
  %s2 = inlined_call_operand.hbm [shape: f32[1,384], index: 2, kind: input, shape index: {}]
  %s3 = inlined_call_operand.hbm [shape: bf16[128,128], index: 3, kind: input, shape index: {}]
  %s4 = inlined_call_operand.vmem [shape: f32[1,128], index: 4, kind: input, shape index: {}]
  %s5 = inlined_call_operand.vmem [shape: f32[1,128], index: 5, kind: input, shape index: {}]
  %s6 = inlined_call_operand.vmem [shape: f32[1,128], index: 6, kind: input, shape index: {}]
  %s7 = inlined_call_operand.hbm [shape: bf16[128,2048], index: 7, kind: input, shape index: {}]
  %s8 = inlined_call_operand.hbm [shape: f32[1,2048], index: 8, kind: input, shape index: {}]
  %s9 = inlined_call_operand.hbm [shape: bf16[2048,128], index: 9, kind: input, shape index: {}]
  %s10 = inlined_call_operand.vmem [shape: f32[1,128], index: 10, kind: input, shape index: {}]
  %s11 = inlined_call_operand.vmem [shape: f32[1,128], index: 11, kind: input, shape index: {}]
  %s12 = inlined_call_operand.vmem [shape: f32[1,128], index: 12, kind: input, shape index: {}]
  %s13 = inlined_call_operand.hbm [shape: bf16[128,128], index: 13, kind: input, shape index: {}]
  %s14 = inlined_call_operand.vmem [shape: f32[1,128], index: 14, kind: input, shape index: {}]
  %s15 = inlined_call_operand.hbm [shape: bf16[2,8,128], index: 15, kind: output, shape index: {}]
  %s16 = sld [smem:[#allocation0]]
  $region102: #{tpu_custom_call.1} parent=0
    _
  %s18 = ssub.s32 1, %s16
  %s19 = scalar_select 0, %s18, %s16
  $region1: #{tpu_custom_call.1} parent=0
    #allocation2 [shape = 'u8[4096]{0}', space=vmem, size = 0x1000, scoped, tag = 'input window, operand 0, single buffered']
    #allocation3 [shape = 's32[1]{0}', space=sflag, size = 0x4, scoped, tag = 'scoped memory for tpu_custom_call.1']
    #allocation4 [shape = 's32[1]{0}', space=sflag, size = 0x4, scoped, tag = 'scoped memory for tpu_custom_call.1']
    #allocation5 [shape = 'u8[98304]{0}', space=vmem, size = 0x18000, scoped, tag = 'input window, operand 1, single buffered']
    #allocation6 [shape = 's32[1]{0}', space=sflag, size = 0x4, scoped, tag = 'scoped memory for tpu_custom_call.1']
    #allocation7 [shape = 'u8[1536]{0}', space=vmem, size = 0x800, scoped, tag = 'input window, operand 2, single buffered']
    #allocation8 [shape = 'u8[32768]{0}', space=vmem, size = 0x8000, scoped, tag = 'input window, operand 3, single buffered']
    #allocation9 [shape = 's32[1]{0}', space=sflag, size = 0x4, scoped, tag = 'scoped memory for tpu_custom_call.1']
    #allocation10 [shape = 'u8[524288]{0}', space=vmem, size = 0x80000, scoped, tag = 'input window, operand 7, single buffered']
    #allocation11 [shape = 'u8[8192]{0}', space=vmem, size = 0x2000, scoped, tag = 'input window, operand 8, single buffered']
    #allocation12 [shape = 's32[1]{0}', space=sflag, size = 0x4, scoped, tag = 'scoped memory for tpu_custom_call.1']
    #allocation13 [shape = 'u8[524288]{0}', space=vmem, size = 0x80000, scoped, tag = 'input window, operand 9, single buffered']
    #allocation14 [shape = 'u8[32768]{0}', space=vmem, size = 0x8000, scoped, tag = 'input window, operand 13, single buffered']
    #allocation15 [shape = 's32[1]{0}', space=sflag, size = 0x4, scoped, tag = 'scoped memory for tpu_custom_call.1']
    #allocation16 [shape = 'u8[4096]{0}', space=vmem, size = 0x1000, scoped, tag = 'output window, operand 0, single buffered']
    %20 = vsyncpa [#allocation3], 0
    %21 = vsyncpa [#allocation6], 0
    %22 = vsyncpa [#allocation9], 0
    %23 = vsyncpa [#allocation12], 0
    %24 = vsyncpa [#allocation15], 0
    %25 = vsyncpa [#allocation4], 0
    // Predicated region
    $region2: #{tpu_custom_call.1} parent=1 // pred_check
      _
    $region3: #{tpu_custom_call.1} parent=1 // pred_check_branch
      %27 = sbr.rel (0) target = $region5
    $region4: #{tpu_custom_call.1} parent=1 // pred_region
      %29 = vsyncadd [#allocation3], 0
      %s30 = sshll.u32 %s0, 4
      %s31 = int_to_ptr.hbm [resolvable:$true] %s30
      %s32 = sshll.u32 [#allocation2], 4
      %s33 = int_to_ptr.vmem [resolvable:$true] %s32
      %38 = dma.hbm_to_vmem [thread:$0]  %s31, 128, %s33, [#allocation3], 64, 64, 4
    $region5: #{tpu_custom_call.1} parent=1 // pred_fallthru
      _
    // Predicated region
    $region6: #{tpu_custom_call.1} parent=1 // pred_check
      _
    $region7: #{tpu_custom_call.1} parent=1 // pred_check_branch
      %40 = sbr.rel (0) target = $region9
    $region8: #{tpu_custom_call.1} parent=1 // pred_region
      %42 = vsyncadd [#allocation6], 0
      %s43 = sshll.u32 %s1, 4
      %s44 = int_to_ptr.hbm [resolvable:$true] %s43
      %s45 = sshll.u32 [#allocation5], 4
      %s46 = int_to_ptr.vmem [resolvable:$true] %s45
      %51 = dma.hbm_to_vmem [thread:$0]  %s44, 3072, %s46, [#allocation6], 192, 192, 12
    $region9: #{tpu_custom_call.1} parent=1 // pred_fallthru
      _
    // Predicated region
    $region10: #{tpu_custom_call.1} parent=1 // pred_check
      _
    $region11: #{tpu_custom_call.1} parent=1 // pred_check_branch
      %53 = sbr.rel (0) target = $region13
    $region12: #{tpu_custom_call.1} parent=1 // pred_region
      %55 = vsyncadd [#allocation6], 0
      %s57 = sshll.u32 %s2, 4
      %s58 = int_to_ptr.hbm [resolvable:$true] %s57
      %s59 = sshll.u32 [#allocation7], 4
      %s60 = int_to_ptr.vmem [resolvable:$true] %s59
      %62 = dma.hbm_to_vmem [thread:$0]  %s58, 48, %s60, [#allocation6]
    $region13: #{tpu_custom_call.1} parent=1 // pred_fallthru
      _
    // Predicated region
    $region14: #{tpu_custom_call.1} parent=1 // pred_check
      _
    $region15: #{tpu_custom_call.1} parent=1 // pred_check_branch
      %64 = sbr.rel (0) target = $region17
    $region16: #{tpu_custom_call.1} parent=1 // pred_region
      %66 = vsyncadd [#allocation9], 0
      %s67 = sshll.u32 %s3, 4
      %s68 = int_to_ptr.hbm [resolvable:$true] %s67
      %s69 = sshll.u32 [#allocation8], 4
      %s70 = int_to_ptr.vmem [resolvable:$true] %s69
      %75 = dma.hbm_to_vmem [thread:$0]  %s68, 1024, %s70, [#allocation9], 64, 64, 4
    $region17: #{tpu_custom_call.1} parent=1 // pred_fallthru
      _
    // Predicated region
    $region18: #{tpu_custom_call.1} parent=1 // pred_check
      _
    $region19: #{tpu_custom_call.1} parent=1 // pred_check_branch
      %77 = sbr.rel (0) target = $region21
    $region20: #{tpu_custom_call.1} parent=1 // pred_region
      _
    $region21: #{tpu_custom_call.1} parent=1 // pred_fallthru
      _
    // Predicated region
    $region22: #{tpu_custom_call.1} parent=1 // pred_check
      _
    $region23: #{tpu_custom_call.1} parent=1 // pred_check_branch
      %79 = sbr.rel (0) target = $region25
    $region24: #{tpu_custom_call.1} parent=1 // pred_region
      _
    $region25: #{tpu_custom_call.1} parent=1 // pred_fallthru
      _
    // Predicated region
    $region26: #{tpu_custom_call.1} parent=1 // pred_check
      _
    $region27: #{tpu_custom_call.1} parent=1 // pred_check_branch
      %81 = sbr.rel (0) target = $region29
    $region28: #{tpu_custom_call.1} parent=1 // pred_region
      _
    $region29: #{tpu_custom_call.1} parent=1 // pred_fallthru
      _
    // Predicated region
    $region30: #{tpu_custom_call.1} parent=1 // pred_check
      _
    $region31: #{tpu_custom_call.1} parent=1 // pred_check_branch
      %83 = sbr.rel (0) target = $region33
    $region32: #{tpu_custom_call.1} parent=1 // pred_region
      %85 = vsyncadd [#allocation9], 0
      %s86 = sshll.u32 %s7, 4
      %s87 = int_to_ptr.hbm [resolvable:$true] %s86
      %s88 = sshll.u32 [#allocation10], 4
      %s89 = int_to_ptr.vmem [resolvable:$true] %s88
      %94 = dma.hbm_to_vmem [thread:$0]  %s87, 16384, %s89, [#allocation9], 1024, 1024, 64
    $region33: #{tpu_custom_call.1} parent=1 // pred_fallthru
      _
    // Predicated region
    $region34: #{tpu_custom_call.1} parent=1 // pred_check
      _
    $region35: #{tpu_custom_call.1} parent=1 // pred_check_branch
      %96 = sbr.rel (0) target = $region37
    $region36: #{tpu_custom_call.1} parent=1 // pred_region
      %98 = vsyncadd [#allocation12], 0
      %s100 = sshll.u32 %s8, 4
      %s101 = int_to_ptr.hbm [resolvable:$true] %s100
      %s102 = sshll.u32 [#allocation11], 4
      %s103 = int_to_ptr.vmem [resolvable:$true] %s102
      %105 = dma.hbm_to_vmem [thread:$0]  %s101, 256, %s103, [#allocation12]
    $region37: #{tpu_custom_call.1} parent=1 // pred_fallthru
      _
    // Predicated region
    $region38: #{tpu_custom_call.1} parent=1 // pred_check
      _
    $region39: #{tpu_custom_call.1} parent=1 // pred_check_branch
      %107 = sbr.rel (0) target = $region41
    $region40: #{tpu_custom_call.1} parent=1 // pred_region
      %109 = vsyncadd [#allocation12], 0
      %s110 = sshll.u32 %s9, 4
      %s111 = int_to_ptr.hbm [resolvable:$true] %s110
      %s112 = sshll.u32 [#allocation13], 4
      %s113 = int_to_ptr.vmem [resolvable:$true] %s112
      %118 = dma.hbm_to_vmem [thread:$0]  %s111, 16384, %s113, [#allocation12], 64, 64, 4
    $region41: #{tpu_custom_call.1} parent=1 // pred_fallthru
      _
    // Predicated region
    $region42: #{tpu_custom_call.1} parent=1 // pred_check
      _
    $region43: #{tpu_custom_call.1} parent=1 // pred_check_branch
      %120 = sbr.rel (0) target = $region45
    $region44: #{tpu_custom_call.1} parent=1 // pred_region
      _
    $region45: #{tpu_custom_call.1} parent=1 // pred_fallthru
      _
    // Predicated region
    $region46: #{tpu_custom_call.1} parent=1 // pred_check
      _
    $region47: #{tpu_custom_call.1} parent=1 // pred_check_branch
      %122 = sbr.rel (0) target = $region49
    $region48: #{tpu_custom_call.1} parent=1 // pred_region
      _
    $region49: #{tpu_custom_call.1} parent=1 // pred_fallthru
      _
    // Predicated region
    $region50: #{tpu_custom_call.1} parent=1 // pred_check
      _
    $region51: #{tpu_custom_call.1} parent=1 // pred_check_branch
      %124 = sbr.rel (0) target = $region53
    $region52: #{tpu_custom_call.1} parent=1 // pred_region
      _
    $region53: #{tpu_custom_call.1} parent=1 // pred_fallthru
      _
    // Predicated region
    $region54: #{tpu_custom_call.1} parent=1 // pred_check
      _
    $region55: #{tpu_custom_call.1} parent=1 // pred_check_branch
      %126 = sbr.rel (0) target = $region57
    $region56: #{tpu_custom_call.1} parent=1 // pred_region
      %128 = vsyncadd [#allocation15], 0
      %s129 = sshll.u32 %s13, 4
      %s130 = int_to_ptr.hbm [resolvable:$true] %s129
      %s131 = sshll.u32 [#allocation14], 4
      %s132 = int_to_ptr.vmem [resolvable:$true] %s131
      %137 = dma.hbm_to_vmem [thread:$0]  %s130, 1024, %s132, [#allocation15], 64, 64, 4
    $region57: #{tpu_custom_call.1} parent=1 // pred_fallthru
      _
    // Predicated region
    $region58: #{tpu_custom_call.1} parent=1 // pred_check
      _
    $region59: #{tpu_custom_call.1} parent=1 // pred_check_branch
      %139 = sbr.rel (0) target = $region61
    $region60: #{tpu_custom_call.1} parent=1 // pred_region
      _
    $region61: #{tpu_custom_call.1} parent=1 // pred_fallthru
      _
    // Predicated region
    $region62: #{tpu_custom_call.1} parent=1 // pred_check
      _
    $region63: #{tpu_custom_call.1} parent=1 // pred_check_branch
      %141 = sbr.rel (0) target = $region65
    $region64: #{tpu_custom_call.1} parent=1 // pred_region
      %143 = dma.done [#allocation3], 128
    $region65: #{tpu_custom_call.1} parent=1 // pred_fallthru
      _
    // Predicated region
    $region66: #{tpu_custom_call.1} parent=1 // pred_check
      _
    $region67: #{tpu_custom_call.1} parent=1 // pred_check_branch
      %145 = sbr.rel (0) target = $region69
    $region68: #{tpu_custom_call.1} parent=1 // pred_region
      %147 = dma.done [#allocation6], 3072
    $region69: #{tpu_custom_call.1} parent=1 // pred_fallthru
      _
    // Predicated region
    $region70: #{tpu_custom_call.1} parent=1 // pred_check
      _
    $region71: #{tpu_custom_call.1} parent=1 // pred_check_branch
      %149 = sbr.rel (0) target = $region73
    $region72: #{tpu_custom_call.1} parent=1 // pred_region
      %151 = dma.done [#allocation6], 48
    $region73: #{tpu_custom_call.1} parent=1 // pred_fallthru
      _
    // Predicated region
    $region74: #{tpu_custom_call.1} parent=1 // pred_check
      _
    $region75: #{tpu_custom_call.1} parent=1 // pred_check_branch
      %153 = sbr.rel (0) target = $region77
    $region76: #{tpu_custom_call.1} parent=1 // pred_region
      %155 = dma.done [#allocation9], 1024
    $region77: #{tpu_custom_call.1} parent=1 // pred_fallthru
      _
    // Predicated region
    $region78: #{tpu_custom_call.1} parent=1 // pred_check
      _
    $region79: #{tpu_custom_call.1} parent=1 // pred_check_branch
      %157 = sbr.rel (0) target = $region81
    $region80: #{tpu_custom_call.1} parent=1 // pred_region
      %159 = dma.done [#allocation9], 16384
    $region81: #{tpu_custom_call.1} parent=1 // pred_fallthru
      _
    // Predicated region
    $region82: #{tpu_custom_call.1} parent=1 // pred_check
      _
    $region83: #{tpu_custom_call.1} parent=1 // pred_check_branch
      %161 = sbr.rel (0) target = $region85
    $region84: #{tpu_custom_call.1} parent=1 // pred_region
      %163 = dma.done [#allocation12], 256
    $region85: #{tpu_custom_call.1} parent=1 // pred_fallthru
      _
    // Predicated region
    $region86: #{tpu_custom_call.1} parent=1 // pred_check
      _
    $region87: #{tpu_custom_call.1} parent=1 // pred_check_branch
      %165 = sbr.rel (0) target = $region89
    $region88: #{tpu_custom_call.1} parent=1 // pred_region
      %167 = dma.done [#allocation12], 16384
    $region89: #{tpu_custom_call.1} parent=1 // pred_fallthru
      _
    // Predicated region
    $region90: #{tpu_custom_call.1} parent=1 // pred_check
      _
    $region91: #{tpu_custom_call.1} parent=1 // pred_check_branch
      %169 = sbr.rel (0) target = $region93
    $region92: #{tpu_custom_call.1} parent=1 // pred_region
      %171 = dma.done [#allocation15], 1024
    $region93: #{tpu_custom_call.1} parent=1 // pred_fallthru
      _
    %v173 = vld [vmem:[#allocation2] sm:$0xf]
    %v174 = vld [vmem:[#allocation2 + $0x4] sm:$0xf]
    %v175 = vunpack.c.l.bf16 %v173
    %v176 = vunpack.c.l.bf16 %v174
    %v177 = vld [vmem:[#allocation5] sm:$0xff]
    %v178 = vld [vmem:[#allocation5 + $0x8] sm:$0xf]
    %v179 = vld [vmem:[#allocation5 + $0xc] sm:$0xff]
    %v180 = vld [vmem:[#allocation5 + $0x14] sm:$0xf]
    %v181 = vld [vmem:[#allocation5 + $0x18] sm:$0xff]
    %v182 = vld [vmem:[#allocation5 + $0x20] sm:$0xf]
    %v183 = vld [vmem:[#allocation5 + $0x24] sm:$0xff]
    %v184 = vld [vmem:[#allocation5 + $0x2c] sm:$0xf]
    %v185 = vld [vmem:[#allocation5 + $0x30] sm:$0xff]
    %v186 = vld [vmem:[#allocation5 + $0x38] sm:$0xf]
    %v187 = vld [vmem:[#allocation5 + $0x3c] sm:$0xff]
    %v188 = vld [vmem:[#allocation5 + $0x44] sm:$0xf]
    %v189 = vld [vmem:[#allocation5 + $0x48] sm:$0xff]
    %v190 = vld [vmem:[#allocation5 + $0x50] sm:$0xf]
    %v191 = vld [vmem:[#allocation5 + $0x54] sm:$0xff]
    %v192 = vld [vmem:[#allocation5 + $0x5c] sm:$0xf]
    %v193 = vld [vmem:[#allocation5 + $0x60] sm:$0xff]
    %v194 = vld [vmem:[#allocation5 + $0x68] sm:$0xf]
    %v195 = vld [vmem:[#allocation5 + $0x6c] sm:$0xff]
    %v196 = vld [vmem:[#allocation5 + $0x74] sm:$0xf]
    %v197 = vld [vmem:[#allocation5 + $0x78] sm:$0xff]
    %v198 = vld [vmem:[#allocation5 + $0x80] sm:$0xf]
    %v199 = vld [vmem:[#allocation5 + $0x84] sm:$0xff]
    %v200 = vld [vmem:[#allocation5 + $0x8c] sm:$0xf]
    %v201 = vld [vmem:[#allocation5 + $0x90] sm:$0xff]
    %v202 = vld [vmem:[#allocation5 + $0x98] sm:$0xf]
    %v203 = vld [vmem:[#allocation5 + $0x9c] sm:$0xff]
    %v204 = vld [vmem:[#allocation5 + $0xa4] sm:$0xf]
    %v205 = vld [vmem:[#allocation5 + $0xa8] sm:$0xff]
    %v206 = vld [vmem:[#allocation5 + $0xb0] sm:$0xf]
    %v207 = vld [vmem:[#allocation5 + $0xb4] sm:$0xff]
    %v208 = vld [vmem:[#allocation5 + $0xbc] sm:$0xf]
    %v209 = vld [vmem:[#allocation7] sm:$0x7]
    %v211 = vperm.slane %v209, 0
    %v212 = vperm.slane %v209, 1
    %v213 = vperm.slane %v209, 2
    %v219 = vunpack.c.l.b16 %v173
    %v220 = vunpack.c.l.b16 %v174
    %v221 = vpack.c.b16 %v220, %v219
    %v255 = vunpack.c.l.b16 %v177
    %v256 = vunpack.c.h.b16 %v177
    %v257 = vunpack.c.l.b16 %v178
    %v258 = vunpack.c.l.b16 %v179
    %v259 = vunpack.c.h.b16 %v179
    %v260 = vunpack.c.l.b16 %v180
    %v261 = vunpack.c.l.b16 %v181
    %v262 = vunpack.c.h.b16 %v181
    %v263 = vunpack.c.l.b16 %v182
    %v264 = vunpack.c.l.b16 %v183
    %v265 = vunpack.c.h.b16 %v183
    %v266 = vunpack.c.l.b16 %v184
    %v267 = vunpack.c.l.b16 %v185
    %v268 = vunpack.c.h.b16 %v185
    %v269 = vunpack.c.l.b16 %v186
    %v270 = vunpack.c.l.b16 %v187
    %v271 = vunpack.c.h.b16 %v187
    %v272 = vunpack.c.l.b16 %v188
    %v273 = vunpack.c.l.b16 %v189
    %v274 = vunpack.c.h.b16 %v189
    %v275 = vunpack.c.l.b16 %v190
    %v276 = vunpack.c.l.b16 %v191
    %v277 = vunpack.c.h.b16 %v191
    %v278 = vunpack.c.l.b16 %v192
    %v279 = vunpack.c.l.b16 %v193
    %v280 = vunpack.c.h.b16 %v193
    %v281 = vunpack.c.l.b16 %v194
    %v282 = vunpack.c.l.b16 %v195
    %v283 = vunpack.c.h.b16 %v195
    %v284 = vunpack.c.l.b16 %v196
    %v285 = vunpack.c.l.b16 %v197
    %v286 = vunpack.c.h.b16 %v197
    %v287 = vunpack.c.l.b16 %v198
    %v288 = vunpack.c.l.b16 %v199
    %v289 = vunpack.c.h.b16 %v199
    %v290 = vunpack.c.l.b16 %v200
    %v291 = vunpack.c.l.b16 %v201
    %v292 = vunpack.c.h.b16 %v201
    %v293 = vunpack.c.l.b16 %v202
    %v294 = vunpack.c.l.b16 %v203
    %v295 = vunpack.c.h.b16 %v203
    %v296 = vunpack.c.l.b16 %v204
    %v297 = vunpack.c.l.b16 %v205
    %v298 = vunpack.c.h.b16 %v205
    %v299 = vunpack.c.l.b16 %v206
    %v300 = vunpack.c.l.b16 %v207
    %v301 = vunpack.c.h.b16 %v207
    %v302 = vunpack.c.l.b16 %v208
    %v303 = vpack.c.b16 %v258, %v255
    %v304 = vpack.c.b16 %v259, %v256
    %v305 = vpack.c.b16 %v260, %v257
    %v306 = vpack.c.b16 %v264, %v261
    %v307 = vpack.c.b16 %v265, %v262
    %v308 = vpack.c.b16 %v266, %v263
    %v309 = vpack.c.b16 %v270, %v267
    %v310 = vpack.c.b16 %v271, %v268
    %v311 = vpack.c.b16 %v272, %v269
    %v312 = vpack.c.b16 %v276, %v273
    %v313 = vpack.c.b16 %v277, %v274
    %v314 = vpack.c.b16 %v278, %v275
    %v315 = vpack.c.b16 %v282, %v279
    %v316 = vpack.c.b16 %v283, %v280
    %v317 = vpack.c.b16 %v284, %v281
    %v318 = vpack.c.b16 %v288, %v285
    %v319 = vpack.c.b16 %v289, %v286
    %v320 = vpack.c.b16 %v290, %v287
    %v321 = vpack.c.b16 %v294, %v291
    %v322 = vpack.c.b16 %v295, %v292
    %v323 = vpack.c.b16 %v296, %v293
    %v324 = vpack.c.b16 %v300, %v297
    %v325 = vpack.c.b16 %v301, %v298
    %v326 = vpack.c.b16 %v302, %v299
    %351 = vmatpush.bf16.msra.mxu0 %v324
    %352 = vmatpush.bf16.msra.mxu0 %v321
    %353 = vmatpush.bf16.msra.mxu0 %v318
    %354 = vmatpush.bf16.msra.mxu0 %v315
    %355 = vmatpush.bf16.msra.mxu0 %v312
    %356 = vmatpush.bf16.msra.mxu0 %v309
    %357 = vmatpush.bf16.msra.mxu0 %v306
    %358 = vmatpush.bf16.msra.mxu0 %v303
    %359 = vmatmul.bf16.gmra.mxu0 %v221
    %v360 = vpop.f32.mrf.mxu0
    %v361 = vadd.f32 %v211, %v360
    %v362 = vpop.f32.mrf.mxu0
    %v363 = vadd.f32 %v211, %v362
    %364 = vdwg.mxu0
    %365 = vmatpush.bf16.msra.mxu0 %v325
    %366 = vmatpush.bf16.msra.mxu0 %v322
    %367 = vmatpush.bf16.msra.mxu0 %v319
    %368 = vmatpush.bf16.msra.mxu0 %v316
    %369 = vmatpush.bf16.msra.mxu0 %v313
    %370 = vmatpush.bf16.msra.mxu0 %v310
    %371 = vmatpush.bf16.msra.mxu0 %v307
    %372 = vmatpush.bf16.msra.mxu0 %v304
    %373 = vmatmul.bf16.gmra.mxu0 %v221
    %v374 = vpop.f32.mrf.mxu0
    %v375 = vadd.f32 %v212, %v374
    %v376 = vpop.f32.mrf.mxu0
    %v377 = vadd.f32 %v212, %v376
    %378 = vdwg.mxu0
    %379 = vmatpush.bf16.msra.mxu0 %v326
    %380 = vmatpush.bf16.msra.mxu0 %v323
    %381 = vmatpush.bf16.msra.mxu0 %v320
    %382 = vmatpush.bf16.msra.mxu0 %v317
    %383 = vmatpush.bf16.msra.mxu0 %v314
    %384 = vmatpush.bf16.msra.mxu0 %v311
    %385 = vmatpush.bf16.msra.mxu0 %v308
    %386 = vmatpush.bf16.msra.mxu0 %v305
    %387 = vmatmul.bf16.gmra.mxu0 %v221
    %v388 = vpop.f32.mrf.mxu0
    %v389 = vadd.f32 %v213, %v388
    %v390 = vpop.f32.mrf.mxu0
    %v391 = vadd.f32 %v213, %v390
    %392 = vdwg.mxu0
    %v393 = vpack.c.bf16 %v361, %v361
    %v394 = vpack.c.bf16 %v363, %v363
    %v395 = vpack.c.bf16 %v375, %v375
    %v396 = vpack.c.bf16 %v377, %v377
    %v397 = vpack.c.bf16 %v389, %v389
    %v398 = vpack.c.bf16 %v391, %v391
    %399 = vmatpush.bf16.xpose.msra.mxu0 0
    %400 = vmatpush.bf16.xpose.msra.mxu0 0
    %401 = vmatpush.bf16.xpose.msra.mxu0 0
    %402 = vmatpush.bf16.xpose.msra.mxu0 0
    %403 = vmatpush.bf16.xpose.msra.mxu0 0
    %404 = vmatpush.bf16.xpose.msra.mxu0 0
    %405 = vmatpush.bf16.xpose.msra.mxu0 0
    %406 = vmatpush.bf16.xpose.msra.mxu0 %v395
    %407 = vmatmul.bf16.gmra.mxu0 %v393
    %v408 = vpop.f32.mrf.mxu0
    %v409 = vadd.f32 0.0, %v408
    %v410 = vpop.f32.mrf.mxu0
    %411 = vdwg.mxu0
    %412 = vmatpush.bf16.xpose.msra.mxu0 0
    %413 = vmatpush.bf16.xpose.msra.mxu0 0
    %414 = vmatpush.bf16.xpose.msra.mxu0 0
    %415 = vmatpush.bf16.xpose.msra.mxu0 0
    %416 = vmatpush.bf16.xpose.msra.mxu0 0
    %417 = vmatpush.bf16.xpose.msra.mxu0 0
    %418 = vmatpush.bf16.xpose.msra.mxu0 0
    %419 = vmatpush.bf16.xpose.msra.mxu0 %v396
    %420 = vmatmul.bf16.gmra.mxu0 %v394
    %v421 = vpop.f32.mrf.mxu0
    %v422 = vadd.f32 0.0, %v421
    %v423 = vpop.f32.mrf.mxu0
    %424 = vdwg.mxu0
    %vm425 = vcmask 64512
    %v426 = vsel %vm425, %v409, -inf
    %427 = vmax.xlane.f32.xlu0 %v426
    %v428 = vpop.xlane.xlu0 %427
    %v429 = vsel %vm425, %v422, -inf
    %430 = vmax.xlane.f32.xlu0 %v429
    %v431 = vpop.xlane.xlu0 %430
    %v432 = vsub.f32 %v409, %v428
    %v433 = vsub.f32 %v422, %v431
    %v434 = vmul.f32 %v432, 1.442695
    %v435 = vpow.pop %v434
    %v436 = vmul.f32 %v433, 1.442695
    %v437 = vpow.pop %v436
    %v438 = vsel %vm425, %v435, 0.0
    %439 = vadd.xlane.f32.xlu0 %v438
    %v440 = vpop.xlane.xlu0 %439
    %v441 = vsel %vm425, %v437, 0.0
    %442 = vadd.xlane.f32.xlu0 %v441
    %v443 = vpop.xlane.xlu0 %442
    %v444 = vrcp.pop %v440
    %v445 = vrcp.pop %v443
    %v446 = vmul.f32 %v435, %v444
    %v447 = vmul.f32 %v437, %v445
    %v448 = vpack.c.bf16 %v446, %v446
    %v449 = vpack.c.bf16 %v447, %v447
    %v451 = vsel %vm425, %v448, 0
    %vm453 = vcmask 1043456
    %v455 = vsel %vm453, %v397, 0
    %457 = vmatpush.bf16.msra.mxu0 0
    %458 = vmatpush.bf16.msra.mxu0 0
    %459 = vmatpush.bf16.msra.mxu0 0
    %460 = vmatpush.bf16.msra.mxu0 0
    %461 = vmatpush.bf16.msra.mxu0 0
    %462 = vmatpush.bf16.msra.mxu0 0
    %463 = vmatpush.bf16.msra.mxu0 0
    %464 = vmatpush.bf16.msra.mxu0 %v455
    %465 = vmatmul.bf16.gmra.mxu0 %v451
    %v466 = vpop.f32.mrf.mxu0
    %v467 = vadd.f32 0.0, %v466
    %v468 = vpop.f32.mrf.mxu0
    %469 = vdwg.mxu0
    %v471 = vsel %vm425, %v449, 0
    %v474 = vsel %vm453, %v398, 0
    %476 = vmatpush.bf16.msra.mxu0 0
    %477 = vmatpush.bf16.msra.mxu0 0
    %478 = vmatpush.bf16.msra.mxu0 0
    %479 = vmatpush.bf16.msra.mxu0 0
    %480 = vmatpush.bf16.msra.mxu0 0
    %481 = vmatpush.bf16.msra.mxu0 0
    %482 = vmatpush.bf16.msra.mxu0 0
    %483 = vmatpush.bf16.msra.mxu0 %v474
    %484 = vmatmul.bf16.gmra.mxu0 %v471
    %v485 = vpop.f32.mrf.mxu0
    %v486 = vadd.f32 0.0, %v485
    %v487 = vpop.f32.mrf.mxu0
    %488 = vdwg.mxu0
    %v489 = vpack.c.bf16 %v486, %v467
    %v490 = vld [vmem:[#allocation8] sm:$0xf]
    %v491 = vld [vmem:[#allocation8 + $0x4] sm:$0xf]
    %v492 = vld [vmem:[#allocation8 + $0x8] sm:$0xf]
    %v493 = vld [vmem:[#allocation8 + $0xc] sm:$0xf]
    %v494 = vld [vmem:[#allocation8 + $0x10] sm:$0xf]
    %v495 = vld [vmem:[#allocation8 + $0x14] sm:$0xf]
    %v496 = vld [vmem:[#allocation8 + $0x18] sm:$0xf]
    %v497 = vld [vmem:[#allocation8 + $0x1c] sm:$0xf]
    %v498 = vld [vmem:[#allocation8 + $0x20] sm:$0xf]
    %v499 = vld [vmem:[#allocation8 + $0x24] sm:$0xf]
    %v500 = vld [vmem:[#allocation8 + $0x28] sm:$0xf]
    %v501 = vld [vmem:[#allocation8 + $0x2c] sm:$0xf]
    %v502 = vld [vmem:[#allocation8 + $0x30] sm:$0xf]
    %v503 = vld [vmem:[#allocation8 + $0x34] sm:$0xf]
    %v504 = vld [vmem:[#allocation8 + $0x38] sm:$0xf]
    %v505 = vld [vmem:[#allocation8 + $0x3c] sm:$0xf]
    %v506 = vld [vmem:[%s4] sm:$0x1]
    %v508 = vperm.slane %v506, 0
    %v526 = vunpack.c.l.b16 %v490
    %v527 = vunpack.c.l.b16 %v491
    %v528 = vunpack.c.l.b16 %v492
    %v529 = vunpack.c.l.b16 %v493
    %v530 = vunpack.c.l.b16 %v494
    %v531 = vunpack.c.l.b16 %v495
    %v532 = vunpack.c.l.b16 %v496
    %v533 = vunpack.c.l.b16 %v497
    %v534 = vunpack.c.l.b16 %v498
    %v535 = vunpack.c.l.b16 %v499
    %v536 = vunpack.c.l.b16 %v500
    %v537 = vunpack.c.l.b16 %v501
    %v538 = vunpack.c.l.b16 %v502
    %v539 = vunpack.c.l.b16 %v503
    %v540 = vunpack.c.l.b16 %v504
    %v541 = vunpack.c.l.b16 %v505
    %v542 = vpack.c.b16 %v527, %v526
    %v543 = vpack.c.b16 %v529, %v528
    %v544 = vpack.c.b16 %v531, %v530
    %v545 = vpack.c.b16 %v533, %v532
    %v546 = vpack.c.b16 %v535, %v534
    %v547 = vpack.c.b16 %v537, %v536
    %v548 = vpack.c.b16 %v539, %v538
    %v549 = vpack.c.b16 %v541, %v540
    %558 = vmatpush.bf16.msra.mxu0 %v549
    %559 = vmatpush.bf16.msra.mxu0 %v548
    %560 = vmatpush.bf16.msra.mxu0 %v547
    %561 = vmatpush.bf16.msra.mxu0 %v546
    %562 = vmatpush.bf16.msra.mxu0 %v545
    %563 = vmatpush.bf16.msra.mxu0 %v544
    %564 = vmatpush.bf16.msra.mxu0 %v543
    %565 = vmatpush.bf16.msra.mxu0 %v542
    %566 = vmatmul.bf16.gmra.mxu0 %v489
    %v567 = vpop.f32.mrf.mxu0
    %v568 = vadd.f32 %v508, %v567
    %v569 = vpop.f32.mrf.mxu0
    %v570 = vadd.f32 %v508, %v569
    %571 = vdwg.mxu0
    %v572 = vlaneseq
    %v573 = vand.u32 %v572, 127
    %vm574 = vcmp.lt.s32.totalorder %v573, 32
    %v575 = vsel %vm574, 1, 0
    %v576 = vcvt.s32.f32 %v575
    %v577 = vadd.f32 %v175, %v568
    %v578 = vadd.f32 %v176, %v570
    %v579 = vld [vmem:[%s5] sm:$0x1]
    %v580 = vld [vmem:[%s6] sm:$0x1]
    %581 = vadd.xlane.f32.xlu0 %v577
    %v582 = vpop.xlane.xlu0 %581
    %583 = vadd.xlane.f32.xlu0 %v578
    %v584 = vpop.xlane.xlu0 %583
    %v585 = vmul.f32 %v582, 0.03125
    %v586 = vmul.f32 %v584, 0.03125
    %v587 = vsub.f32 %v577, %v585
    %v588 = vsub.f32 %v578, %v586
    %v589 = vmul.f32 %v587, %v576
    %v590 = vmul.f32 %v588, %v576
    %v591 = vmul.f32 %v589, %v589
    %v592 = vmul.f32 %v590, %v590
    %593 = vadd.xlane.f32.xlu0 %v591
    %v594 = vpop.xlane.xlu0 %593
    %595 = vadd.xlane.f32.xlu0 %v592
    %v596 = vpop.xlane.xlu0 %595
    %v597 = vmul.f32 %v594, 0.03125
    %v598 = vmul.f32 %v596, 0.03125
    %v599 = vadd.f32 %v597, 1e-05
    %v600 = vadd.f32 %v598, 1e-05
    %v601 = vrsqrt.pop %v599
    %v602 = vmul.f32 %v601, %v599
    %v603 = vmul.f32 %v602, %v601
    %v604 = vmul.f32 0.5, %v603
    %v605 = vsub.f32 1.5, %v604
    %v606 = vmul.f32 %v601, %v605
    %vm607 = vweird.f32 %v599
    %vm608 = vweird.f32 %v601
    %vm609 = vmor %vm607, %vm608
    %v610 = vsel %vm609, %v601, %v606
    %v611 = vrsqrt.pop %v600
    %v612 = vmul.f32 %v611, %v600
    %v613 = vmul.f32 %v612, %v611
    %v614 = vmul.f32 0.5, %v613
    %v615 = vsub.f32 1.5, %v614
    %v616 = vmul.f32 %v611, %v615
    %vm617 = vweird.f32 %v600
    %vm618 = vweird.f32 %v611
    %vm619 = vmor %vm617, %vm618
    %v620 = vsel %vm619, %v611, %v616
    %v621 = vmul.f32 %v589, %v610
    %v622 = vmul.f32 %v590, %v620
    %v624 = vperm.slane %v579, 0
    %v626 = vmul.f32 %v621, %v624
    %v627 = vmul.f32 %v622, %v624
    %v629 = vperm.slane %v580, 0
    %v631 = vadd.f32 %v626, %v629
    %v632 = vadd.f32 %v627, %v629
    %v633 = vpack.c.bf16 %v632, %v631
    %v634 = vld [vmem:[#allocation10] sm:$0xff]
    %v635 = vld [vmem:[#allocation10 + $0x8] sm:$0xff]
    %v636 = vld [vmem:[#allocation10 + $0x10] sm:$0xff]
    %v637 = vld [vmem:[#allocation10 + $0x18] sm:$0xff]
    %v638 = vld [vmem:[#allocation10 + $0x20] sm:$0xff]
    %v639 = vld [vmem:[#allocation10 + $0x28] sm:$0xff]
    %v640 = vld [vmem:[#allocation10 + $0x30] sm:$0xff]
    %v641 = vld [vmem:[#allocation10 + $0x38] sm:$0xff]
    %v642 = vld [vmem:[#allocation10 + $0x40] sm:$0xff]
    %v643 = vld [vmem:[#allocation10 + $0x48] sm:$0xff]
    %v644 = vld [vmem:[#allocation10 + $0x50] sm:$0xff]
    %v645 = vld [vmem:[#allocation10 + $0x58] sm:$0xff]
    %v646 = vld [vmem:[#allocation10 + $0x60] sm:$0xff]
    %v647 = vld [vmem:[#allocation10 + $0x68] sm:$0xff]
    %v648 = vld [vmem:[#allocation10 + $0x70] sm:$0xff]
    %v649 = vld [vmem:[#allocation10 + $0x78] sm:$0xff]
    %v650 = vld [vmem:[#allocation10 + $0x80] sm:$0xff]
    %v651 = vld [vmem:[#allocation10 + $0x88] sm:$0xff]
    %v652 = vld [vmem:[#allocation10 + $0x90] sm:$0xff]
    %v653 = vld [vmem:[#allocation10 + $0x98] sm:$0xff]
    %v654 = vld [vmem:[#allocation10 + $0xa0] sm:$0xff]
    %v655 = vld [vmem:[#allocation10 + $0xa8] sm:$0xff]
    %v656 = vld [vmem:[#allocation10 + $0xb0] sm:$0xff]
    %v657 = vld [vmem:[#allocation10 + $0xb8] sm:$0xff]
    %v658 = vld [vmem:[#allocation10 + $0xc0] sm:$0xff]
    %v659 = vld [vmem:[#allocation10 + $0xc8] sm:$0xff]
    %v660 = vld [vmem:[#allocation10 + $0xd0] sm:$0xff]
    %v661 = vld [vmem:[#allocation10 + $0xd8] sm:$0xff]
    %v662 = vld [vmem:[#allocation10 + $0xe0] sm:$0xff]
    %v663 = vld [vmem:[#allocation10 + $0xe8] sm:$0xff]
    %v664 = vld [vmem:[#allocation10 + $0xf0] sm:$0xff]
    %v665 = vld [vmem:[#allocation10 + $0xf8] sm:$0xff]
    %v666 = vld [vmem:[#allocation10 + $0x100] sm:$0xff]
    %v667 = vld [vmem:[#allocation10 + $0x108] sm:$0xff]
    %v668 = vld [vmem:[#allocation10 + $0x110] sm:$0xff]
    %v669 = vld [vmem:[#allocation10 + $0x118] sm:$0xff]
    %v670 = vld [vmem:[#allocation10 + $0x120] sm:$0xff]
    %v671 = vld [vmem:[#allocation10 + $0x128] sm:$0xff]
    %v672 = vld [vmem:[#allocation10 + $0x130] sm:$0xff]
    %v673 = vld [vmem:[#allocation10 + $0x138] sm:$0xff]
    %v674 = vld [vmem:[#allocation10 + $0x140] sm:$0xff]
    %v675 = vld [vmem:[#allocation10 + $0x148] sm:$0xff]
    %v676 = vld [vmem:[#allocation10 + $0x150] sm:$0xff]
    %v677 = vld [vmem:[#allocation10 + $0x158] sm:$0xff]
    %v678 = vld [vmem:[#allocation10 + $0x160] sm:$0xff]
    %v679 = vld [vmem:[#allocation10 + $0x168] sm:$0xff]
    %v680 = vld [vmem:[#allocation10 + $0x170] sm:$0xff]
    %v681 = vld [vmem:[#allocation10 + $0x178] sm:$0xff]
    %v682 = vld [vmem:[#allocation10 + $0x180] sm:$0xff]
    %v683 = vld [vmem:[#allocation10 + $0x188] sm:$0xff]
    %v684 = vld [vmem:[#allocation10 + $0x190] sm:$0xff]
    %v685 = vld [vmem:[#allocation10 + $0x198] sm:$0xff]
    %v686 = vld [vmem:[#allocation10 + $0x1a0] sm:$0xff]
    %v687 = vld [vmem:[#allocation10 + $0x1a8] sm:$0xff]
    %v688 = vld [vmem:[#allocation10 + $0x1b0] sm:$0xff]
    %v689 = vld [vmem:[#allocation10 + $0x1b8] sm:$0xff]
    %v690 = vld [vmem:[#allocation10 + $0x1c0] sm:$0xff]
    %v691 = vld [vmem:[#allocation10 + $0x1c8] sm:$0xff]
    %v692 = vld [vmem:[#allocation10 + $0x1d0] sm:$0xff]
    %v693 = vld [vmem:[#allocation10 + $0x1d8] sm:$0xff]
    %v694 = vld [vmem:[#allocation10 + $0x1e0] sm:$0xff]
    %v695 = vld [vmem:[#allocation10 + $0x1e8] sm:$0xff]
    %v696 = vld [vmem:[#allocation10 + $0x1f0] sm:$0xff]
    %v697 = vld [vmem:[#allocation10 + $0x1f8] sm:$0xff]
    %v698 = vld [vmem:[#allocation10 + $0x200] sm:$0xff]
    %v699 = vld [vmem:[#allocation10 + $0x208] sm:$0xff]
    %v700 = vld [vmem:[#allocation10 + $0x210] sm:$0xff]
    %v701 = vld [vmem:[#allocation10 + $0x218] sm:$0xff]
    %v702 = vld [vmem:[#allocation10 + $0x220] sm:$0xff]
    %v703 = vld [vmem:[#allocation10 + $0x228] sm:$0xff]
    %v704 = vld [vmem:[#allocation10 + $0x230] sm:$0xff]
    %v705 = vld [vmem:[#allocation10 + $0x238] sm:$0xff]
    %v706 = vld [vmem:[#allocation10 + $0x240] sm:$0xff]
    %v707 = vld [vmem:[#allocation10 + $0x248] sm:$0xff]
    %v708 = vld [vmem:[#allocation10 + $0x250] sm:$0xff]
    %v709 = vld [vmem:[#allocation10 + $0x258] sm:$0xff]
    %v710 = vld [vmem:[#allocation10 + $0x260] sm:$0xff]
    %v711 = vld [vmem:[#allocation10 + $0x268] sm:$0xff]
    %v712 = vld [vmem:[#allocation10 + $0x270] sm:$0xff]
    %v713 = vld [vmem:[#allocation10 + $0x278] sm:$0xff]
    %v714 = vld [vmem:[#allocation10 + $0x280] sm:$0xff]
    %v715 = vld [vmem:[#allocation10 + $0x288] sm:$0xff]
    %v716 = vld [vmem:[#allocation10 + $0x290] sm:$0xff]
    %v717 = vld [vmem:[#allocation10 + $0x298] sm:$0xff]
    %v718 = vld [vmem:[#allocation10 + $0x2a0] sm:$0xff]
    %v719 = vld [vmem:[#allocation10 + $0x2a8] sm:$0xff]
    %v720 = vld [vmem:[#allocation10 + $0x2b0] sm:$0xff]
    %v721 = vld [vmem:[#allocation10 + $0x2b8] sm:$0xff]
    %v722 = vld [vmem:[#allocation10 + $0x2c0] sm:$0xff]
    %v723 = vld [vmem:[#allocation10 + $0x2c8] sm:$0xff]
    %v724 = vld [vmem:[#allocation10 + $0x2d0] sm:$0xff]
    %v725 = vld [vmem:[#allocation10 + $0x2d8] sm:$0xff]
    %v726 = vld [vmem:[#allocation10 + $0x2e0] sm:$0xff]
    %v727 = vld [vmem:[#allocation10 + $0x2e8] sm:$0xff]
    %v728 = vld [vmem:[#allocation10 + $0x2f0] sm:$0xff]
    %v729 = vld [vmem:[#allocation10 + $0x2f8] sm:$0xff]
    %v730 = vld [vmem:[#allocation10 + $0x300] sm:$0xff]
    %v731 = vld [vmem:[#allocation10 + $0x308] sm:$0xff]
    %v732 = vld [vmem:[#allocation10 + $0x310] sm:$0xff]
    %v733 = vld [vmem:[#allocation10 + $0x318] sm:$0xff]
    %v734 = vld [vmem:[#allocation10 + $0x320] sm:$0xff]
    %v735 = vld [vmem:[#allocation10 + $0x328] sm:$0xff]
    %v736 = vld [vmem:[#allocation10 + $0x330] sm:$0xff]
    %v737 = vld [vmem:[#allocation10 + $0x338] sm:$0xff]
    %v738 = vld [vmem:[#allocation10 + $0x340] sm:$0xff]
    %v739 = vld [vmem:[#allocation10 + $0x348] sm:$0xff]
    %v740 = vld [vmem:[#allocation10 + $0x350] sm:$0xff]
    %v741 = vld [vmem:[#allocation10 + $0x358] sm:$0xff]
    %v742 = vld [vmem:[#allocation10 + $0x360] sm:$0xff]
    %v743 = vld [vmem:[#allocation10 + $0x368] sm:$0xff]
    %v744 = vld [vmem:[#allocation10 + $0x370] sm:$0xff]
    %v745 = vld [vmem:[#allocation10 + $0x378] sm:$0xff]
    %v746 = vld [vmem:[#allocation10 + $0x380] sm:$0xff]
    %v747 = vld [vmem:[#allocation10 + $0x388] sm:$0xff]
    %v748 = vld [vmem:[#allocation10 + $0x390] sm:$0xff]
    %v749 = vld [vmem:[#allocation10 + $0x398] sm:$0xff]
    %v750 = vld [vmem:[#allocation10 + $0x3a0] sm:$0xff]
    %v751 = vld [vmem:[#allocation10 + $0x3a8] sm:$0xff]
    %v752 = vld [vmem:[#allocation10 + $0x3b0] sm:$0xff]
    %v753 = vld [vmem:[#allocation10 + $0x3b8] sm:$0xff]
    %v754 = vld [vmem:[#allocation10 + $0x3c0] sm:$0xff]
    %v755 = vld [vmem:[#allocation10 + $0x3c8] sm:$0xff]
    %v756 = vld [vmem:[#allocation10 + $0x3d0] sm:$0xff]
    %v757 = vld [vmem:[#allocation10 + $0x3d8] sm:$0xff]
    %v758 = vld [vmem:[#allocation10 + $0x3e0] sm:$0xff]
    %v759 = vld [vmem:[#allocation10 + $0x3e8] sm:$0xff]
    %v760 = vld [vmem:[#allocation10 + $0x3f0] sm:$0xff]
    %v761 = vld [vmem:[#allocation10 + $0x3f8] sm:$0xff]
    %v762 = vld [vmem:[#allocation11] sm:$0xff]
    %v763 = vld [vmem:[#allocation11 + $0x8] sm:$0xff]
    %v766 = vperm.slane %v762, 0
    %v767 = vperm.slane %v762, 1
    %v768 = vperm.slane %v762, 2
    %v769 = vperm.slane %v762, 3
    %v770 = vperm.slane %v762, 4
    %v771 = vperm.slane %v762, 5
    %v772 = vperm.slane %v762, 6
    %v773 = vperm.slane %v762, 7
    %v774 = vperm.slane %v763, 0
    %v775 = vperm.slane %v763, 1
    %v776 = vperm.slane %v763, 2
    %v777 = vperm.slane %v763, 3
    %v778 = vperm.slane %v763, 4
    %v779 = vperm.slane %v763, 5
    %v780 = vperm.slane %v763, 6
    %v781 = vperm.slane %v763, 7
    %v926 = vunpack.c.l.b16 %v634
    %v927 = vunpack.c.h.b16 %v634
    %v928 = vunpack.c.l.b16 %v635
    %v929 = vunpack.c.h.b16 %v635
    %v930 = vunpack.c.l.b16 %v636
    %v931 = vunpack.c.h.b16 %v636
    %v932 = vunpack.c.l.b16 %v637
    %v933 = vunpack.c.h.b16 %v637
    %v934 = vunpack.c.l.b16 %v638
    %v935 = vunpack.c.h.b16 %v638
    %v936 = vunpack.c.l.b16 %v639
    %v937 = vunpack.c.h.b16 %v639
    %v938 = vunpack.c.l.b16 %v640
    %v939 = vunpack.c.h.b16 %v640
    %v940 = vunpack.c.l.b16 %v641
    %v941 = vunpack.c.h.b16 %v641
    %v942 = vunpack.c.l.b16 %v642
    %v943 = vunpack.c.h.b16 %v642
    %v944 = vunpack.c.l.b16 %v643
    %v945 = vunpack.c.h.b16 %v643
    %v946 = vunpack.c.l.b16 %v644
    %v947 = vunpack.c.h.b16 %v644
    %v948 = vunpack.c.l.b16 %v645
    %v949 = vunpack.c.h.b16 %v645
    %v950 = vunpack.c.l.b16 %v646
    %v951 = vunpack.c.h.b16 %v646
    %v952 = vunpack.c.l.b16 %v647
    %v953 = vunpack.c.h.b16 %v647
    %v954 = vunpack.c.l.b16 %v648
    %v955 = vunpack.c.h.b16 %v648
    %v956 = vunpack.c.l.b16 %v649
    %v957 = vunpack.c.h.b16 %v649
    %v958 = vunpack.c.l.b16 %v650
    %v959 = vunpack.c.h.b16 %v650
    %v960 = vunpack.c.l.b16 %v651
    %v961 = vunpack.c.h.b16 %v651
    %v962 = vunpack.c.l.b16 %v652
    %v963 = vunpack.c.h.b16 %v652
    %v964 = vunpack.c.l.b16 %v653
    %v965 = vunpack.c.h.b16 %v653
    %v966 = vunpack.c.l.b16 %v654
    %v967 = vunpack.c.h.b16 %v654
    %v968 = vunpack.c.l.b16 %v655
    %v969 = vunpack.c.h.b16 %v655
    %v970 = vunpack.c.l.b16 %v656
    %v971 = vunpack.c.h.b16 %v656
    %v972 = vunpack.c.l.b16 %v657
    %v973 = vunpack.c.h.b16 %v657
    %v974 = vunpack.c.l.b16 %v658
    %v975 = vunpack.c.h.b16 %v658
    %v976 = vunpack.c.l.b16 %v659
    %v977 = vunpack.c.h.b16 %v659
    %v978 = vunpack.c.l.b16 %v660
    %v979 = vunpack.c.h.b16 %v660
    %v980 = vunpack.c.l.b16 %v661
    %v981 = vunpack.c.h.b16 %v661
    %v982 = vunpack.c.l.b16 %v662
    %v983 = vunpack.c.h.b16 %v662
    %v984 = vunpack.c.l.b16 %v663
    %v985 = vunpack.c.h.b16 %v663
    %v986 = vunpack.c.l.b16 %v664
    %v987 = vunpack.c.h.b16 %v664
    %v988 = vunpack.c.l.b16 %v665
    %v989 = vunpack.c.h.b16 %v665
    %v990 = vunpack.c.l.b16 %v666
    %v991 = vunpack.c.h.b16 %v666
    %v992 = vunpack.c.l.b16 %v667
    %v993 = vunpack.c.h.b16 %v667
    %v994 = vunpack.c.l.b16 %v668
    %v995 = vunpack.c.h.b16 %v668
    %v996 = vunpack.c.l.b16 %v669
    %v997 = vunpack.c.h.b16 %v669
    %v998 = vunpack.c.l.b16 %v670
    %v999 = vunpack.c.h.b16 %v670
    %v1000 = vunpack.c.l.b16 %v671
    %v1001 = vunpack.c.h.b16 %v671
    %v1002 = vunpack.c.l.b16 %v672
    %v1003 = vunpack.c.h.b16 %v672
    %v1004 = vunpack.c.l.b16 %v673
    %v1005 = vunpack.c.h.b16 %v673
    %v1006 = vunpack.c.l.b16 %v674
    %v1007 = vunpack.c.h.b16 %v674
    %v1008 = vunpack.c.l.b16 %v675
    %v1009 = vunpack.c.h.b16 %v675
    %v1010 = vunpack.c.l.b16 %v676
    %v1011 = vunpack.c.h.b16 %v676
    %v1012 = vunpack.c.l.b16 %v677
    %v1013 = vunpack.c.h.b16 %v677
    %v1014 = vunpack.c.l.b16 %v678
    %v1015 = vunpack.c.h.b16 %v678
    %v1016 = vunpack.c.l.b16 %v679
    %v1017 = vunpack.c.h.b16 %v679
    %v1018 = vunpack.c.l.b16 %v680
    %v1019 = vunpack.c.h.b16 %v680
    %v1020 = vunpack.c.l.b16 %v681
    %v1021 = vunpack.c.h.b16 %v681
    %v1022 = vunpack.c.l.b16 %v682
    %v1023 = vunpack.c.h.b16 %v682
    %v1024 = vunpack.c.l.b16 %v683
    %v1025 = vunpack.c.h.b16 %v683
    %v1026 = vunpack.c.l.b16 %v684
    %v1027 = vunpack.c.h.b16 %v684
    %v1028 = vunpack.c.l.b16 %v685
    %v1029 = vunpack.c.h.b16 %v685
    %v1030 = vunpack.c.l.b16 %v686
    %v1031 = vunpack.c.h.b16 %v686
    %v1032 = vunpack.c.l.b16 %v687
    %v1033 = vunpack.c.h.b16 %v687
    %v1034 = vunpack.c.l.b16 %v688
    %v1035 = vunpack.c.h.b16 %v688
    %v1036 = vunpack.c.l.b16 %v689
    %v1037 = vunpack.c.h.b16 %v689
    %v1038 = vunpack.c.l.b16 %v690
    %v1039 = vunpack.c.h.b16 %v690
    %v1040 = vunpack.c.l.b16 %v691
    %v1041 = vunpack.c.h.b16 %v691
    %v1042 = vunpack.c.l.b16 %v692
    %v1043 = vunpack.c.h.b16 %v692
    %v1044 = vunpack.c.l.b16 %v693
    %v1045 = vunpack.c.h.b16 %v693
    %v1046 = vunpack.c.l.b16 %v694
    %v1047 = vunpack.c.h.b16 %v694
    %v1048 = vunpack.c.l.b16 %v695
    %v1049 = vunpack.c.h.b16 %v695
    %v1050 = vunpack.c.l.b16 %v696
    %v1051 = vunpack.c.h.b16 %v696
    %v1052 = vunpack.c.l.b16 %v697
    %v1053 = vunpack.c.h.b16 %v697
    %v1054 = vunpack.c.l.b16 %v698
    %v1055 = vunpack.c.h.b16 %v698
    %v1056 = vunpack.c.l.b16 %v699
    %v1057 = vunpack.c.h.b16 %v699
    %v1058 = vunpack.c.l.b16 %v700
    %v1059 = vunpack.c.h.b16 %v700
    %v1060 = vunpack.c.l.b16 %v701
    %v1061 = vunpack.c.h.b16 %v701
    %v1062 = vunpack.c.l.b16 %v702
    %v1063 = vunpack.c.h.b16 %v702
    %v1064 = vunpack.c.l.b16 %v703
    %v1065 = vunpack.c.h.b16 %v703
    %v1066 = vunpack.c.l.b16 %v704
    %v1067 = vunpack.c.h.b16 %v704
    %v1068 = vunpack.c.l.b16 %v705
    %v1069 = vunpack.c.h.b16 %v705
    %v1070 = vunpack.c.l.b16 %v706
    %v1071 = vunpack.c.h.b16 %v706
    %v1072 = vunpack.c.l.b16 %v707
    %v1073 = vunpack.c.h.b16 %v707
    %v1074 = vunpack.c.l.b16 %v708
    %v1075 = vunpack.c.h.b16 %v708
    %v1076 = vunpack.c.l.b16 %v709
    %v1077 = vunpack.c.h.b16 %v709
    %v1078 = vunpack.c.l.b16 %v710
    %v1079 = vunpack.c.h.b16 %v710
    %v1080 = vunpack.c.l.b16 %v711
    %v1081 = vunpack.c.h.b16 %v711
    %v1082 = vunpack.c.l.b16 %v712
    %v1083 = vunpack.c.h.b16 %v712
    %v1084 = vunpack.c.l.b16 %v713
    %v1085 = vunpack.c.h.b16 %v713
    %v1086 = vunpack.c.l.b16 %v714
    %v1087 = vunpack.c.h.b16 %v714
    %v1088 = vunpack.c.l.b16 %v715
    %v1089 = vunpack.c.h.b16 %v715
    %v1090 = vunpack.c.l.b16 %v716
    %v1091 = vunpack.c.h.b16 %v716
    %v1092 = vunpack.c.l.b16 %v717
    %v1093 = vunpack.c.h.b16 %v717
    %v1094 = vunpack.c.l.b16 %v718
    %v1095 = vunpack.c.h.b16 %v718
    %v1096 = vunpack.c.l.b16 %v719
    %v1097 = vunpack.c.h.b16 %v719
    %v1098 = vunpack.c.l.b16 %v720
    %v1099 = vunpack.c.h.b16 %v720
    %v1100 = vunpack.c.l.b16 %v721
    %v1101 = vunpack.c.h.b16 %v721
    %v1102 = vunpack.c.l.b16 %v722
    %v1103 = vunpack.c.h.b16 %v722
    %v1104 = vunpack.c.l.b16 %v723
    %v1105 = vunpack.c.h.b16 %v723
    %v1106 = vunpack.c.l.b16 %v724
    %v1107 = vunpack.c.h.b16 %v724
    %v1108 = vunpack.c.l.b16 %v725
    %v1109 = vunpack.c.h.b16 %v725
    %v1110 = vunpack.c.l.b16 %v726
    %v1111 = vunpack.c.h.b16 %v726
    %v1112 = vunpack.c.l.b16 %v727
    %v1113 = vunpack.c.h.b16 %v727
    %v1114 = vunpack.c.l.b16 %v728
    %v1115 = vunpack.c.h.b16 %v728
    %v1116 = vunpack.c.l.b16 %v729
    %v1117 = vunpack.c.h.b16 %v729
    %v1118 = vunpack.c.l.b16 %v730
    %v1119 = vunpack.c.h.b16 %v730
    %v1120 = vunpack.c.l.b16 %v731
    %v1121 = vunpack.c.h.b16 %v731
    %v1122 = vunpack.c.l.b16 %v732
    %v1123 = vunpack.c.h.b16 %v732
    %v1124 = vunpack.c.l.b16 %v733
    %v1125 = vunpack.c.h.b16 %v733
    %v1126 = vunpack.c.l.b16 %v734
    %v1127 = vunpack.c.h.b16 %v734
    %v1128 = vunpack.c.l.b16 %v735
    %v1129 = vunpack.c.h.b16 %v735
    %v1130 = vunpack.c.l.b16 %v736
    %v1131 = vunpack.c.h.b16 %v736
    %v1132 = vunpack.c.l.b16 %v737
    %v1133 = vunpack.c.h.b16 %v737
    %v1134 = vunpack.c.l.b16 %v738
    %v1135 = vunpack.c.h.b16 %v738
    %v1136 = vunpack.c.l.b16 %v739
    %v1137 = vunpack.c.h.b16 %v739
    %v1138 = vunpack.c.l.b16 %v740
    %v1139 = vunpack.c.h.b16 %v740
    %v1140 = vunpack.c.l.b16 %v741
    %v1141 = vunpack.c.h.b16 %v741
    %v1142 = vunpack.c.l.b16 %v742
    %v1143 = vunpack.c.h.b16 %v742
    %v1144 = vunpack.c.l.b16 %v743
    %v1145 = vunpack.c.h.b16 %v743
    %v1146 = vunpack.c.l.b16 %v744
    %v1147 = vunpack.c.h.b16 %v744
    %v1148 = vunpack.c.l.b16 %v745
    %v1149 = vunpack.c.h.b16 %v745
    %v1150 = vunpack.c.l.b16 %v746
    %v1151 = vunpack.c.h.b16 %v746
    %v1152 = vunpack.c.l.b16 %v747
    %v1153 = vunpack.c.h.b16 %v747
    %v1154 = vunpack.c.l.b16 %v748
    %v1155 = vunpack.c.h.b16 %v748
    %v1156 = vunpack.c.l.b16 %v749
    %v1157 = vunpack.c.h.b16 %v749
    %v1158 = vunpack.c.l.b16 %v750
    %v1159 = vunpack.c.h.b16 %v750
    %v1160 = vunpack.c.l.b16 %v751
    %v1161 = vunpack.c.h.b16 %v751
    %v1162 = vunpack.c.l.b16 %v752
    %v1163 = vunpack.c.h.b16 %v752
    %v1164 = vunpack.c.l.b16 %v753
    %v1165 = vunpack.c.h.b16 %v753
    %v1166 = vunpack.c.l.b16 %v754
    %v1167 = vunpack.c.h.b16 %v754
    %v1168 = vunpack.c.l.b16 %v755
    %v1169 = vunpack.c.h.b16 %v755
    %v1170 = vunpack.c.l.b16 %v756
    %v1171 = vunpack.c.h.b16 %v756
    %v1172 = vunpack.c.l.b16 %v757
    %v1173 = vunpack.c.h.b16 %v757
    %v1174 = vunpack.c.l.b16 %v758
    %v1175 = vunpack.c.h.b16 %v758
    %v1176 = vunpack.c.l.b16 %v759
    %v1177 = vunpack.c.h.b16 %v759
    %v1178 = vunpack.c.l.b16 %v760
    %v1179 = vunpack.c.h.b16 %v760
    %v1180 = vunpack.c.l.b16 %v761
    %v1181 = vunpack.c.h.b16 %v761
    %v1182 = vpack.c.b16 %v942, %v926
    %v1183 = vpack.c.b16 %v943, %v927
    %v1184 = vpack.c.b16 %v944, %v928
    %v1185 = vpack.c.b16 %v945, %v929
    %v1186 = vpack.c.b16 %v946, %v930
    %v1187 = vpack.c.b16 %v947, %v931
    %v1188 = vpack.c.b16 %v948, %v932
    %v1189 = vpack.c.b16 %v949, %v933
    %v1190 = vpack.c.b16 %v950, %v934
    %v1191 = vpack.c.b16 %v951, %v935
    %v1192 = vpack.c.b16 %v952, %v936
    %v1193 = vpack.c.b16 %v953, %v937
    %v1194 = vpack.c.b16 %v954, %v938
    %v1195 = vpack.c.b16 %v955, %v939
    %v1196 = vpack.c.b16 %v956, %v940
    %v1197 = vpack.c.b16 %v957, %v941
    %v1198 = vpack.c.b16 %v974, %v958
    %v1199 = vpack.c.b16 %v975, %v959
    %v1200 = vpack.c.b16 %v976, %v960
    %v1201 = vpack.c.b16 %v977, %v961
    %v1202 = vpack.c.b16 %v978, %v962
    %v1203 = vpack.c.b16 %v979, %v963
    %v1204 = vpack.c.b16 %v980, %v964
    %v1205 = vpack.c.b16 %v981, %v965
    %v1206 = vpack.c.b16 %v982, %v966
    %v1207 = vpack.c.b16 %v983, %v967
    %v1208 = vpack.c.b16 %v984, %v968
    %v1209 = vpack.c.b16 %v985, %v969
    %v1210 = vpack.c.b16 %v986, %v970
    %v1211 = vpack.c.b16 %v987, %v971
    %v1212 = vpack.c.b16 %v988, %v972
    %v1213 = vpack.c.b16 %v989, %v973
    %v1214 = vpack.c.b16 %v1006, %v990
    %v1215 = vpack.c.b16 %v1007, %v991
    %v1216 = vpack.c.b16 %v1008, %v992
    %v1217 = vpack.c.b16 %v1009, %v993
    %v1218 = vpack.c.b16 %v1010, %v994
    %v1219 = vpack.c.b16 %v1011, %v995
    %v1220 = vpack.c.b16 %v1012, %v996
    %v1221 = vpack.c.b16 %v1013, %v997
    %v1222 = vpack.c.b16 %v1014, %v998
    %v1223 = vpack.c.b16 %v1015, %v999
    %v1224 = vpack.c.b16 %v1016, %v1000
    %v1225 = vpack.c.b16 %v1017, %v1001
    %v1226 = vpack.c.b16 %v1018, %v1002
    %v1227 = vpack.c.b16 %v1019, %v1003
    %v1228 = vpack.c.b16 %v1020, %v1004
    %v1229 = vpack.c.b16 %v1021, %v1005
    %v1230 = vpack.c.b16 %v1038, %v1022
    %v1231 = vpack.c.b16 %v1039, %v1023
    %v1232 = vpack.c.b16 %v1040, %v1024
    %v1233 = vpack.c.b16 %v1041, %v1025
    %v1234 = vpack.c.b16 %v1042, %v1026
    %v1235 = vpack.c.b16 %v1043, %v1027
    %v1236 = vpack.c.b16 %v1044, %v1028
    %v1237 = vpack.c.b16 %v1045, %v1029
    %v1238 = vpack.c.b16 %v1046, %v1030
    %v1239 = vpack.c.b16 %v1047, %v1031
    %v1240 = vpack.c.b16 %v1048, %v1032
    %v1241 = vpack.c.b16 %v1049, %v1033
    %v1242 = vpack.c.b16 %v1050, %v1034
    %v1243 = vpack.c.b16 %v1051, %v1035
    %v1244 = vpack.c.b16 %v1052, %v1036
    %v1245 = vpack.c.b16 %v1053, %v1037
    %v1246 = vpack.c.b16 %v1070, %v1054
    %v1247 = vpack.c.b16 %v1071, %v1055
    %v1248 = vpack.c.b16 %v1072, %v1056
    %v1249 = vpack.c.b16 %v1073, %v1057
    %v1250 = vpack.c.b16 %v1074, %v1058
    %v1251 = vpack.c.b16 %v1075, %v1059
    %v1252 = vpack.c.b16 %v1076, %v1060
    %v1253 = vpack.c.b16 %v1077, %v1061
    %v1254 = vpack.c.b16 %v1078, %v1062
    %v1255 = vpack.c.b16 %v1079, %v1063
    %v1256 = vpack.c.b16 %v1080, %v1064
    %v1257 = vpack.c.b16 %v1081, %v1065
    %v1258 = vpack.c.b16 %v1082, %v1066
    %v1259 = vpack.c.b16 %v1083, %v1067
    %v1260 = vpack.c.b16 %v1084, %v1068
    %v1261 = vpack.c.b16 %v1085, %v1069
    %v1262 = vpack.c.b16 %v1102, %v1086
    %v1263 = vpack.c.b16 %v1103, %v1087
    %v1264 = vpack.c.b16 %v1104, %v1088
    %v1265 = vpack.c.b16 %v1105, %v1089
    %v1266 = vpack.c.b16 %v1106, %v1090
    %v1267 = vpack.c.b16 %v1107, %v1091
    %v1268 = vpack.c.b16 %v1108, %v1092
    %v1269 = vpack.c.b16 %v1109, %v1093
    %v1270 = vpack.c.b16 %v1110, %v1094
    %v1271 = vpack.c.b16 %v1111, %v1095
    %v1272 = vpack.c.b16 %v1112, %v1096
    %v1273 = vpack.c.b16 %v1113, %v1097
    %v1274 = vpack.c.b16 %v1114, %v1098
    %v1275 = vpack.c.b16 %v1115, %v1099
    %v1276 = vpack.c.b16 %v1116, %v1100
    %v1277 = vpack.c.b16 %v1117, %v1101
    %v1278 = vpack.c.b16 %v1134, %v1118
    %v1279 = vpack.c.b16 %v1135, %v1119
    %v1280 = vpack.c.b16 %v1136, %v1120
    %v1281 = vpack.c.b16 %v1137, %v1121
    %v1282 = vpack.c.b16 %v1138, %v1122
    %v1283 = vpack.c.b16 %v1139, %v1123
    %v1284 = vpack.c.b16 %v1140, %v1124
    %v1285 = vpack.c.b16 %v1141, %v1125
    %v1286 = vpack.c.b16 %v1142, %v1126
    %v1287 = vpack.c.b16 %v1143, %v1127
    %v1288 = vpack.c.b16 %v1144, %v1128
    %v1289 = vpack.c.b16 %v1145, %v1129
    %v1290 = vpack.c.b16 %v1146, %v1130
    %v1291 = vpack.c.b16 %v1147, %v1131
    %v1292 = vpack.c.b16 %v1148, %v1132
    %v1293 = vpack.c.b16 %v1149, %v1133
    %v1294 = vpack.c.b16 %v1166, %v1150
    %v1295 = vpack.c.b16 %v1167, %v1151
    %v1296 = vpack.c.b16 %v1168, %v1152
    %v1297 = vpack.c.b16 %v1169, %v1153
    %v1298 = vpack.c.b16 %v1170, %v1154
    %v1299 = vpack.c.b16 %v1171, %v1155
    %v1300 = vpack.c.b16 %v1172, %v1156
    %v1301 = vpack.c.b16 %v1173, %v1157
    %v1302 = vpack.c.b16 %v1174, %v1158
    %v1303 = vpack.c.b16 %v1175, %v1159
    %v1304 = vpack.c.b16 %v1176, %v1160
    %v1305 = vpack.c.b16 %v1177, %v1161
    %v1306 = vpack.c.b16 %v1178, %v1162
    %v1307 = vpack.c.b16 %v1179, %v1163
    %v1308 = vpack.c.b16 %v1180, %v1164
    %v1309 = vpack.c.b16 %v1181, %v1165
    %1438 = vmatpush.bf16.msra.mxu0 %v1294
    %1439 = vmatpush.bf16.msra.mxu0 %v1278
    %1440 = vmatpush.bf16.msra.mxu0 %v1262
    %1441 = vmatpush.bf16.msra.mxu0 %v1246
    %1442 = vmatpush.bf16.msra.mxu0 %v1230
    %1443 = vmatpush.bf16.msra.mxu0 %v1214
    %1444 = vmatpush.bf16.msra.mxu0 %v1198
    %1445 = vmatpush.bf16.msra.mxu0 %v1182
    %1446 = vmatmul.bf16.gmra.mxu0 %v633
    %v1447 = vpop.f32.mrf.mxu0
    %v1448 = vadd.f32 %v766, %v1447
    %v1449 = vpop.f32.mrf.mxu0
    %v1450 = vadd.f32 %v766, %v1449
    %1451 = vdwg.mxu0
    %1452 = vmatpush.bf16.msra.mxu0 %v1295
    %1453 = vmatpush.bf16.msra.mxu0 %v1279
    %1454 = vmatpush.bf16.msra.mxu0 %v1263
    %1455 = vmatpush.bf16.msra.mxu0 %v1247
    %1456 = vmatpush.bf16.msra.mxu0 %v1231
    %1457 = vmatpush.bf16.msra.mxu0 %v1215
    %1458 = vmatpush.bf16.msra.mxu0 %v1199
    %1459 = vmatpush.bf16.msra.mxu0 %v1183
    %1460 = vmatmul.bf16.gmra.mxu0 %v633
    %v1461 = vpop.f32.mrf.mxu0
    %v1462 = vadd.f32 %v767, %v1461
    %v1463 = vpop.f32.mrf.mxu0
    %v1464 = vadd.f32 %v767, %v1463
    %1465 = vdwg.mxu0
    %1466 = vmatpush.bf16.msra.mxu0 %v1296
    %1467 = vmatpush.bf16.msra.mxu0 %v1280
    %1468 = vmatpush.bf16.msra.mxu0 %v1264
    %1469 = vmatpush.bf16.msra.mxu0 %v1248
    %1470 = vmatpush.bf16.msra.mxu0 %v1232
    %1471 = vmatpush.bf16.msra.mxu0 %v1216
    %1472 = vmatpush.bf16.msra.mxu0 %v1200
    %1473 = vmatpush.bf16.msra.mxu0 %v1184
    %1474 = vmatmul.bf16.gmra.mxu0 %v633
    %v1475 = vpop.f32.mrf.mxu0
    %v1476 = vadd.f32 %v768, %v1475
    %v1477 = vpop.f32.mrf.mxu0
    %v1478 = vadd.f32 %v768, %v1477
    %1479 = vdwg.mxu0
    %1480 = vmatpush.bf16.msra.mxu0 %v1297
    %1481 = vmatpush.bf16.msra.mxu0 %v1281
    %1482 = vmatpush.bf16.msra.mxu0 %v1265
    %1483 = vmatpush.bf16.msra.mxu0 %v1249
    %1484 = vmatpush.bf16.msra.mxu0 %v1233
    %1485 = vmatpush.bf16.msra.mxu0 %v1217
    %1486 = vmatpush.bf16.msra.mxu0 %v1201
    %1487 = vmatpush.bf16.msra.mxu0 %v1185
    %1488 = vmatmul.bf16.gmra.mxu0 %v633
    %v1489 = vpop.f32.mrf.mxu0
    %v1490 = vadd.f32 %v769, %v1489
    %v1491 = vpop.f32.mrf.mxu0
    %v1492 = vadd.f32 %v769, %v1491
    %1493 = vdwg.mxu0
    %1494 = vmatpush.bf16.msra.mxu0 %v1298
    %1495 = vmatpush.bf16.msra.mxu0 %v1282
    %1496 = vmatpush.bf16.msra.mxu0 %v1266
    %1497 = vmatpush.bf16.msra.mxu0 %v1250
    %1498 = vmatpush.bf16.msra.mxu0 %v1234
    %1499 = vmatpush.bf16.msra.mxu0 %v1218
    %1500 = vmatpush.bf16.msra.mxu0 %v1202
    %1501 = vmatpush.bf16.msra.mxu0 %v1186
    %1502 = vmatmul.bf16.gmra.mxu0 %v633
    %v1503 = vpop.f32.mrf.mxu0
    %v1504 = vadd.f32 %v770, %v1503
    %v1505 = vpop.f32.mrf.mxu0
    %v1506 = vadd.f32 %v770, %v1505
    %1507 = vdwg.mxu0
    %1508 = vmatpush.bf16.msra.mxu0 %v1299
    %1509 = vmatpush.bf16.msra.mxu0 %v1283
    %1510 = vmatpush.bf16.msra.mxu0 %v1267
    %1511 = vmatpush.bf16.msra.mxu0 %v1251
    %1512 = vmatpush.bf16.msra.mxu0 %v1235
    %1513 = vmatpush.bf16.msra.mxu0 %v1219
    %1514 = vmatpush.bf16.msra.mxu0 %v1203
    %1515 = vmatpush.bf16.msra.mxu0 %v1187
    %1516 = vmatmul.bf16.gmra.mxu0 %v633
    %v1517 = vpop.f32.mrf.mxu0
    %v1518 = vadd.f32 %v771, %v1517
    %v1519 = vpop.f32.mrf.mxu0
    %v1520 = vadd.f32 %v771, %v1519
    %1521 = vdwg.mxu0
    %1522 = vmatpush.bf16.msra.mxu0 %v1300
    %1523 = vmatpush.bf16.msra.mxu0 %v1284
    %1524 = vmatpush.bf16.msra.mxu0 %v1268
    %1525 = vmatpush.bf16.msra.mxu0 %v1252
    %1526 = vmatpush.bf16.msra.mxu0 %v1236
    %1527 = vmatpush.bf16.msra.mxu0 %v1220
    %1528 = vmatpush.bf16.msra.mxu0 %v1204
    %1529 = vmatpush.bf16.msra.mxu0 %v1188
    %1530 = vmatmul.bf16.gmra.mxu0 %v633
    %v1531 = vpop.f32.mrf.mxu0
    %v1532 = vadd.f32 %v772, %v1531
    %v1533 = vpop.f32.mrf.mxu0
    %v1534 = vadd.f32 %v772, %v1533
    %1535 = vdwg.mxu0
    %1536 = vmatpush.bf16.msra.mxu0 %v1301
    %1537 = vmatpush.bf16.msra.mxu0 %v1285
    %1538 = vmatpush.bf16.msra.mxu0 %v1269
    %1539 = vmatpush.bf16.msra.mxu0 %v1253
    %1540 = vmatpush.bf16.msra.mxu0 %v1237
    %1541 = vmatpush.bf16.msra.mxu0 %v1221
    %1542 = vmatpush.bf16.msra.mxu0 %v1205
    %1543 = vmatpush.bf16.msra.mxu0 %v1189
    %1544 = vmatmul.bf16.gmra.mxu0 %v633
    %v1545 = vpop.f32.mrf.mxu0
    %v1546 = vadd.f32 %v773, %v1545
    %v1547 = vpop.f32.mrf.mxu0
    %v1548 = vadd.f32 %v773, %v1547
    %1549 = vdwg.mxu0
    %1550 = vmatpush.bf16.msra.mxu0 %v1302
    %1551 = vmatpush.bf16.msra.mxu0 %v1286
    %1552 = vmatpush.bf16.msra.mxu0 %v1270
    %1553 = vmatpush.bf16.msra.mxu0 %v1254
    %1554 = vmatpush.bf16.msra.mxu0 %v1238
    %1555 = vmatpush.bf16.msra.mxu0 %v1222
    %1556 = vmatpush.bf16.msra.mxu0 %v1206
    %1557 = vmatpush.bf16.msra.mxu0 %v1190
    %1558 = vmatmul.bf16.gmra.mxu0 %v633
    %v1559 = vpop.f32.mrf.mxu0
    %v1560 = vadd.f32 %v774, %v1559
    %v1561 = vpop.f32.mrf.mxu0
    %v1562 = vadd.f32 %v774, %v1561
    %1563 = vdwg.mxu0
    %1564 = vmatpush.bf16.msra.mxu0 %v1303
    %1565 = vmatpush.bf16.msra.mxu0 %v1287
    %1566 = vmatpush.bf16.msra.mxu0 %v1271
    %1567 = vmatpush.bf16.msra.mxu0 %v1255
    %1568 = vmatpush.bf16.msra.mxu0 %v1239
    %1569 = vmatpush.bf16.msra.mxu0 %v1223
    %1570 = vmatpush.bf16.msra.mxu0 %v1207
    %1571 = vmatpush.bf16.msra.mxu0 %v1191
    %1572 = vmatmul.bf16.gmra.mxu0 %v633
    %v1573 = vpop.f32.mrf.mxu0
    %v1574 = vadd.f32 %v775, %v1573
    %v1575 = vpop.f32.mrf.mxu0
    %v1576 = vadd.f32 %v775, %v1575
    %1577 = vdwg.mxu0
    %1578 = vmatpush.bf16.msra.mxu0 %v1304
    %1579 = vmatpush.bf16.msra.mxu0 %v1288
    %1580 = vmatpush.bf16.msra.mxu0 %v1272
    %1581 = vmatpush.bf16.msra.mxu0 %v1256
    %1582 = vmatpush.bf16.msra.mxu0 %v1240
    %1583 = vmatpush.bf16.msra.mxu0 %v1224
    %1584 = vmatpush.bf16.msra.mxu0 %v1208
    %1585 = vmatpush.bf16.msra.mxu0 %v1192
    %1586 = vmatmul.bf16.gmra.mxu0 %v633
    %v1587 = vpop.f32.mrf.mxu0
    %v1588 = vadd.f32 %v776, %v1587
    %v1589 = vpop.f32.mrf.mxu0
    %v1590 = vadd.f32 %v776, %v1589
    %1591 = vdwg.mxu0
    %1592 = vmatpush.bf16.msra.mxu0 %v1305
    %1593 = vmatpush.bf16.msra.mxu0 %v1289
    %1594 = vmatpush.bf16.msra.mxu0 %v1273
    %1595 = vmatpush.bf16.msra.mxu0 %v1257
    %1596 = vmatpush.bf16.msra.mxu0 %v1241
    %1597 = vmatpush.bf16.msra.mxu0 %v1225
    %1598 = vmatpush.bf16.msra.mxu0 %v1209
    %1599 = vmatpush.bf16.msra.mxu0 %v1193
    %1600 = vmatmul.bf16.gmra.mxu0 %v633
    %v1601 = vpop.f32.mrf.mxu0
    %v1602 = vadd.f32 %v777, %v1601
    %v1603 = vpop.f32.mrf.mxu0
    %v1604 = vadd.f32 %v777, %v1603
    %1605 = vdwg.mxu0
    %1606 = vmatpush.bf16.msra.mxu0 %v1306
    %1607 = vmatpush.bf16.msra.mxu0 %v1290
    %1608 = vmatpush.bf16.msra.mxu0 %v1274
    %1609 = vmatpush.bf16.msra.mxu0 %v1258
    %1610 = vmatpush.bf16.msra.mxu0 %v1242
    %1611 = vmatpush.bf16.msra.mxu0 %v1226
    %1612 = vmatpush.bf16.msra.mxu0 %v1210
    %1613 = vmatpush.bf16.msra.mxu0 %v1194
    %1614 = vmatmul.bf16.gmra.mxu0 %v633
    %v1615 = vpop.f32.mrf.mxu0
    %v1616 = vadd.f32 %v778, %v1615
    %v1617 = vpop.f32.mrf.mxu0
    %v1618 = vadd.f32 %v778, %v1617
    %1619 = vdwg.mxu0
    %1620 = vmatpush.bf16.msra.mxu0 %v1307
    %1621 = vmatpush.bf16.msra.mxu0 %v1291
    %1622 = vmatpush.bf16.msra.mxu0 %v1275
    %1623 = vmatpush.bf16.msra.mxu0 %v1259
    %1624 = vmatpush.bf16.msra.mxu0 %v1243
    %1625 = vmatpush.bf16.msra.mxu0 %v1227
    %1626 = vmatpush.bf16.msra.mxu0 %v1211
    %1627 = vmatpush.bf16.msra.mxu0 %v1195
    %1628 = vmatmul.bf16.gmra.mxu0 %v633
    %v1629 = vpop.f32.mrf.mxu0
    %v1630 = vadd.f32 %v779, %v1629
    %v1631 = vpop.f32.mrf.mxu0
    %v1632 = vadd.f32 %v779, %v1631
    %1633 = vdwg.mxu0
    %1634 = vmatpush.bf16.msra.mxu0 %v1308
    %1635 = vmatpush.bf16.msra.mxu0 %v1292
    %1636 = vmatpush.bf16.msra.mxu0 %v1276
    %1637 = vmatpush.bf16.msra.mxu0 %v1260
    %1638 = vmatpush.bf16.msra.mxu0 %v1244
    %1639 = vmatpush.bf16.msra.mxu0 %v1228
    %1640 = vmatpush.bf16.msra.mxu0 %v1212
    %1641 = vmatpush.bf16.msra.mxu0 %v1196
    %1642 = vmatmul.bf16.gmra.mxu0 %v633
    %v1643 = vpop.f32.mrf.mxu0
    %v1644 = vadd.f32 %v780, %v1643
    %v1645 = vpop.f32.mrf.mxu0
    %v1646 = vadd.f32 %v780, %v1645
    %1647 = vdwg.mxu0
    %1648 = vmatpush.bf16.msra.mxu0 %v1309
    %1649 = vmatpush.bf16.msra.mxu0 %v1293
    %1650 = vmatpush.bf16.msra.mxu0 %v1277
    %1651 = vmatpush.bf16.msra.mxu0 %v1261
    %1652 = vmatpush.bf16.msra.mxu0 %v1245
    %1653 = vmatpush.bf16.msra.mxu0 %v1229
    %1654 = vmatpush.bf16.msra.mxu0 %v1213
    %1655 = vmatpush.bf16.msra.mxu0 %v1197
    %1656 = vmatmul.bf16.gmra.mxu0 %v633
    %v1657 = vpop.f32.mrf.mxu0
    %v1658 = vadd.f32 %v781, %v1657
    %v1659 = vpop.f32.mrf.mxu0
    %v1660 = vadd.f32 %v781, %v1659
    %1661 = vdwg.mxu0
    %v1662 = vmax.f32 %v1448, 0.0
    %v1663 = vmax.f32 %v1462, 0.0
    %v1664 = vmax.f32 %v1476, 0.0
    %v1665 = vmax.f32 %v1490, 0.0
    %v1666 = vmax.f32 %v1504, 0.0
    %v1667 = vmax.f32 %v1518, 0.0
    %v1668 = vmax.f32 %v1532, 0.0
    %v1669 = vmax.f32 %v1546, 0.0
    %v1670 = vmax.f32 %v1560, 0.0
    %v1671 = vmax.f32 %v1574, 0.0
    %v1672 = vmax.f32 %v1588, 0.0
    %v1673 = vmax.f32 %v1602, 0.0
    %v1674 = vmax.f32 %v1616, 0.0
    %v1675 = vmax.f32 %v1630, 0.0
    %v1676 = vmax.f32 %v1644, 0.0
    %v1677 = vmax.f32 %v1658, 0.0
    %v1678 = vmax.f32 %v1450, 0.0
    %v1679 = vmax.f32 %v1464, 0.0
    %v1680 = vmax.f32 %v1478, 0.0
    %v1681 = vmax.f32 %v1492, 0.0
    %v1682 = vmax.f32 %v1506, 0.0
    %v1683 = vmax.f32 %v1520, 0.0
    %v1684 = vmax.f32 %v1534, 0.0
    %v1685 = vmax.f32 %v1548, 0.0
    %v1686 = vmax.f32 %v1562, 0.0
    %v1687 = vmax.f32 %v1576, 0.0
    %v1688 = vmax.f32 %v1590, 0.0
    %v1689 = vmax.f32 %v1604, 0.0
    %v1690 = vmax.f32 %v1618, 0.0
    %v1691 = vmax.f32 %v1632, 0.0
    %v1692 = vmax.f32 %v1646, 0.0
    %v1693 = vmax.f32 %v1660, 0.0
    %v1694 = vpack.c.bf16 %v1678, %v1662
    %v1695 = vpack.c.bf16 %v1679, %v1663
    %v1696 = vpack.c.bf16 %v1680, %v1664
    %v1697 = vpack.c.bf16 %v1681, %v1665
    %v1698 = vpack.c.bf16 %v1682, %v1666
    %v1699 = vpack.c.bf16 %v1683, %v1667
    %v1700 = vpack.c.bf16 %v1684, %v1668
    %v1701 = vpack.c.bf16 %v1685, %v1669
    %v1702 = vpack.c.bf16 %v1686, %v1670
    %v1703 = vpack.c.bf16 %v1687, %v1671
    %v1704 = vpack.c.bf16 %v1688, %v1672
    %v1705 = vpack.c.bf16 %v1689, %v1673
    %v1706 = vpack.c.bf16 %v1690, %v1674
    %v1707 = vpack.c.bf16 %v1691, %v1675
    %v1708 = vpack.c.bf16 %v1692, %v1676
    %v1709 = vpack.c.bf16 %v1693, %v1677
    %v1710 = vld [vmem:[#allocation13] sm:$0xf]
    %v1711 = vld [vmem:[#allocation13 + $0x4] sm:$0xf]
    %v1712 = vld [vmem:[#allocation13 + $0x8] sm:$0xf]
    %v1713 = vld [vmem:[#allocation13 + $0xc] sm:$0xf]
    %v1714 = vld [vmem:[#allocation13 + $0x10] sm:$0xf]
    %v1715 = vld [vmem:[#allocation13 + $0x14] sm:$0xf]
    %v1716 = vld [vmem:[#allocation13 + $0x18] sm:$0xf]
    %v1717 = vld [vmem:[#allocation13 + $0x1c] sm:$0xf]
    %v1718 = vld [vmem:[#allocation13 + $0x20] sm:$0xf]
    %v1719 = vld [vmem:[#allocation13 + $0x24] sm:$0xf]
    %v1720 = vld [vmem:[#allocation13 + $0x28] sm:$0xf]
    %v1721 = vld [vmem:[#allocation13 + $0x2c] sm:$0xf]
    %v1722 = vld [vmem:[#allocation13 + $0x30] sm:$0xf]
    %v1723 = vld [vmem:[#allocation13 + $0x34] sm:$0xf]
    %v1724 = vld [vmem:[#allocation13 + $0x38] sm:$0xf]
    %v1725 = vld [vmem:[#allocation13 + $0x3c] sm:$0xf]
    %v1726 = vld [vmem:[#allocation13 + $0x40] sm:$0xf]
    %v1727 = vld [vmem:[#allocation13 + $0x44] sm:$0xf]
    %v1728 = vld [vmem:[#allocation13 + $0x48] sm:$0xf]
    %v1729 = vld [vmem:[#allocation13 + $0x4c] sm:$0xf]
    %v1730 = vld [vmem:[#allocation13 + $0x50] sm:$0xf]
    %v1731 = vld [vmem:[#allocation13 + $0x54] sm:$0xf]
    %v1732 = vld [vmem:[#allocation13 + $0x58] sm:$0xf]
    %v1733 = vld [vmem:[#allocation13 + $0x5c] sm:$0xf]
    %v1734 = vld [vmem:[#allocation13 + $0x60] sm:$0xf]
    %v1735 = vld [vmem:[#allocation13 + $0x64] sm:$0xf]
    %v1736 = vld [vmem:[#allocation13 + $0x68] sm:$0xf]
    %v1737 = vld [vmem:[#allocation13 + $0x6c] sm:$0xf]
    %v1738 = vld [vmem:[#allocation13 + $0x70] sm:$0xf]
    %v1739 = vld [vmem:[#allocation13 + $0x74] sm:$0xf]
    %v1740 = vld [vmem:[#allocation13 + $0x78] sm:$0xf]
    %v1741 = vld [vmem:[#allocation13 + $0x7c] sm:$0xf]
    %v1742 = vld [vmem:[#allocation13 + $0x80] sm:$0xf]
    %v1743 = vld [vmem:[#allocation13 + $0x84] sm:$0xf]
    %v1744 = vld [vmem:[#allocation13 + $0x88] sm:$0xf]
    %v1745 = vld [vmem:[#allocation13 + $0x8c] sm:$0xf]
    %v1746 = vld [vmem:[#allocation13 + $0x90] sm:$0xf]
    %v1747 = vld [vmem:[#allocation13 + $0x94] sm:$0xf]
    %v1748 = vld [vmem:[#allocation13 + $0x98] sm:$0xf]
    %v1749 = vld [vmem:[#allocation13 + $0x9c] sm:$0xf]
    %v1750 = vld [vmem:[#allocation13 + $0xa0] sm:$0xf]
    %v1751 = vld [vmem:[#allocation13 + $0xa4] sm:$0xf]
    %v1752 = vld [vmem:[#allocation13 + $0xa8] sm:$0xf]
    %v1753 = vld [vmem:[#allocation13 + $0xac] sm:$0xf]
    %v1754 = vld [vmem:[#allocation13 + $0xb0] sm:$0xf]
    %v1755 = vld [vmem:[#allocation13 + $0xb4] sm:$0xf]
    %v1756 = vld [vmem:[#allocation13 + $0xb8] sm:$0xf]
    %v1757 = vld [vmem:[#allocation13 + $0xbc] sm:$0xf]
    %v1758 = vld [vmem:[#allocation13 + $0xc0] sm:$0xf]
    %v1759 = vld [vmem:[#allocation13 + $0xc4] sm:$0xf]
    %v1760 = vld [vmem:[#allocation13 + $0xc8] sm:$0xf]
    %v1761 = vld [vmem:[#allocation13 + $0xcc] sm:$0xf]
    %v1762 = vld [vmem:[#allocation13 + $0xd0] sm:$0xf]
    %v1763 = vld [vmem:[#allocation13 + $0xd4] sm:$0xf]
    %v1764 = vld [vmem:[#allocation13 + $0xd8] sm:$0xf]
    %v1765 = vld [vmem:[#allocation13 + $0xdc] sm:$0xf]
    %v1766 = vld [vmem:[#allocation13 + $0xe0] sm:$0xf]
    %v1767 = vld [vmem:[#allocation13 + $0xe4] sm:$0xf]
    %v1768 = vld [vmem:[#allocation13 + $0xe8] sm:$0xf]
    %v1769 = vld [vmem:[#allocation13 + $0xec] sm:$0xf]
    %v1770 = vld [vmem:[#allocation13 + $0xf0] sm:$0xf]
    %v1771 = vld [vmem:[#allocation13 + $0xf4] sm:$0xf]
    %v1772 = vld [vmem:[#allocation13 + $0xf8] sm:$0xf]
    %v1773 = vld [vmem:[#allocation13 + $0xfc] sm:$0xf]
    %v1774 = vld [vmem:[#allocation13 + $0x100] sm:$0xf]
    %v1775 = vld [vmem:[#allocation13 + $0x104] sm:$0xf]
    %v1776 = vld [vmem:[#allocation13 + $0x108] sm:$0xf]
    %v1777 = vld [vmem:[#allocation13 + $0x10c] sm:$0xf]
    %v1778 = vld [vmem:[#allocation13 + $0x110] sm:$0xf]
    %v1779 = vld [vmem:[#allocation13 + $0x114] sm:$0xf]
    %v1780 = vld [vmem:[#allocation13 + $0x118] sm:$0xf]
    %v1781 = vld [vmem:[#allocation13 + $0x11c] sm:$0xf]
    %v1782 = vld [vmem:[#allocation13 + $0x120] sm:$0xf]
    %v1783 = vld [vmem:[#allocation13 + $0x124] sm:$0xf]
    %v1784 = vld [vmem:[#allocation13 + $0x128] sm:$0xf]
    %v1785 = vld [vmem:[#allocation13 + $0x12c] sm:$0xf]
    %v1786 = vld [vmem:[#allocation13 + $0x130] sm:$0xf]
    %v1787 = vld [vmem:[#allocation13 + $0x134] sm:$0xf]
    %v1788 = vld [vmem:[#allocation13 + $0x138] sm:$0xf]
    %v1789 = vld [vmem:[#allocation13 + $0x13c] sm:$0xf]
    %v1790 = vld [vmem:[#allocation13 + $0x140] sm:$0xf]
    %v1791 = vld [vmem:[#allocation13 + $0x144] sm:$0xf]
    %v1792 = vld [vmem:[#allocation13 + $0x148] sm:$0xf]
    %v1793 = vld [vmem:[#allocation13 + $0x14c] sm:$0xf]
    %v1794 = vld [vmem:[#allocation13 + $0x150] sm:$0xf]
    %v1795 = vld [vmem:[#allocation13 + $0x154] sm:$0xf]
    %v1796 = vld [vmem:[#allocation13 + $0x158] sm:$0xf]
    %v1797 = vld [vmem:[#allocation13 + $0x15c] sm:$0xf]
    %v1798 = vld [vmem:[#allocation13 + $0x160] sm:$0xf]
    %v1799 = vld [vmem:[#allocation13 + $0x164] sm:$0xf]
    %v1800 = vld [vmem:[#allocation13 + $0x168] sm:$0xf]
    %v1801 = vld [vmem:[#allocation13 + $0x16c] sm:$0xf]
    %v1802 = vld [vmem:[#allocation13 + $0x170] sm:$0xf]
    %v1803 = vld [vmem:[#allocation13 + $0x174] sm:$0xf]
    %v1804 = vld [vmem:[#allocation13 + $0x178] sm:$0xf]
    %v1805 = vld [vmem:[#allocation13 + $0x17c] sm:$0xf]
    %v1806 = vld [vmem:[#allocation13 + $0x180] sm:$0xf]
    %v1807 = vld [vmem:[#allocation13 + $0x184] sm:$0xf]
    %v1808 = vld [vmem:[#allocation13 + $0x188] sm:$0xf]
    %v1809 = vld [vmem:[#allocation13 + $0x18c] sm:$0xf]
    %v1810 = vld [vmem:[#allocation13 + $0x190] sm:$0xf]
    %v1811 = vld [vmem:[#allocation13 + $0x194] sm:$0xf]
    %v1812 = vld [vmem:[#allocation13 + $0x198] sm:$0xf]
    %v1813 = vld [vmem:[#allocation13 + $0x19c] sm:$0xf]
    %v1814 = vld [vmem:[#allocation13 + $0x1a0] sm:$0xf]
    %v1815 = vld [vmem:[#allocation13 + $0x1a4] sm:$0xf]
    %v1816 = vld [vmem:[#allocation13 + $0x1a8] sm:$0xf]
    %v1817 = vld [vmem:[#allocation13 + $0x1ac] sm:$0xf]
    %v1818 = vld [vmem:[#allocation13 + $0x1b0] sm:$0xf]
    %v1819 = vld [vmem:[#allocation13 + $0x1b4] sm:$0xf]
    %v1820 = vld [vmem:[#allocation13 + $0x1b8] sm:$0xf]
    %v1821 = vld [vmem:[#allocation13 + $0x1bc] sm:$0xf]
    %v1822 = vld [vmem:[#allocation13 + $0x1c0] sm:$0xf]
    %v1823 = vld [vmem:[#allocation13 + $0x1c4] sm:$0xf]
    %v1824 = vld [vmem:[#allocation13 + $0x1c8] sm:$0xf]
    %v1825 = vld [vmem:[#allocation13 + $0x1cc] sm:$0xf]
    %v1826 = vld [vmem:[#allocation13 + $0x1d0] sm:$0xf]
    %v1827 = vld [vmem:[#allocation13 + $0x1d4] sm:$0xf]
    %v1828 = vld [vmem:[#allocation13 + $0x1d8] sm:$0xf]
    %v1829 = vld [vmem:[#allocation13 + $0x1dc] sm:$0xf]
    %v1830 = vld [vmem:[#allocation13 + $0x1e0] sm:$0xf]
    %v1831 = vld [vmem:[#allocation13 + $0x1e4] sm:$0xf]
    %v1832 = vld [vmem:[#allocation13 + $0x1e8] sm:$0xf]
    %v1833 = vld [vmem:[#allocation13 + $0x1ec] sm:$0xf]
    %v1834 = vld [vmem:[#allocation13 + $0x1f0] sm:$0xf]
    %v1835 = vld [vmem:[#allocation13 + $0x1f4] sm:$0xf]
    %v1836 = vld [vmem:[#allocation13 + $0x1f8] sm:$0xf]
    %v1837 = vld [vmem:[#allocation13 + $0x1fc] sm:$0xf]
    %v1838 = vld [vmem:[#allocation13 + $0x200] sm:$0xf]
    %v1839 = vld [vmem:[#allocation13 + $0x204] sm:$0xf]
    %v1840 = vld [vmem:[#allocation13 + $0x208] sm:$0xf]
    %v1841 = vld [vmem:[#allocation13 + $0x20c] sm:$0xf]
    %v1842 = vld [vmem:[#allocation13 + $0x210] sm:$0xf]
    %v1843 = vld [vmem:[#allocation13 + $0x214] sm:$0xf]
    %v1844 = vld [vmem:[#allocation13 + $0x218] sm:$0xf]
    %v1845 = vld [vmem:[#allocation13 + $0x21c] sm:$0xf]
    %v1846 = vld [vmem:[#allocation13 + $0x220] sm:$0xf]
    %v1847 = vld [vmem:[#allocation13 + $0x224] sm:$0xf]
    %v1848 = vld [vmem:[#allocation13 + $0x228] sm:$0xf]
    %v1849 = vld [vmem:[#allocation13 + $0x22c] sm:$0xf]
    %v1850 = vld [vmem:[#allocation13 + $0x230] sm:$0xf]
    %v1851 = vld [vmem:[#allocation13 + $0x234] sm:$0xf]
    %v1852 = vld [vmem:[#allocation13 + $0x238] sm:$0xf]
    %v1853 = vld [vmem:[#allocation13 + $0x23c] sm:$0xf]
    %v1854 = vld [vmem:[#allocation13 + $0x240] sm:$0xf]
    %v1855 = vld [vmem:[#allocation13 + $0x244] sm:$0xf]
    %v1856 = vld [vmem:[#allocation13 + $0x248] sm:$0xf]
    %v1857 = vld [vmem:[#allocation13 + $0x24c] sm:$0xf]
    %v1858 = vld [vmem:[#allocation13 + $0x250] sm:$0xf]
    %v1859 = vld [vmem:[#allocation13 + $0x254] sm:$0xf]
    %v1860 = vld [vmem:[#allocation13 + $0x258] sm:$0xf]
    %v1861 = vld [vmem:[#allocation13 + $0x25c] sm:$0xf]
    %v1862 = vld [vmem:[#allocation13 + $0x260] sm:$0xf]
    %v1863 = vld [vmem:[#allocation13 + $0x264] sm:$0xf]
    %v1864 = vld [vmem:[#allocation13 + $0x268] sm:$0xf]
    %v1865 = vld [vmem:[#allocation13 + $0x26c] sm:$0xf]
    %v1866 = vld [vmem:[#allocation13 + $0x270] sm:$0xf]
    %v1867 = vld [vmem:[#allocation13 + $0x274] sm:$0xf]
    %v1868 = vld [vmem:[#allocation13 + $0x278] sm:$0xf]
    %v1869 = vld [vmem:[#allocation13 + $0x27c] sm:$0xf]
    %v1870 = vld [vmem:[#allocation13 + $0x280] sm:$0xf]
    %v1871 = vld [vmem:[#allocation13 + $0x284] sm:$0xf]
    %v1872 = vld [vmem:[#allocation13 + $0x288] sm:$0xf]
    %v1873 = vld [vmem:[#allocation13 + $0x28c] sm:$0xf]
    %v1874 = vld [vmem:[#allocation13 + $0x290] sm:$0xf]
    %v1875 = vld [vmem:[#allocation13 + $0x294] sm:$0xf]
    %v1876 = vld [vmem:[#allocation13 + $0x298] sm:$0xf]
    %v1877 = vld [vmem:[#allocation13 + $0x29c] sm:$0xf]
    %v1878 = vld [vmem:[#allocation13 + $0x2a0] sm:$0xf]
    %v1879 = vld [vmem:[#allocation13 + $0x2a4] sm:$0xf]
    %v1880 = vld [vmem:[#allocation13 + $0x2a8] sm:$0xf]
    %v1881 = vld [vmem:[#allocation13 + $0x2ac] sm:$0xf]
    %v1882 = vld [vmem:[#allocation13 + $0x2b0] sm:$0xf]
    %v1883 = vld [vmem:[#allocation13 + $0x2b4] sm:$0xf]
    %v1884 = vld [vmem:[#allocation13 + $0x2b8] sm:$0xf]
    %v1885 = vld [vmem:[#allocation13 + $0x2bc] sm:$0xf]
    %v1886 = vld [vmem:[#allocation13 + $0x2c0] sm:$0xf]
    %v1887 = vld [vmem:[#allocation13 + $0x2c4] sm:$0xf]
    %v1888 = vld [vmem:[#allocation13 + $0x2c8] sm:$0xf]
    %v1889 = vld [vmem:[#allocation13 + $0x2cc] sm:$0xf]
    %v1890 = vld [vmem:[#allocation13 + $0x2d0] sm:$0xf]
    %v1891 = vld [vmem:[#allocation13 + $0x2d4] sm:$0xf]
    %v1892 = vld [vmem:[#allocation13 + $0x2d8] sm:$0xf]
    %v1893 = vld [vmem:[#allocation13 + $0x2dc] sm:$0xf]
    %v1894 = vld [vmem:[#allocation13 + $0x2e0] sm:$0xf]
    %v1895 = vld [vmem:[#allocation13 + $0x2e4] sm:$0xf]
    %v1896 = vld [vmem:[#allocation13 + $0x2e8] sm:$0xf]
    %v1897 = vld [vmem:[#allocation13 + $0x2ec] sm:$0xf]
    %v1898 = vld [vmem:[#allocation13 + $0x2f0] sm:$0xf]
    %v1899 = vld [vmem:[#allocation13 + $0x2f4] sm:$0xf]
    %v1900 = vld [vmem:[#allocation13 + $0x2f8] sm:$0xf]
    %v1901 = vld [vmem:[#allocation13 + $0x2fc] sm:$0xf]
    %v1902 = vld [vmem:[#allocation13 + $0x300] sm:$0xf]
    %v1903 = vld [vmem:[#allocation13 + $0x304] sm:$0xf]
    %v1904 = vld [vmem:[#allocation13 + $0x308] sm:$0xf]
    %v1905 = vld [vmem:[#allocation13 + $0x30c] sm:$0xf]
    %v1906 = vld [vmem:[#allocation13 + $0x310] sm:$0xf]
    %v1907 = vld [vmem:[#allocation13 + $0x314] sm:$0xf]
    %v1908 = vld [vmem:[#allocation13 + $0x318] sm:$0xf]
    %v1909 = vld [vmem:[#allocation13 + $0x31c] sm:$0xf]
    %v1910 = vld [vmem:[#allocation13 + $0x320] sm:$0xf]
    %v1911 = vld [vmem:[#allocation13 + $0x324] sm:$0xf]
    %v1912 = vld [vmem:[#allocation13 + $0x328] sm:$0xf]
    %v1913 = vld [vmem:[#allocation13 + $0x32c] sm:$0xf]
    %v1914 = vld [vmem:[#allocation13 + $0x330] sm:$0xf]
    %v1915 = vld [vmem:[#allocation13 + $0x334] sm:$0xf]
    %v1916 = vld [vmem:[#allocation13 + $0x338] sm:$0xf]
    %v1917 = vld [vmem:[#allocation13 + $0x33c] sm:$0xf]
    %v1918 = vld [vmem:[#allocation13 + $0x340] sm:$0xf]
    %v1919 = vld [vmem:[#allocation13 + $0x344] sm:$0xf]
    %v1920 = vld [vmem:[#allocation13 + $0x348] sm:$0xf]
    %v1921 = vld [vmem:[#allocation13 + $0x34c] sm:$0xf]
    %v1922 = vld [vmem:[#allocation13 + $0x350] sm:$0xf]
    %v1923 = vld [vmem:[#allocation13 + $0x354] sm:$0xf]
    %v1924 = vld [vmem:[#allocation13 + $0x358] sm:$0xf]
    %v1925 = vld [vmem:[#allocation13 + $0x35c] sm:$0xf]
    %v1926 = vld [vmem:[#allocation13 + $0x360] sm:$0xf]
    %v1927 = vld [vmem:[#allocation13 + $0x364] sm:$0xf]
    %v1928 = vld [vmem:[#allocation13 + $0x368] sm:$0xf]
    %v1929 = vld [vmem:[#allocation13 + $0x36c] sm:$0xf]
    %v1930 = vld [vmem:[#allocation13 + $0x370] sm:$0xf]
    %v1931 = vld [vmem:[#allocation13 + $0x374] sm:$0xf]
    %v1932 = vld [vmem:[#allocation13 + $0x378] sm:$0xf]
    %v1933 = vld [vmem:[#allocation13 + $0x37c] sm:$0xf]
    %v1934 = vld [vmem:[#allocation13 + $0x380] sm:$0xf]
    %v1935 = vld [vmem:[#allocation13 + $0x384] sm:$0xf]
    %v1936 = vld [vmem:[#allocation13 + $0x388] sm:$0xf]
    %v1937 = vld [vmem:[#allocation13 + $0x38c] sm:$0xf]
    %v1938 = vld [vmem:[#allocation13 + $0x390] sm:$0xf]
    %v1939 = vld [vmem:[#allocation13 + $0x394] sm:$0xf]
    %v1940 = vld [vmem:[#allocation13 + $0x398] sm:$0xf]
    %v1941 = vld [vmem:[#allocation13 + $0x39c] sm:$0xf]
    %v1942 = vld [vmem:[#allocation13 + $0x3a0] sm:$0xf]
    %v1943 = vld [vmem:[#allocation13 + $0x3a4] sm:$0xf]
    %v1944 = vld [vmem:[#allocation13 + $0x3a8] sm:$0xf]
    %v1945 = vld [vmem:[#allocation13 + $0x3ac] sm:$0xf]
    %v1946 = vld [vmem:[#allocation13 + $0x3b0] sm:$0xf]
    %v1947 = vld [vmem:[#allocation13 + $0x3b4] sm:$0xf]
    %v1948 = vld [vmem:[#allocation13 + $0x3b8] sm:$0xf]
    %v1949 = vld [vmem:[#allocation13 + $0x3bc] sm:$0xf]
    %v1950 = vld [vmem:[#allocation13 + $0x3c0] sm:$0xf]
    %v1951 = vld [vmem:[#allocation13 + $0x3c4] sm:$0xf]
    %v1952 = vld [vmem:[#allocation13 + $0x3c8] sm:$0xf]
    %v1953 = vld [vmem:[#allocation13 + $0x3cc] sm:$0xf]
    %v1954 = vld [vmem:[#allocation13 + $0x3d0] sm:$0xf]
    %v1955 = vld [vmem:[#allocation13 + $0x3d4] sm:$0xf]
    %v1956 = vld [vmem:[#allocation13 + $0x3d8] sm:$0xf]
    %v1957 = vld [vmem:[#allocation13 + $0x3dc] sm:$0xf]
    %v1958 = vld [vmem:[#allocation13 + $0x3e0] sm:$0xf]
    %v1959 = vld [vmem:[#allocation13 + $0x3e4] sm:$0xf]
    %v1960 = vld [vmem:[#allocation13 + $0x3e8] sm:$0xf]
    %v1961 = vld [vmem:[#allocation13 + $0x3ec] sm:$0xf]
    %v1962 = vld [vmem:[#allocation13 + $0x3f0] sm:$0xf]
    %v1963 = vld [vmem:[#allocation13 + $0x3f4] sm:$0xf]
    %v1964 = vld [vmem:[#allocation13 + $0x3f8] sm:$0xf]
    %v1965 = vld [vmem:[#allocation13 + $0x3fc] sm:$0xf]
    %v1966 = vld [vmem:[%s10] sm:$0x1]
    %v1968 = vperm.slane %v1966, 0
    %v2226 = vunpack.c.l.b16 %v1710
    %v2227 = vunpack.c.l.b16 %v1711
    %v2228 = vunpack.c.l.b16 %v1712
    %v2229 = vunpack.c.l.b16 %v1713
    %v2230 = vunpack.c.l.b16 %v1714
    %v2231 = vunpack.c.l.b16 %v1715
    %v2232 = vunpack.c.l.b16 %v1716
    %v2233 = vunpack.c.l.b16 %v1717
    %v2234 = vunpack.c.l.b16 %v1718
    %v2235 = vunpack.c.l.b16 %v1719
    %v2236 = vunpack.c.l.b16 %v1720
    %v2237 = vunpack.c.l.b16 %v1721
    %v2238 = vunpack.c.l.b16 %v1722
    %v2239 = vunpack.c.l.b16 %v1723
    %v2240 = vunpack.c.l.b16 %v1724
    %v2241 = vunpack.c.l.b16 %v1725
    %v2242 = vunpack.c.l.b16 %v1726
    %v2243 = vunpack.c.l.b16 %v1727
    %v2244 = vunpack.c.l.b16 %v1728
    %v2245 = vunpack.c.l.b16 %v1729
    %v2246 = vunpack.c.l.b16 %v1730
    %v2247 = vunpack.c.l.b16 %v1731
    %v2248 = vunpack.c.l.b16 %v1732
    %v2249 = vunpack.c.l.b16 %v1733
    %v2250 = vunpack.c.l.b16 %v1734
    %v2251 = vunpack.c.l.b16 %v1735
    %v2252 = vunpack.c.l.b16 %v1736
    %v2253 = vunpack.c.l.b16 %v1737
    %v2254 = vunpack.c.l.b16 %v1738
    %v2255 = vunpack.c.l.b16 %v1739
    %v2256 = vunpack.c.l.b16 %v1740
    %v2257 = vunpack.c.l.b16 %v1741
    %v2258 = vunpack.c.l.b16 %v1742
    %v2259 = vunpack.c.l.b16 %v1743
    %v2260 = vunpack.c.l.b16 %v1744
    %v2261 = vunpack.c.l.b16 %v1745
    %v2262 = vunpack.c.l.b16 %v1746
    %v2263 = vunpack.c.l.b16 %v1747
    %v2264 = vunpack.c.l.b16 %v1748
    %v2265 = vunpack.c.l.b16 %v1749
    %v2266 = vunpack.c.l.b16 %v1750
    %v2267 = vunpack.c.l.b16 %v1751
    %v2268 = vunpack.c.l.b16 %v1752
    %v2269 = vunpack.c.l.b16 %v1753
    %v2270 = vunpack.c.l.b16 %v1754
    %v2271 = vunpack.c.l.b16 %v1755
    %v2272 = vunpack.c.l.b16 %v1756
    %v2273 = vunpack.c.l.b16 %v1757
    %v2274 = vunpack.c.l.b16 %v1758
    %v2275 = vunpack.c.l.b16 %v1759
    %v2276 = vunpack.c.l.b16 %v1760
    %v2277 = vunpack.c.l.b16 %v1761
    %v2278 = vunpack.c.l.b16 %v1762
    %v2279 = vunpack.c.l.b16 %v1763
    %v2280 = vunpack.c.l.b16 %v1764
    %v2281 = vunpack.c.l.b16 %v1765
    %v2282 = vunpack.c.l.b16 %v1766
    %v2283 = vunpack.c.l.b16 %v1767
    %v2284 = vunpack.c.l.b16 %v1768
    %v2285 = vunpack.c.l.b16 %v1769
    %v2286 = vunpack.c.l.b16 %v1770
    %v2287 = vunpack.c.l.b16 %v1771
    %v2288 = vunpack.c.l.b16 %v1772
    %v2289 = vunpack.c.l.b16 %v1773
    %v2290 = vunpack.c.l.b16 %v1774
    %v2291 = vunpack.c.l.b16 %v1775
    %v2292 = vunpack.c.l.b16 %v1776
    %v2293 = vunpack.c.l.b16 %v1777
    %v2294 = vunpack.c.l.b16 %v1778
    %v2295 = vunpack.c.l.b16 %v1779
    %v2296 = vunpack.c.l.b16 %v1780
    %v2297 = vunpack.c.l.b16 %v1781
    %v2298 = vunpack.c.l.b16 %v1782
    %v2299 = vunpack.c.l.b16 %v1783
    %v2300 = vunpack.c.l.b16 %v1784
    %v2301 = vunpack.c.l.b16 %v1785
    %v2302 = vunpack.c.l.b16 %v1786
    %v2303 = vunpack.c.l.b16 %v1787
    %v2304 = vunpack.c.l.b16 %v1788
    %v2305 = vunpack.c.l.b16 %v1789
    %v2306 = vunpack.c.l.b16 %v1790
    %v2307 = vunpack.c.l.b16 %v1791
    %v2308 = vunpack.c.l.b16 %v1792
    %v2309 = vunpack.c.l.b16 %v1793
    %v2310 = vunpack.c.l.b16 %v1794
    %v2311 = vunpack.c.l.b16 %v1795
    %v2312 = vunpack.c.l.b16 %v1796
    %v2313 = vunpack.c.l.b16 %v1797
    %v2314 = vunpack.c.l.b16 %v1798
    %v2315 = vunpack.c.l.b16 %v1799
    %v2316 = vunpack.c.l.b16 %v1800
    %v2317 = vunpack.c.l.b16 %v1801
    %v2318 = vunpack.c.l.b16 %v1802
    %v2319 = vunpack.c.l.b16 %v1803
    %v2320 = vunpack.c.l.b16 %v1804
    %v2321 = vunpack.c.l.b16 %v1805
    %v2322 = vunpack.c.l.b16 %v1806
    %v2323 = vunpack.c.l.b16 %v1807
    %v2324 = vunpack.c.l.b16 %v1808
    %v2325 = vunpack.c.l.b16 %v1809
    %v2326 = vunpack.c.l.b16 %v1810
    %v2327 = vunpack.c.l.b16 %v1811
    %v2328 = vunpack.c.l.b16 %v1812
    %v2329 = vunpack.c.l.b16 %v1813
    %v2330 = vunpack.c.l.b16 %v1814
    %v2331 = vunpack.c.l.b16 %v1815
    %v2332 = vunpack.c.l.b16 %v1816
    %v2333 = vunpack.c.l.b16 %v1817
    %v2334 = vunpack.c.l.b16 %v1818
    %v2335 = vunpack.c.l.b16 %v1819
    %v2336 = vunpack.c.l.b16 %v1820
    %v2337 = vunpack.c.l.b16 %v1821
    %v2338 = vunpack.c.l.b16 %v1822
    %v2339 = vunpack.c.l.b16 %v1823
    %v2340 = vunpack.c.l.b16 %v1824
    %v2341 = vunpack.c.l.b16 %v1825
    %v2342 = vunpack.c.l.b16 %v1826
    %v2343 = vunpack.c.l.b16 %v1827
    %v2344 = vunpack.c.l.b16 %v1828
    %v2345 = vunpack.c.l.b16 %v1829
    %v2346 = vunpack.c.l.b16 %v1830
    %v2347 = vunpack.c.l.b16 %v1831
    %v2348 = vunpack.c.l.b16 %v1832
    %v2349 = vunpack.c.l.b16 %v1833
    %v2350 = vunpack.c.l.b16 %v1834
    %v2351 = vunpack.c.l.b16 %v1835
    %v2352 = vunpack.c.l.b16 %v1836
    %v2353 = vunpack.c.l.b16 %v1837
    %v2354 = vunpack.c.l.b16 %v1838
    %v2355 = vunpack.c.l.b16 %v1839
    %v2356 = vunpack.c.l.b16 %v1840
    %v2357 = vunpack.c.l.b16 %v1841
    %v2358 = vunpack.c.l.b16 %v1842
    %v2359 = vunpack.c.l.b16 %v1843
    %v2360 = vunpack.c.l.b16 %v1844
    %v2361 = vunpack.c.l.b16 %v1845
    %v2362 = vunpack.c.l.b16 %v1846
    %v2363 = vunpack.c.l.b16 %v1847
    %v2364 = vunpack.c.l.b16 %v1848
    %v2365 = vunpack.c.l.b16 %v1849
    %v2366 = vunpack.c.l.b16 %v1850
    %v2367 = vunpack.c.l.b16 %v1851
    %v2368 = vunpack.c.l.b16 %v1852
    %v2369 = vunpack.c.l.b16 %v1853
    %v2370 = vunpack.c.l.b16 %v1854
    %v2371 = vunpack.c.l.b16 %v1855
    %v2372 = vunpack.c.l.b16 %v1856
    %v2373 = vunpack.c.l.b16 %v1857
    %v2374 = vunpack.c.l.b16 %v1858
    %v2375 = vunpack.c.l.b16 %v1859
    %v2376 = vunpack.c.l.b16 %v1860
    %v2377 = vunpack.c.l.b16 %v1861
    %v2378 = vunpack.c.l.b16 %v1862
    %v2379 = vunpack.c.l.b16 %v1863
    %v2380 = vunpack.c.l.b16 %v1864
    %v2381 = vunpack.c.l.b16 %v1865
    %v2382 = vunpack.c.l.b16 %v1866
    %v2383 = vunpack.c.l.b16 %v1867
    %v2384 = vunpack.c.l.b16 %v1868
    %v2385 = vunpack.c.l.b16 %v1869
    %v2386 = vunpack.c.l.b16 %v1870
    %v2387 = vunpack.c.l.b16 %v1871
    %v2388 = vunpack.c.l.b16 %v1872
    %v2389 = vunpack.c.l.b16 %v1873
    %v2390 = vunpack.c.l.b16 %v1874
    %v2391 = vunpack.c.l.b16 %v1875
    %v2392 = vunpack.c.l.b16 %v1876
    %v2393 = vunpack.c.l.b16 %v1877
    %v2394 = vunpack.c.l.b16 %v1878
    %v2395 = vunpack.c.l.b16 %v1879
    %v2396 = vunpack.c.l.b16 %v1880
    %v2397 = vunpack.c.l.b16 %v1881
    %v2398 = vunpack.c.l.b16 %v1882
    %v2399 = vunpack.c.l.b16 %v1883
    %v2400 = vunpack.c.l.b16 %v1884
    %v2401 = vunpack.c.l.b16 %v1885
    %v2402 = vunpack.c.l.b16 %v1886
    %v2403 = vunpack.c.l.b16 %v1887
    %v2404 = vunpack.c.l.b16 %v1888
    %v2405 = vunpack.c.l.b16 %v1889
    %v2406 = vunpack.c.l.b16 %v1890
    %v2407 = vunpack.c.l.b16 %v1891
    %v2408 = vunpack.c.l.b16 %v1892
    %v2409 = vunpack.c.l.b16 %v1893
    %v2410 = vunpack.c.l.b16 %v1894
    %v2411 = vunpack.c.l.b16 %v1895
    %v2412 = vunpack.c.l.b16 %v1896
    %v2413 = vunpack.c.l.b16 %v1897
    %v2414 = vunpack.c.l.b16 %v1898
    %v2415 = vunpack.c.l.b16 %v1899
    %v2416 = vunpack.c.l.b16 %v1900
    %v2417 = vunpack.c.l.b16 %v1901
    %v2418 = vunpack.c.l.b16 %v1902
    %v2419 = vunpack.c.l.b16 %v1903
    %v2420 = vunpack.c.l.b16 %v1904
    %v2421 = vunpack.c.l.b16 %v1905
    %v2422 = vunpack.c.l.b16 %v1906
    %v2423 = vunpack.c.l.b16 %v1907
    %v2424 = vunpack.c.l.b16 %v1908
    %v2425 = vunpack.c.l.b16 %v1909
    %v2426 = vunpack.c.l.b16 %v1910
    %v2427 = vunpack.c.l.b16 %v1911
    %v2428 = vunpack.c.l.b16 %v1912
    %v2429 = vunpack.c.l.b16 %v1913
    %v2430 = vunpack.c.l.b16 %v1914
    %v2431 = vunpack.c.l.b16 %v1915
    %v2432 = vunpack.c.l.b16 %v1916
    %v2433 = vunpack.c.l.b16 %v1917
    %v2434 = vunpack.c.l.b16 %v1918
    %v2435 = vunpack.c.l.b16 %v1919
    %v2436 = vunpack.c.l.b16 %v1920
    %v2437 = vunpack.c.l.b16 %v1921
    %v2438 = vunpack.c.l.b16 %v1922
    %v2439 = vunpack.c.l.b16 %v1923
    %v2440 = vunpack.c.l.b16 %v1924
    %v2441 = vunpack.c.l.b16 %v1925
    %v2442 = vunpack.c.l.b16 %v1926
    %v2443 = vunpack.c.l.b16 %v1927
    %v2444 = vunpack.c.l.b16 %v1928
    %v2445 = vunpack.c.l.b16 %v1929
    %v2446 = vunpack.c.l.b16 %v1930
    %v2447 = vunpack.c.l.b16 %v1931
    %v2448 = vunpack.c.l.b16 %v1932
    %v2449 = vunpack.c.l.b16 %v1933
    %v2450 = vunpack.c.l.b16 %v1934
    %v2451 = vunpack.c.l.b16 %v1935
    %v2452 = vunpack.c.l.b16 %v1936
    %v2453 = vunpack.c.l.b16 %v1937
    %v2454 = vunpack.c.l.b16 %v1938
    %v2455 = vunpack.c.l.b16 %v1939
    %v2456 = vunpack.c.l.b16 %v1940
    %v2457 = vunpack.c.l.b16 %v1941
    %v2458 = vunpack.c.l.b16 %v1942
    %v2459 = vunpack.c.l.b16 %v1943
    %v2460 = vunpack.c.l.b16 %v1944
    %v2461 = vunpack.c.l.b16 %v1945
    %v2462 = vunpack.c.l.b16 %v1946
    %v2463 = vunpack.c.l.b16 %v1947
    %v2464 = vunpack.c.l.b16 %v1948
    %v2465 = vunpack.c.l.b16 %v1949
    %v2466 = vunpack.c.l.b16 %v1950
    %v2467 = vunpack.c.l.b16 %v1951
    %v2468 = vunpack.c.l.b16 %v1952
    %v2469 = vunpack.c.l.b16 %v1953
    %v2470 = vunpack.c.l.b16 %v1954
    %v2471 = vunpack.c.l.b16 %v1955
    %v2472 = vunpack.c.l.b16 %v1956
    %v2473 = vunpack.c.l.b16 %v1957
    %v2474 = vunpack.c.l.b16 %v1958
    %v2475 = vunpack.c.l.b16 %v1959
    %v2476 = vunpack.c.l.b16 %v1960
    %v2477 = vunpack.c.l.b16 %v1961
    %v2478 = vunpack.c.l.b16 %v1962
    %v2479 = vunpack.c.l.b16 %v1963
    %v2480 = vunpack.c.l.b16 %v1964
    %v2481 = vunpack.c.l.b16 %v1965
    %v2482 = vpack.c.b16 %v2227, %v2226
    %v2483 = vpack.c.b16 %v2229, %v2228
    %v2484 = vpack.c.b16 %v2231, %v2230
    %v2485 = vpack.c.b16 %v2233, %v2232
    %v2486 = vpack.c.b16 %v2235, %v2234
    %v2487 = vpack.c.b16 %v2237, %v2236
    %v2488 = vpack.c.b16 %v2239, %v2238
    %v2489 = vpack.c.b16 %v2241, %v2240
    %v2490 = vpack.c.b16 %v2243, %v2242
    %v2491 = vpack.c.b16 %v2245, %v2244
    %v2492 = vpack.c.b16 %v2247, %v2246
    %v2493 = vpack.c.b16 %v2249, %v2248
    %v2494 = vpack.c.b16 %v2251, %v2250
    %v2495 = vpack.c.b16 %v2253, %v2252
    %v2496 = vpack.c.b16 %v2255, %v2254
    %v2497 = vpack.c.b16 %v2257, %v2256
    %v2498 = vpack.c.b16 %v2259, %v2258
    %v2499 = vpack.c.b16 %v2261, %v2260
    %v2500 = vpack.c.b16 %v2263, %v2262
    %v2501 = vpack.c.b16 %v2265, %v2264
    %v2502 = vpack.c.b16 %v2267, %v2266
    %v2503 = vpack.c.b16 %v2269, %v2268
    %v2504 = vpack.c.b16 %v2271, %v2270
    %v2505 = vpack.c.b16 %v2273, %v2272
    %v2506 = vpack.c.b16 %v2275, %v2274
    %v2507 = vpack.c.b16 %v2277, %v2276
    %v2508 = vpack.c.b16 %v2279, %v2278
    %v2509 = vpack.c.b16 %v2281, %v2280
    %v2510 = vpack.c.b16 %v2283, %v2282
    %v2511 = vpack.c.b16 %v2285, %v2284
    %v2512 = vpack.c.b16 %v2287, %v2286
    %v2513 = vpack.c.b16 %v2289, %v2288
    %v2514 = vpack.c.b16 %v2291, %v2290
    %v2515 = vpack.c.b16 %v2293, %v2292
    %v2516 = vpack.c.b16 %v2295, %v2294
    %v2517 = vpack.c.b16 %v2297, %v2296
    %v2518 = vpack.c.b16 %v2299, %v2298
    %v2519 = vpack.c.b16 %v2301, %v2300
    %v2520 = vpack.c.b16 %v2303, %v2302
    %v2521 = vpack.c.b16 %v2305, %v2304
    %v2522 = vpack.c.b16 %v2307, %v2306
    %v2523 = vpack.c.b16 %v2309, %v2308
    %v2524 = vpack.c.b16 %v2311, %v2310
    %v2525 = vpack.c.b16 %v2313, %v2312
    %v2526 = vpack.c.b16 %v2315, %v2314
    %v2527 = vpack.c.b16 %v2317, %v2316
    %v2528 = vpack.c.b16 %v2319, %v2318
    %v2529 = vpack.c.b16 %v2321, %v2320
    %v2530 = vpack.c.b16 %v2323, %v2322
    %v2531 = vpack.c.b16 %v2325, %v2324
    %v2532 = vpack.c.b16 %v2327, %v2326
    %v2533 = vpack.c.b16 %v2329, %v2328
    %v2534 = vpack.c.b16 %v2331, %v2330
    %v2535 = vpack.c.b16 %v2333, %v2332
    %v2536 = vpack.c.b16 %v2335, %v2334
    %v2537 = vpack.c.b16 %v2337, %v2336
    %v2538 = vpack.c.b16 %v2339, %v2338
    %v2539 = vpack.c.b16 %v2341, %v2340
    %v2540 = vpack.c.b16 %v2343, %v2342
    %v2541 = vpack.c.b16 %v2345, %v2344
    %v2542 = vpack.c.b16 %v2347, %v2346
    %v2543 = vpack.c.b16 %v2349, %v2348
    %v2544 = vpack.c.b16 %v2351, %v2350
    %v2545 = vpack.c.b16 %v2353, %v2352
    %v2546 = vpack.c.b16 %v2355, %v2354
    %v2547 = vpack.c.b16 %v2357, %v2356
    %v2548 = vpack.c.b16 %v2359, %v2358
    %v2549 = vpack.c.b16 %v2361, %v2360
    %v2550 = vpack.c.b16 %v2363, %v2362
    %v2551 = vpack.c.b16 %v2365, %v2364
    %v2552 = vpack.c.b16 %v2367, %v2366
    %v2553 = vpack.c.b16 %v2369, %v2368
    %v2554 = vpack.c.b16 %v2371, %v2370
    %v2555 = vpack.c.b16 %v2373, %v2372
    %v2556 = vpack.c.b16 %v2375, %v2374
    %v2557 = vpack.c.b16 %v2377, %v2376
    %v2558 = vpack.c.b16 %v2379, %v2378
    %v2559 = vpack.c.b16 %v2381, %v2380
    %v2560 = vpack.c.b16 %v2383, %v2382
    %v2561 = vpack.c.b16 %v2385, %v2384
    %v2562 = vpack.c.b16 %v2387, %v2386
    %v2563 = vpack.c.b16 %v2389, %v2388
    %v2564 = vpack.c.b16 %v2391, %v2390
    %v2565 = vpack.c.b16 %v2393, %v2392
    %v2566 = vpack.c.b16 %v2395, %v2394
    %v2567 = vpack.c.b16 %v2397, %v2396
    %v2568 = vpack.c.b16 %v2399, %v2398
    %v2569 = vpack.c.b16 %v2401, %v2400
    %v2570 = vpack.c.b16 %v2403, %v2402
    %v2571 = vpack.c.b16 %v2405, %v2404
    %v2572 = vpack.c.b16 %v2407, %v2406
    %v2573 = vpack.c.b16 %v2409, %v2408
    %v2574 = vpack.c.b16 %v2411, %v2410
    %v2575 = vpack.c.b16 %v2413, %v2412
    %v2576 = vpack.c.b16 %v2415, %v2414
    %v2577 = vpack.c.b16 %v2417, %v2416
    %v2578 = vpack.c.b16 %v2419, %v2418
    %v2579 = vpack.c.b16 %v2421, %v2420
    %v2580 = vpack.c.b16 %v2423, %v2422
    %v2581 = vpack.c.b16 %v2425, %v2424
    %v2582 = vpack.c.b16 %v2427, %v2426
    %v2583 = vpack.c.b16 %v2429, %v2428
    %v2584 = vpack.c.b16 %v2431, %v2430
    %v2585 = vpack.c.b16 %v2433, %v2432
    %v2586 = vpack.c.b16 %v2435, %v2434
    %v2587 = vpack.c.b16 %v2437, %v2436
    %v2588 = vpack.c.b16 %v2439, %v2438
    %v2589 = vpack.c.b16 %v2441, %v2440
    %v2590 = vpack.c.b16 %v2443, %v2442
    %v2591 = vpack.c.b16 %v2445, %v2444
    %v2592 = vpack.c.b16 %v2447, %v2446
    %v2593 = vpack.c.b16 %v2449, %v2448
    %v2594 = vpack.c.b16 %v2451, %v2450
    %v2595 = vpack.c.b16 %v2453, %v2452
    %v2596 = vpack.c.b16 %v2455, %v2454
    %v2597 = vpack.c.b16 %v2457, %v2456
    %v2598 = vpack.c.b16 %v2459, %v2458
    %v2599 = vpack.c.b16 %v2461, %v2460
    %v2600 = vpack.c.b16 %v2463, %v2462
    %v2601 = vpack.c.b16 %v2465, %v2464
    %v2602 = vpack.c.b16 %v2467, %v2466
    %v2603 = vpack.c.b16 %v2469, %v2468
    %v2604 = vpack.c.b16 %v2471, %v2470
    %v2605 = vpack.c.b16 %v2473, %v2472
    %v2606 = vpack.c.b16 %v2475, %v2474
    %v2607 = vpack.c.b16 %v2477, %v2476
    %v2608 = vpack.c.b16 %v2479, %v2478
    %v2609 = vpack.c.b16 %v2481, %v2480
    %2738 = vmatpush.bf16.msra.mxu0 %v2489
    %2739 = vmatpush.bf16.msra.mxu0 %v2488
    %2740 = vmatpush.bf16.msra.mxu0 %v2487
    %2741 = vmatpush.bf16.msra.mxu0 %v2486
    %2742 = vmatpush.bf16.msra.mxu0 %v2485
    %2743 = vmatpush.bf16.msra.mxu0 %v2484
    %2744 = vmatpush.bf16.msra.mxu0 %v2483
    %2745 = vmatpush.bf16.msra.mxu0 %v2482
    %2746 = vmatmul.bf16.gmra.mxu0 %v1694
    %v2747 = vpop.f32.mrf.mxu0
    %v2748 = vadd.f32 %v1968, %v2747
    %v2749 = vpop.f32.mrf.mxu0
    %v2750 = vadd.f32 %v1968, %v2749
    %2751 = vdwg.mxu0
    %2752 = vmatpush.bf16.msra.mxu0 %v2497
    %2753 = vmatpush.bf16.msra.mxu0 %v2496
    %2754 = vmatpush.bf16.msra.mxu0 %v2495
    %2755 = vmatpush.bf16.msra.mxu0 %v2494
    %2756 = vmatpush.bf16.msra.mxu0 %v2493
    %2757 = vmatpush.bf16.msra.mxu0 %v2492
    %2758 = vmatpush.bf16.msra.mxu0 %v2491
    %2759 = vmatpush.bf16.msra.mxu0 %v2490
    %2760 = vmatmul.bf16.gmra.mxu0 %v1695
    %v2761 = vpop.f32.mrf.mxu0
    %v2762 = vadd.f32 %v2748, %v2761
    %v2763 = vpop.f32.mrf.mxu0
    %v2764 = vadd.f32 %v2750, %v2763
    %2765 = vdwg.mxu0
    %2766 = vmatpush.bf16.msra.mxu0 %v2505
    %2767 = vmatpush.bf16.msra.mxu0 %v2504
    %2768 = vmatpush.bf16.msra.mxu0 %v2503
    %2769 = vmatpush.bf16.msra.mxu0 %v2502
    %2770 = vmatpush.bf16.msra.mxu0 %v2501
    %2771 = vmatpush.bf16.msra.mxu0 %v2500
    %2772 = vmatpush.bf16.msra.mxu0 %v2499
    %2773 = vmatpush.bf16.msra.mxu0 %v2498
    %2774 = vmatmul.bf16.gmra.mxu0 %v1696
    %v2775 = vpop.f32.mrf.mxu0
    %v2776 = vadd.f32 %v2762, %v2775
    %v2777 = vpop.f32.mrf.mxu0
    %v2778 = vadd.f32 %v2764, %v2777
    %2779 = vdwg.mxu0
    %2780 = vmatpush.bf16.msra.mxu0 %v2513
    %2781 = vmatpush.bf16.msra.mxu0 %v2512
    %2782 = vmatpush.bf16.msra.mxu0 %v2511
    %2783 = vmatpush.bf16.msra.mxu0 %v2510
    %2784 = vmatpush.bf16.msra.mxu0 %v2509
    %2785 = vmatpush.bf16.msra.mxu0 %v2508
    %2786 = vmatpush.bf16.msra.mxu0 %v2507
    %2787 = vmatpush.bf16.msra.mxu0 %v2506
    %2788 = vmatmul.bf16.gmra.mxu0 %v1697
    %v2789 = vpop.f32.mrf.mxu0
    %v2790 = vadd.f32 %v2776, %v2789
    %v2791 = vpop.f32.mrf.mxu0
    %v2792 = vadd.f32 %v2778, %v2791
    %2793 = vdwg.mxu0
    %2794 = vmatpush.bf16.msra.mxu0 %v2521
    %2795 = vmatpush.bf16.msra.mxu0 %v2520
    %2796 = vmatpush.bf16.msra.mxu0 %v2519
    %2797 = vmatpush.bf16.msra.mxu0 %v2518
    %2798 = vmatpush.bf16.msra.mxu0 %v2517
    %2799 = vmatpush.bf16.msra.mxu0 %v2516
    %2800 = vmatpush.bf16.msra.mxu0 %v2515
    %2801 = vmatpush.bf16.msra.mxu0 %v2514
    %2802 = vmatmul.bf16.gmra.mxu0 %v1698
    %v2803 = vpop.f32.mrf.mxu0
    %v2804 = vadd.f32 %v2790, %v2803
    %v2805 = vpop.f32.mrf.mxu0
    %v2806 = vadd.f32 %v2792, %v2805
    %2807 = vdwg.mxu0
    %2808 = vmatpush.bf16.msra.mxu0 %v2529
    %2809 = vmatpush.bf16.msra.mxu0 %v2528
    %2810 = vmatpush.bf16.msra.mxu0 %v2527
    %2811 = vmatpush.bf16.msra.mxu0 %v2526
    %2812 = vmatpush.bf16.msra.mxu0 %v2525
    %2813 = vmatpush.bf16.msra.mxu0 %v2524
    %2814 = vmatpush.bf16.msra.mxu0 %v2523
    %2815 = vmatpush.bf16.msra.mxu0 %v2522
    %2816 = vmatmul.bf16.gmra.mxu0 %v1699
    %v2817 = vpop.f32.mrf.mxu0
    %v2818 = vadd.f32 %v2804, %v2817
    %v2819 = vpop.f32.mrf.mxu0
    %v2820 = vadd.f32 %v2806, %v2819
    %2821 = vdwg.mxu0
    %2822 = vmatpush.bf16.msra.mxu0 %v2537
    %2823 = vmatpush.bf16.msra.mxu0 %v2536
    %2824 = vmatpush.bf16.msra.mxu0 %v2535
    %2825 = vmatpush.bf16.msra.mxu0 %v2534
    %2826 = vmatpush.bf16.msra.mxu0 %v2533
    %2827 = vmatpush.bf16.msra.mxu0 %v2532
    %2828 = vmatpush.bf16.msra.mxu0 %v2531
    %2829 = vmatpush.bf16.msra.mxu0 %v2530
    %2830 = vmatmul.bf16.gmra.mxu0 %v1700
    %v2831 = vpop.f32.mrf.mxu0
    %v2832 = vadd.f32 %v2818, %v2831
    %v2833 = vpop.f32.mrf.mxu0
    %v2834 = vadd.f32 %v2820, %v2833
    %2835 = vdwg.mxu0
    %2836 = vmatpush.bf16.msra.mxu0 %v2545
    %2837 = vmatpush.bf16.msra.mxu0 %v2544
    %2838 = vmatpush.bf16.msra.mxu0 %v2543
    %2839 = vmatpush.bf16.msra.mxu0 %v2542
    %2840 = vmatpush.bf16.msra.mxu0 %v2541
    %2841 = vmatpush.bf16.msra.mxu0 %v2540
    %2842 = vmatpush.bf16.msra.mxu0 %v2539
    %2843 = vmatpush.bf16.msra.mxu0 %v2538
    %2844 = vmatmul.bf16.gmra.mxu0 %v1701
    %v2845 = vpop.f32.mrf.mxu0
    %v2846 = vadd.f32 %v2832, %v2845
    %v2847 = vpop.f32.mrf.mxu0
    %v2848 = vadd.f32 %v2834, %v2847
    %2849 = vdwg.mxu0
    %2850 = vmatpush.bf16.msra.mxu0 %v2553
    %2851 = vmatpush.bf16.msra.mxu0 %v2552
    %2852 = vmatpush.bf16.msra.mxu0 %v2551
    %2853 = vmatpush.bf16.msra.mxu0 %v2550
    %2854 = vmatpush.bf16.msra.mxu0 %v2549
    %2855 = vmatpush.bf16.msra.mxu0 %v2548
    %2856 = vmatpush.bf16.msra.mxu0 %v2547
    %2857 = vmatpush.bf16.msra.mxu0 %v2546
    %2858 = vmatmul.bf16.gmra.mxu0 %v1702
    %v2859 = vpop.f32.mrf.mxu0
    %v2860 = vadd.f32 %v2846, %v2859
    %v2861 = vpop.f32.mrf.mxu0
    %v2862 = vadd.f32 %v2848, %v2861
    %2863 = vdwg.mxu0
    %2864 = vmatpush.bf16.msra.mxu0 %v2561
    %2865 = vmatpush.bf16.msra.mxu0 %v2560
    %2866 = vmatpush.bf16.msra.mxu0 %v2559
    %2867 = vmatpush.bf16.msra.mxu0 %v2558
    %2868 = vmatpush.bf16.msra.mxu0 %v2557
    %2869 = vmatpush.bf16.msra.mxu0 %v2556
    %2870 = vmatpush.bf16.msra.mxu0 %v2555
    %2871 = vmatpush.bf16.msra.mxu0 %v2554
    %2872 = vmatmul.bf16.gmra.mxu0 %v1703
    %v2873 = vpop.f32.mrf.mxu0
    %v2874 = vadd.f32 %v2860, %v2873
    %v2875 = vpop.f32.mrf.mxu0
    %v2876 = vadd.f32 %v2862, %v2875
    %2877 = vdwg.mxu0
    %2878 = vmatpush.bf16.msra.mxu0 %v2569
    %2879 = vmatpush.bf16.msra.mxu0 %v2568
    %2880 = vmatpush.bf16.msra.mxu0 %v2567
    %2881 = vmatpush.bf16.msra.mxu0 %v2566
    %2882 = vmatpush.bf16.msra.mxu0 %v2565
    %2883 = vmatpush.bf16.msra.mxu0 %v2564
    %2884 = vmatpush.bf16.msra.mxu0 %v2563
    %2885 = vmatpush.bf16.msra.mxu0 %v2562
    %2886 = vmatmul.bf16.gmra.mxu0 %v1704
    %v2887 = vpop.f32.mrf.mxu0
    %v2888 = vadd.f32 %v2874, %v2887
    %v2889 = vpop.f32.mrf.mxu0
    %v2890 = vadd.f32 %v2876, %v2889
    %2891 = vdwg.mxu0
    %2892 = vmatpush.bf16.msra.mxu0 %v2577
    %2893 = vmatpush.bf16.msra.mxu0 %v2576
    %2894 = vmatpush.bf16.msra.mxu0 %v2575
    %2895 = vmatpush.bf16.msra.mxu0 %v2574
    %2896 = vmatpush.bf16.msra.mxu0 %v2573
    %2897 = vmatpush.bf16.msra.mxu0 %v2572
    %2898 = vmatpush.bf16.msra.mxu0 %v2571
    %2899 = vmatpush.bf16.msra.mxu0 %v2570
    %2900 = vmatmul.bf16.gmra.mxu0 %v1705
    %v2901 = vpop.f32.mrf.mxu0
    %v2902 = vadd.f32 %v2888, %v2901
    %v2903 = vpop.f32.mrf.mxu0
    %v2904 = vadd.f32 %v2890, %v2903
    %2905 = vdwg.mxu0
    %2906 = vmatpush.bf16.msra.mxu0 %v2585
    %2907 = vmatpush.bf16.msra.mxu0 %v2584
    %2908 = vmatpush.bf16.msra.mxu0 %v2583
    %2909 = vmatpush.bf16.msra.mxu0 %v2582
    %2910 = vmatpush.bf16.msra.mxu0 %v2581
    %2911 = vmatpush.bf16.msra.mxu0 %v2580
    %2912 = vmatpush.bf16.msra.mxu0 %v2579
    %2913 = vmatpush.bf16.msra.mxu0 %v2578
    %2914 = vmatmul.bf16.gmra.mxu0 %v1706
    %v2915 = vpop.f32.mrf.mxu0
    %v2916 = vadd.f32 %v2902, %v2915
    %v2917 = vpop.f32.mrf.mxu0
    %v2918 = vadd.f32 %v2904, %v2917
    %2919 = vdwg.mxu0
    %2920 = vmatpush.bf16.msra.mxu0 %v2593
    %2921 = vmatpush.bf16.msra.mxu0 %v2592
    %2922 = vmatpush.bf16.msra.mxu0 %v2591
    %2923 = vmatpush.bf16.msra.mxu0 %v2590
    %2924 = vmatpush.bf16.msra.mxu0 %v2589
    %2925 = vmatpush.bf16.msra.mxu0 %v2588
    %2926 = vmatpush.bf16.msra.mxu0 %v2587
    %2927 = vmatpush.bf16.msra.mxu0 %v2586
    %2928 = vmatmul.bf16.gmra.mxu0 %v1707
    %v2929 = vpop.f32.mrf.mxu0
    %v2930 = vadd.f32 %v2916, %v2929
    %v2931 = vpop.f32.mrf.mxu0
    %v2932 = vadd.f32 %v2918, %v2931
    %2933 = vdwg.mxu0
    %2934 = vmatpush.bf16.msra.mxu0 %v2601
    %2935 = vmatpush.bf16.msra.mxu0 %v2600
    %2936 = vmatpush.bf16.msra.mxu0 %v2599
    %2937 = vmatpush.bf16.msra.mxu0 %v2598
    %2938 = vmatpush.bf16.msra.mxu0 %v2597
    %2939 = vmatpush.bf16.msra.mxu0 %v2596
    %2940 = vmatpush.bf16.msra.mxu0 %v2595
    %2941 = vmatpush.bf16.msra.mxu0 %v2594
    %2942 = vmatmul.bf16.gmra.mxu0 %v1708
    %v2943 = vpop.f32.mrf.mxu0
    %v2944 = vadd.f32 %v2930, %v2943
    %v2945 = vpop.f32.mrf.mxu0
    %v2946 = vadd.f32 %v2932, %v2945
    %2947 = vdwg.mxu0
    %2948 = vmatpush.bf16.msra.mxu0 %v2609
    %2949 = vmatpush.bf16.msra.mxu0 %v2608
    %2950 = vmatpush.bf16.msra.mxu0 %v2607
    %2951 = vmatpush.bf16.msra.mxu0 %v2606
    %2952 = vmatpush.bf16.msra.mxu0 %v2605
    %2953 = vmatpush.bf16.msra.mxu0 %v2604
    %2954 = vmatpush.bf16.msra.mxu0 %v2603
    %2955 = vmatpush.bf16.msra.mxu0 %v2602
    %2956 = vmatmul.bf16.gmra.mxu0 %v1709
    %v2957 = vpop.f32.mrf.mxu0
    %v2958 = vadd.f32 %v2944, %v2957
    %v2959 = vpop.f32.mrf.mxu0
    %v2960 = vadd.f32 %v2946, %v2959
    %2961 = vdwg.mxu0
    %v2962 = vadd.f32 %v631, %v2958
    %v2963 = vadd.f32 %v632, %v2960
    %v2964 = vld [vmem:[%s11] sm:$0x1]
    %v2965 = vld [vmem:[%s12] sm:$0x1]
    %2966 = vadd.xlane.f32.xlu0 %v2962
    %v2967 = vpop.xlane.xlu0 %2966
    %2968 = vadd.xlane.f32.xlu0 %v2963
    %v2969 = vpop.xlane.xlu0 %2968
    %v2970 = vmul.f32 %v2967, 0.03125
    %v2971 = vmul.f32 %v2969, 0.03125
    %v2972 = vsub.f32 %v2962, %v2970
    %v2973 = vsub.f32 %v2963, %v2971
    %v2974 = vmul.f32 %v2972, %v576
    %v2975 = vmul.f32 %v2973, %v576
    %v2976 = vmul.f32 %v2974, %v2974
    %v2977 = vmul.f32 %v2975, %v2975
    %2978 = vadd.xlane.f32.xlu0 %v2976
    %v2979 = vpop.xlane.xlu0 %2978
    %2980 = vadd.xlane.f32.xlu0 %v2977
    %v2981 = vpop.xlane.xlu0 %2980
    %v2982 = vmul.f32 %v2979, 0.03125
    %v2983 = vmul.f32 %v2981, 0.03125
    %v2984 = vadd.f32 %v2982, 1e-05
    %v2985 = vadd.f32 %v2983, 1e-05
    %v2986 = vrsqrt.pop %v2984
    %v2987 = vmul.f32 %v2986, %v2984
    %v2988 = vmul.f32 %v2987, %v2986
    %v2989 = vmul.f32 0.5, %v2988
    %v2990 = vsub.f32 1.5, %v2989
    %v2991 = vmul.f32 %v2986, %v2990
    %vm2992 = vweird.f32 %v2984
    %vm2993 = vweird.f32 %v2986
    %vm2994 = vmor %vm2992, %vm2993
    %v2995 = vsel %vm2994, %v2986, %v2991
    %v2996 = vrsqrt.pop %v2985
    %v2997 = vmul.f32 %v2996, %v2985
    %v2998 = vmul.f32 %v2997, %v2996
    %v2999 = vmul.f32 0.5, %v2998
    %v3000 = vsub.f32 1.5, %v2999
    %v3001 = vmul.f32 %v2996, %v3000
    %vm3002 = vweird.f32 %v2985
    %vm3003 = vweird.f32 %v2996
    %vm3004 = vmor %vm3002, %vm3003
    %v3005 = vsel %vm3004, %v2996, %v3001
    %v3006 = vmul.f32 %v2974, %v2995
    %v3007 = vmul.f32 %v2975, %v3005
    %v3009 = vperm.slane %v2964, 0
    %v3011 = vmul.f32 %v3006, %v3009
    %v3012 = vmul.f32 %v3007, %v3009
    %v3014 = vperm.slane %v2965, 0
    %v3016 = vadd.f32 %v3011, %v3014
    %v3017 = vadd.f32 %v3012, %v3014
    %v3018 = vpack.c.bf16 %v3017, %v3016
    %v3019 = vld [vmem:[#allocation14] sm:$0xf]
    %v3020 = vld [vmem:[#allocation14 + $0x4] sm:$0xf]
    %v3021 = vld [vmem:[#allocation14 + $0x8] sm:$0xf]
    %v3022 = vld [vmem:[#allocation14 + $0xc] sm:$0xf]
    %v3023 = vld [vmem:[#allocation14 + $0x10] sm:$0xf]
    %v3024 = vld [vmem:[#allocation14 + $0x14] sm:$0xf]
    %v3025 = vld [vmem:[#allocation14 + $0x18] sm:$0xf]
    %v3026 = vld [vmem:[#allocation14 + $0x1c] sm:$0xf]
    %v3027 = vld [vmem:[#allocation14 + $0x20] sm:$0xf]
    %v3028 = vld [vmem:[#allocation14 + $0x24] sm:$0xf]
    %v3029 = vld [vmem:[#allocation14 + $0x28] sm:$0xf]
    %v3030 = vld [vmem:[#allocation14 + $0x2c] sm:$0xf]
    %v3031 = vld [vmem:[#allocation14 + $0x30] sm:$0xf]
    %v3032 = vld [vmem:[#allocation14 + $0x34] sm:$0xf]
    %v3033 = vld [vmem:[#allocation14 + $0x38] sm:$0xf]
    %v3034 = vld [vmem:[#allocation14 + $0x3c] sm:$0xf]
    %v3035 = vld [vmem:[%s14] sm:$0x1]
    %v3037 = vperm.slane %v3035, 0
    %v3055 = vunpack.c.l.b16 %v3019
    %v3056 = vunpack.c.l.b16 %v3020
    %v3057 = vunpack.c.l.b16 %v3021
    %v3058 = vunpack.c.l.b16 %v3022
    %v3059 = vunpack.c.l.b16 %v3023
    %v3060 = vunpack.c.l.b16 %v3024
    %v3061 = vunpack.c.l.b16 %v3025
    %v3062 = vunpack.c.l.b16 %v3026
    %v3063 = vunpack.c.l.b16 %v3027
    %v3064 = vunpack.c.l.b16 %v3028
    %v3065 = vunpack.c.l.b16 %v3029
    %v3066 = vunpack.c.l.b16 %v3030
    %v3067 = vunpack.c.l.b16 %v3031
    %v3068 = vunpack.c.l.b16 %v3032
    %v3069 = vunpack.c.l.b16 %v3033
    %v3070 = vunpack.c.l.b16 %v3034
    %v3071 = vpack.c.b16 %v3056, %v3055
    %v3072 = vpack.c.b16 %v3058, %v3057
    %v3073 = vpack.c.b16 %v3060, %v3059
    %v3074 = vpack.c.b16 %v3062, %v3061
    %v3075 = vpack.c.b16 %v3064, %v3063
    %v3076 = vpack.c.b16 %v3066, %v3065
    %v3077 = vpack.c.b16 %v3068, %v3067
    %v3078 = vpack.c.b16 %v3070, %v3069
    %3087 = vmatpush.bf16.msra.mxu0 %v3078
    %3088 = vmatpush.bf16.msra.mxu0 %v3077
    %3089 = vmatpush.bf16.msra.mxu0 %v3076
    %3090 = vmatpush.bf16.msra.mxu0 %v3075
    %3091 = vmatpush.bf16.msra.mxu0 %v3074
    %3092 = vmatpush.bf16.msra.mxu0 %v3073
    %3093 = vmatpush.bf16.msra.mxu0 %v3072
    %3094 = vmatpush.bf16.msra.mxu0 %v3071
    %3095 = vmatmul.bf16.gmra.mxu0 %v3018
    %v3096 = vpop.f32.mrf.mxu0
    %v3097 = vadd.f32 %v3037, %v3096
    %v3098 = vpop.f32.mrf.mxu0
    %v3099 = vadd.f32 %v3037, %v3098
    %3100 = vdwg.mxu0
    %v3101 = vpack.c.bf16 %v3097, %v3097
    %v3102 = vpack.c.bf16 %v3099, %v3099
    %3103 = vst [vmem:[#allocation16] sm:$0xf] %v3101
    %3104 = vst [vmem:[#allocation16 + $0x4] sm:$0xf] %v3102
    // Predicated region
    $region94: #{tpu_custom_call.1} parent=1 // pred_check
      _
    $region95: #{tpu_custom_call.1} parent=1 // pred_check_branch
      %3106 = sbr.rel (0) target = $region97
    $region96: #{tpu_custom_call.1} parent=1 // pred_region
      %3108 = vsyncadd [#allocation4], 0
      %s3109 = sshll.u32 [#allocation16], 4
      %s3110 = int_to_ptr.vmem [resolvable:$true] %s3109
      %s3111 = sshll.u32 %s15, 4
      %s3112 = int_to_ptr.hbm [resolvable:$true] %s3111
      %3117 = dma.vmem_to_hbm [thread:$0]  %s3110, 128, %s3112, [#allocation4], 64, 64, 4
    $region97: #{tpu_custom_call.1} parent=1 // pred_fallthru
      _
    // Predicated region
    $region98: #{tpu_custom_call.1} parent=1 // pred_check
      _
    $region99: #{tpu_custom_call.1} parent=1 // pred_check_branch
      %3119 = sbr.rel (0) target = $region101
    $region100: #{tpu_custom_call.1} parent=1 // pred_region
      %3121 = dma.done [#allocation4], 128
    $region101: #{tpu_custom_call.1} parent=1 // pred_fallthru
      _
    %3122 = vsyncpa [#allocation3], 1
    %3123 = vsyncpa [#allocation6], 1
    %3124 = vsyncpa [#allocation9], 1
    %3125 = vsyncpa [#allocation12], 1
    %3126 = vsyncpa [#allocation15], 1
    %3127 = vsyncpa [#allocation4], 1

</llo_original>
